<compile_context>
chip_gen: v7x
topology: tpu7x:2x2x1
jax: 0.10.0
libtpu: 0.0.40
codegen_flags: <defaults>
</compile_context>

<pallas_src>
import jax
import jax.numpy as jnp
from jax.experimental import pallas as pl
from jax.experimental.pallas import tpu as pltpu

HIDDEN = 256
N_VOCAB = 47   # synthetic stand-in for len(set(raw_text))
LANE = 128     # lane width (pad vocab dim to this)
SUBLANE = 8    # sublane width (pad batch dim to this)


def _sigmoid_eup(z):
    # EUP-friendly sigmoid: exact identity, tanh lands on the EUP slot (no VALU divide).
    return 0.5 * (jnp.tanh(0.5 * z) + 1.0)


def _sigmoid_ref(z):
    return 1.0 / (1.0 + jnp.exp(-z))


def char_model_kernel(x_ref, w_ih_ref, b_ref, w_hh_ref, w_lin_ref, b_lin_ref,
                      out_ref, xpre_ref):
    # x_ref:     (T, Bp, 1)   f32   normalized char codes, time-major, batch padded
    # w_ih_ref:  (1, 1, 4H)   f32   LSTM input weights (input_size=1 -> a single row)
    # b_ref:     (1, 1, 4H)   f32   b_ih + b_hh, pre-folded
    # w_hh_ref:  (H, 4H)      bf16  LSTM recurrent weights, pre-transposed
    # w_lin_ref: (H, Vp)      f32   final linear weights, pre-transposed & lane-padded
    # b_lin_ref: (1, Vp)      f32
    # out_ref:   (Bp, Vp)     f32
    # xpre_ref:  (T, Bp, 4H)  f32   VMEM scratch for the hoisted input-side preactivation
    T = x_ref.shape[0]
    B = x_ref.shape[1]
    H = w_hh_ref.shape[0]

    # Hoisted out of the recurrence: input-side gate preactivation for all timesteps.
    # (One lane/sublane broadcast + mul/add, written once to VMEM scratch.)
    xpre_ref[...] = x_ref[...] * w_ih_ref[...] + b_ref[...]          # (T, Bp, 4H)

    # Load the recurrent weights once; reused every unrolled step.
    w_hh = w_hh_ref[...]                                             # (H, 4H) bf16

    def step(t, carry):
        h, c = carry
        # Recurrent contribution: bf16 x bf16 -> f32 accumulate on the MXU.
        gates = xpre_ref[t] + jnp.dot(
            h.astype(jnp.bfloat16), w_hh, preferred_element_type=jnp.float32
        )                                                            # (Bp, 4H) f32
        # PyTorch gate order: i, f, g, o
        i = _sigmoid_eup(gates[:, 0:H])
        f = _sigmoid_eup(gates[:, H:2 * H])
        g = jnp.tanh(gates[:, 2 * H:3 * H])
        o = _sigmoid_eup(gates[:, 3 * H:4 * H])
        c_new = f * c + i * g
        h_new = o * jnp.tanh(c_new)
        return (h_new, c_new)

    h0 = jnp.zeros((B, H), jnp.float32)
    c0 = jnp.zeros((B, H), jnp.float32)
    # T is small and static -> fully unroll so cross-step overlap is visible to the scheduler.
    h_last, _ = jax.lax.fori_loop(0, T, step, (h0, c0), unroll=True)

    # x = x[:, -1, :] is implicit: h_last IS the last-timestep hidden state.
    # TODO(synk): dropout(p=0.2) is identity in eval mode; training-mode stochastic
    # dropout (pltpu.prng_*) not implemented.
    out_ref[...] = (jnp.dot(h_last, w_lin_ref[...], preferred_element_type=jnp.float32)
                    + b_lin_ref[...])


def prepare_params(params):
    """One-time parameter preparation (transpose / fold / pad / cast).

    Done once outside the per-call forward so transposes/pads are not re-emitted
    as XLA ops on every invocation.
    """
    w_ih, w_hh, b_ih, b_hh, w_lin, b_lin = params
    H = HIDDEN
    V = w_lin.shape[0]
    Vp = max(LANE, ((V + LANE - 1) // LANE) * LANE)

    w_ih_r = w_ih.reshape(1, 1, 4 * H).astype(jnp.float32)            # (1, 1, 4H)
    b_r = (b_ih + b_hh).reshape(1, 1, 4 * H).astype(jnp.float32)      # (1, 1, 4H)
    w_hh_t = w_hh.T.astype(jnp.bfloat16)                              # (H, 4H) bf16 for MXU
    w_lin_t = jnp.zeros((H, Vp), jnp.float32).at[:, :V].set(w_lin.T.astype(jnp.float32))
    b_lin_p = jnp.zeros((1, Vp), jnp.float32).at[:, :V].set(b_lin.reshape(1, V).astype(jnp.float32))
    return (w_ih_r, b_r, w_hh_t, w_lin_t, b_lin_p)


@jax.jit
def char_model_forward(x, prepared):
    """x: (B, T, 1) float32, batch-first like PyTorch nn.LSTM(batch_first=True)."""
    w_ih_r, b_r, w_hh_bf16, w_lin_p, b_lin_p = prepared
    B, T, _ = x.shape
    H = w_hh_bf16.shape[0]
    Vp = w_lin_p.shape[1]
    Bp = max(SUBLANE, pl.cdiv(B, SUBLANE) * SUBLANE)

    # Glue (layout plumbing only): pad batch to full sublanes and go time-major.
    x_p = jnp.zeros((Bp, T, 1), jnp.float32).at[:B].set(x.astype(jnp.float32))
    x_tm = jnp.transpose(x_p, (1, 0, 2))                              # (T, Bp, 1)

    vm = pl.BlockSpec(memory_space=pltpu.MemorySpace.VMEM)
    out_p = pl.pallas_call(
        char_model_kernel,
        out_shape=jax.ShapeDtypeStruct((Bp, Vp), jnp.float32),
        in_specs=[vm, vm, vm, vm, vm, vm],
        out_specs=vm,
        scratch_shapes=[pltpu.VMEM((T, Bp, 4 * H), jnp.float32)],
    )(x_tm, w_ih_r, b_r, w_hh_bf16, w_lin_p, b_lin_p)

    return out_p[:B, :N_VOCAB]


def init_params(key):
    """Deterministic init matching PyTorch shapes (uniform +-1/sqrt(H), like nn.LSTM/Linear)."""
    H, V = HIDDEN, N_VOCAB
    k = jax.random.split(key, 6)
    s = 1.0 / jnp.sqrt(jnp.float32(H))
    w_ih = jax.random.uniform(k[0], (4 * H, 1), jnp.float32, -s, s)   # lstm.weight_ih_l0
    w_hh = jax.random.uniform(k[1], (4 * H, H), jnp.float32, -s, s)   # lstm.weight_hh_l0
    b_ih = jax.random.uniform(k[2], (4 * H,), jnp.float32, -s, s)     # lstm.bias_ih_l0
    b_hh = jax.random.uniform(k[3], (4 * H,), jnp.float32, -s, s)     # lstm.bias_hh_l0
    w_lin = jax.random.uniform(k[4], (V, H), jnp.float32, -s, s)      # linear.weight
    b_lin = jax.random.uniform(k[5], (V,), jnp.float32, -s, s)        # linear.bias
    return (w_ih, w_hh, b_ih, b_hh, w_lin, b_lin)


def reference_forward(x, params):
    """Pure-JAX f32 reference of the PyTorch forward (eval mode)."""
    w_ih, w_hh, b_ih, b_hh, w_lin, b_lin = params
    H = HIDDEN
    B = x.shape[0]

    def step(carry, x_t):
        h, c = carry
        gates = x_t @ w_ih.T + b_ih + h @ w_hh.T + b_hh
        i = _sigmoid_ref(gates[:, 0:H])
        f = _sigmoid_ref(gates[:, H:2 * H])
        g = jnp.tanh(gates[:, 2 * H:3 * H])
        o = _sigmoid_ref(gates[:, 3 * H:4 * H])
        c = f * c + i * g
        h = o * jnp.tanh(c)
        return (h, c), None

    init = (jnp.zeros((B, H), jnp.float32), jnp.zeros((B, H), jnp.float32))
    (h, _), _ = jax.lax.scan(step, init, jnp.transpose(x, (1, 0, 2)))
    return h @ w_lin.T + b_lin


if __name__ == "__main__":
    key = jax.random.PRNGKey(0)
    pkey, xkey = jax.random.split(key)
    params = init_params(pkey)
    prepared = prepare_params(params)

    B, T = 2, 8
    # Normalized char codes in [0, 1), shape (batch, seq_len, 1) as in the PyTorch model.
    x = jax.random.uniform(xkey, (B, T, 1), jnp.float32)

    out = char_model_forward(x, prepared)
    out = jax.block_until_ready(out)

    ref = reference_forward(x, params)
    assert out.shape == (B, N_VOCAB), out.shape
    # bf16 recurrent matmul + EUP tanh-sigmoid: small numeric drift vs the f32 reference.
    assert jnp.allclose(out, ref, atol=2e-2, rtol=2e-2), float(jnp.max(jnp.abs(out - ref)))
    print("KERNEL_OK")
</pallas_src>

<mosaic_0001>
module attributes {stable_mosaic.version = 11 : i64} {
  func.func @char_model_kernel(%arg0: memref<8x8x1xf32, #tpu.memory_space<vmem>>, %arg1: memref<1x1x1024xf32, #tpu.memory_space<vmem>>, %arg2: memref<1x1x1024xf32, #tpu.memory_space<vmem>>, %arg3: memref<256x1024xbf16, #tpu.memory_space<vmem>>, %arg4: memref<256x128xf32, #tpu.memory_space<vmem>>, %arg5: memref<1x128xf32, #tpu.memory_space<vmem>>, %arg6: memref<8x128xf32, #tpu.memory_space<vmem>>, %arg7: memref<8x8x1024xf32, #tpu.memory_space<vmem>>) attributes {dimension_semantics = [], scalar_prefetch = 0 : i64, scratch_operands = 1 : i64, tpu.core_type = #tpu.core_type<tc>} {
    %c0 = arith.constant 0 : index
    %c0_0 = arith.constant 0 : index
    %c0_1 = arith.constant 0 : index
    %0 = vector.load %arg0[%c0, %c0_0, %c0_1] : memref<8x8x1xf32, #tpu.memory_space<vmem>>, vector<8x8x1xf32>
    %c0_2 = arith.constant 0 : index
    %c0_3 = arith.constant 0 : index
    %c0_4 = arith.constant 0 : index
    %1 = vector.load %arg1[%c0_2, %c0_3, %c0_4] : memref<1x1x1024xf32, #tpu.memory_space<vmem>>, vector<1x1x1024xf32>
    %2 = vector.broadcast %0 : vector<8x8x1xf32> to vector<8x8x1024xf32>
    %3 = vector.broadcast %1 : vector<1x1x1024xf32> to vector<8x8x1024xf32>
    %4 = arith.mulf %2, %3 : vector<8x8x1024xf32>
    %c0_5 = arith.constant 0 : index
    %c0_6 = arith.constant 0 : index
    %c0_7 = arith.constant 0 : index
    %5 = vector.load %arg2[%c0_5, %c0_6, %c0_7] : memref<1x1x1024xf32, #tpu.memory_space<vmem>>, vector<1x1x1024xf32>
    %6 = vector.broadcast %5 : vector<1x1x1024xf32> to vector<8x8x1024xf32>
    %7 = arith.addf %4, %6 : vector<8x8x1024xf32>
    %c0_8 = arith.constant 0 : index
    %c0_9 = arith.constant 0 : index
    %c0_10 = arith.constant 0 : index
    %8 = vector.load %arg7[%c0_8, %c0_9, %c0_10] : memref<8x8x1024xf32, #tpu.memory_space<vmem>>, vector<8x8x1024xf32>
    tpu.vector_store %arg7[%c0_8, %c0_9, %c0_10], %7 {strides = array<i32>} : memref<8x8x1024xf32, #tpu.memory_space<vmem>>, vector<8x8x1024xf32>,
    %c0_11 = arith.constant 0 : index
    %c0_12 = arith.constant 0 : index
    %9 = vector.load %arg3[%c0_11, %c0_12] : memref<256x1024xbf16, #tpu.memory_space<vmem>>, vector<256x1024xbf16>
    %cst = arith.constant 0.000000e+00 : f32
    %10 = vector.broadcast %cst : f32 to vector<8x256xf32>
    %cst_13 = arith.constant 0.000000e+00 : f32
    %11 = vector.broadcast %cst_13 : f32 to vector<8x256xf32>
    %c0_i32 = arith.constant 0 : i32
    %12 = arith.index_cast %c0_i32 : i32 to index
    %c0_14 = arith.constant 0 : index
    %c0_15 = arith.constant 0 : index
    %13 = vector.load %arg7[%12, %c0_14, %c0_15] : memref<8x8x1024xf32, #tpu.memory_space<vmem>>, vector<1x8x1024xf32>
    %14 = vector.shape_cast %13 : vector<1x8x1024xf32> to vector<8x1024xf32>
    %15 = arith.truncf %10 : vector<8x256xf32> to vector<8x256xbf16>
    %cst_16 = arith.constant dense<0.000000e+00> : vector<8x1024xf32>
    %16 = tpu.matmul %15, %9, %cst_16 {dimension_numbers = #tpu.dot_dimension_numbers<[1], [0], [0], [1], [0, 0, 1, 1], [], []>} : vector<8x256xbf16>, vector<256x1024xbf16>, vector<8x1024xf32> -> vector<8x1024xf32>
    %17 = arith.addf %14, %16 : vector<8x1024xf32>
    %18 = vector.extract_strided_slice %17 {offsets = [0, 0], sizes = [8, 256], strides = [1, 1]} : vector<8x1024xf32> to vector<8x256xf32>
    %cst_17 = arith.constant 5.000000e-01 : f32
    %19 = vector.broadcast %cst_17 : f32 to vector<8x256xf32>
    %20 = arith.mulf %19, %18 : vector<8x256xf32>
    %21 = math.tanh %20 : vector<8x256xf32>
    %cst_18 = arith.constant 1.000000e+00 : f32
    %22 = vector.broadcast %cst_18 : f32 to vector<8x256xf32>
    %23 = arith.addf %21, %22 : vector<8x256xf32>
    %cst_19 = arith.constant 5.000000e-01 : f32
    %24 = vector.broadcast %cst_19 : f32 to vector<8x256xf32>
    %25 = arith.mulf %24, %23 : vector<8x256xf32>
    %26 = vector.extract_strided_slice %17 {offsets = [0, 256], sizes = [8, 256], strides = [1, 1]} : vector<8x1024xf32> to vector<8x256xf32>
    %cst_20 = arith.constant 5.000000e-01 : f32
    %27 = vector.broadcast %cst_20 : f32 to vector<8x256xf32>
    %28 = arith.mulf %27, %26 : vector<8x256xf32>
    %29 = math.tanh %28 : vector<8x256xf32>
    %cst_21 = arith.constant 1.000000e+00 : f32
    %30 = vector.broadcast %cst_21 : f32 to vector<8x256xf32>
    %31 = arith.addf %29, %30 : vector<8x256xf32>
    %cst_22 = arith.constant 5.000000e-01 : f32
    %32 = vector.broadcast %cst_22 : f32 to vector<8x256xf32>
    %33 = arith.mulf %32, %31 : vector<8x256xf32>
    %34 = vector.extract_strided_slice %17 {offsets = [0, 512], sizes = [8, 256], strides = [1, 1]} : vector<8x1024xf32> to vector<8x256xf32>
    %35 = math.tanh %34 : vector<8x256xf32>
    %36 = vector.extract_strided_slice %17 {offsets = [0, 768], sizes = [8, 256], strides = [1, 1]} : vector<8x1024xf32> to vector<8x256xf32>
    %cst_23 = arith.constant 5.000000e-01 : f32
    %37 = vector.broadcast %cst_23 : f32 to vector<8x256xf32>
    %38 = arith.mulf %37, %36 : vector<8x256xf32>
    %39 = math.tanh %38 : vector<8x256xf32>
    %cst_24 = arith.constant 1.000000e+00 : f32
    %40 = vector.broadcast %cst_24 : f32 to vector<8x256xf32>
    %41 = arith.addf %39, %40 : vector<8x256xf32>
    %cst_25 = arith.constant 5.000000e-01 : f32
    %42 = vector.broadcast %cst_25 : f32 to vector<8x256xf32>
    %43 = arith.mulf %42, %41 : vector<8x256xf32>
    %44 = arith.mulf %33, %11 : vector<8x256xf32>
    %45 = arith.mulf %25, %35 : vector<8x256xf32>
    %46 = arith.addf %44, %45 : vector<8x256xf32>
    %47 = math.tanh %46 : vector<8x256xf32>
    %48 = arith.mulf %43, %47 : vector<8x256xf32>
    %c1_i32 = arith.constant 1 : i32
    %49 = arith.index_cast %c1_i32 : i32 to index
    %c0_26 = arith.constant 0 : index
    %c0_27 = arith.constant 0 : index
    %50 = vector.load %arg7[%49, %c0_26, %c0_27] : memref<8x8x1024xf32, #tpu.memory_space<vmem>>, vector<1x8x1024xf32>
    %51 = vector.shape_cast %50 : vector<1x8x1024xf32> to vector<8x1024xf32>
    %52 = arith.truncf %48 : vector<8x256xf32> to vector<8x256xbf16>
    %cst_28 = arith.constant dense<0.000000e+00> : vector<8x1024xf32>
    %53 = tpu.matmul %52, %9, %cst_28 {dimension_numbers = #tpu.dot_dimension_numbers<[1], [0], [0], [1], [0, 0, 1, 1], [], []>} : vector<8x256xbf16>, vector<256x1024xbf16>, vector<8x1024xf32> -> vector<8x1024xf32>
    %54 = arith.addf %51, %53 : vector<8x1024xf32>
    %55 = vector.extract_strided_slice %54 {offsets = [0, 0], sizes = [8, 256], strides = [1, 1]} : vector<8x1024xf32> to vector<8x256xf32>
    %cst_29 = arith.constant 5.000000e-01 : f32
    %56 = vector.broadcast %cst_29 : f32 to vector<8x256xf32>
    %57 = arith.mulf %56, %55 : vector<8x256xf32>
    %58 = math.tanh %57 : vector<8x256xf32>
    %cst_30 = arith.constant 1.000000e+00 : f32
    %59 = vector.broadcast %cst_30 : f32 to vector<8x256xf32>
    %60 = arith.addf %58, %59 : vector<8x256xf32>
    %cst_31 = arith.constant 5.000000e-01 : f32
    %61 = vector.broadcast %cst_31 : f32 to vector<8x256xf32>
    %62 = arith.mulf %61, %60 : vector<8x256xf32>
    %63 = vector.extract_strided_slice %54 {offsets = [0, 256], sizes = [8, 256], strides = [1, 1]} : vector<8x1024xf32> to vector<8x256xf32>
    %cst_32 = arith.constant 5.000000e-01 : f32
    %64 = vector.broadcast %cst_32 : f32 to vector<8x256xf32>
    %65 = arith.mulf %64, %63 : vector<8x256xf32>
    %66 = math.tanh %65 : vector<8x256xf32>
    %cst_33 = arith.constant 1.000000e+00 : f32
    %67 = vector.broadcast %cst_33 : f32 to vector<8x256xf32>
    %68 = arith.addf %66, %67 : vector<8x256xf32>
    %cst_34 = arith.constant 5.000000e-01 : f32
    %69 = vector.broadcast %cst_34 : f32 to vector<8x256xf32>
    %70 = arith.mulf %69, %68 : vector<8x256xf32>
    %71 = vector.extract_strided_slice %54 {offsets = [0, 512], sizes = [8, 256], strides = [1, 1]} : vector<8x1024xf32> to vector<8x256xf32>
    %72 = math.tanh %71 : vector<8x256xf32>
    %73 = vector.extract_strided_slice %54 {offsets = [0, 768], sizes = [8, 256], strides = [1, 1]} : vector<8x1024xf32> to vector<8x256xf32>
    %cst_35 = arith.constant 5.000000e-01 : f32
    %74 = vector.broadcast %cst_35 : f32 to vector<8x256xf32>
    %75 = arith.mulf %74, %73 : vector<8x256xf32>
    %76 = math.tanh %75 : vector<8x256xf32>
    %cst_36 = arith.constant 1.000000e+00 : f32
    %77 = vector.broadcast %cst_36 : f32 to vector<8x256xf32>
    %78 = arith.addf %76, %77 : vector<8x256xf32>
    %cst_37 = arith.constant 5.000000e-01 : f32
    %79 = vector.broadcast %cst_37 : f32 to vector<8x256xf32>
    %80 = arith.mulf %79, %78 : vector<8x256xf32>
    %81 = arith.mulf %70, %46 : vector<8x256xf32>
    %82 = arith.mulf %62, %72 : vector<8x256xf32>
    %83 = arith.addf %81, %82 : vector<8x256xf32>
    %84 = math.tanh %83 : vector<8x256xf32>
    %85 = arith.mulf %80, %84 : vector<8x256xf32>
    %c2_i32 = arith.constant 2 : i32
    %86 = arith.index_cast %c2_i32 : i32 to index
    %c0_38 = arith.constant 0 : index
    %c0_39 = arith.constant 0 : index
    %87 = vector.load %arg7[%86, %c0_38, %c0_39] : memref<8x8x1024xf32, #tpu.memory_space<vmem>>, vector<1x8x1024xf32>
    %88 = vector.shape_cast %87 : vector<1x8x1024xf32> to vector<8x1024xf32>
    %89 = arith.truncf %85 : vector<8x256xf32> to vector<8x256xbf16>
    %cst_40 = arith.constant dense<0.000000e+00> : vector<8x1024xf32>
    %90 = tpu.matmul %89, %9, %cst_40 {dimension_numbers = #tpu.dot_dimension_numbers<[1], [0], [0], [1], [0, 0, 1, 1], [], []>} : vector<8x256xbf16>, vector<256x1024xbf16>, vector<8x1024xf32> -> vector<8x1024xf32>
    %91 = arith.addf %88, %90 : vector<8x1024xf32>
    %92 = vector.extract_strided_slice %91 {offsets = [0, 0], sizes = [8, 256], strides = [1, 1]} : vector<8x1024xf32> to vector<8x256xf32>
    %cst_41 = arith.constant 5.000000e-01 : f32
    %93 = vector.broadcast %cst_41 : f32 to vector<8x256xf32>
    %94 = arith.mulf %93, %92 : vector<8x256xf32>
    %95 = math.tanh %94 : vector<8x256xf32>
    %cst_42 = arith.constant 1.000000e+00 : f32
    %96 = vector.broadcast %cst_42 : f32 to vector<8x256xf32>
    %97 = arith.addf %95, %96 : vector<8x256xf32>
    %cst_43 = arith.constant 5.000000e-01 : f32
    %98 = vector.broadcast %cst_43 : f32 to vector<8x256xf32>
    %99 = arith.mulf %98, %97 : vector<8x256xf32>
    %100 = vector.extract_strided_slice %91 {offsets = [0, 256], sizes = [8, 256], strides = [1, 1]} : vector<8x1024xf32> to vector<8x256xf32>
    %cst_44 = arith.constant 5.000000e-01 : f32
    %101 = vector.broadcast %cst_44 : f32 to vector<8x256xf32>
    %102 = arith.mulf %101, %100 : vector<8x256xf32>
    %103 = math.tanh %102 : vector<8x256xf32>
    %cst_45 = arith.constant 1.000000e+00 : f32
    %104 = vector.broadcast %cst_45 : f32 to vector<8x256xf32>
    %105 = arith.addf %103, %104 : vector<8x256xf32>
    %cst_46 = arith.constant 5.000000e-01 : f32
    %106 = vector.broadcast %cst_46 : f32 to vector<8x256xf32>
    %107 = arith.mulf %106, %105 : vector<8x256xf32>
    %108 = vector.extract_strided_slice %91 {offsets = [0, 512], sizes = [8, 256], strides = [1, 1]} : vector<8x1024xf32> to vector<8x256xf32>
    %109 = math.tanh %108 : vector<8x256xf32>
    %110 = vector.extract_strided_slice %91 {offsets = [0, 768], sizes = [8, 256], strides = [1, 1]} : vector<8x1024xf32> to vector<8x256xf32>
    %cst_47 = arith.constant 5.000000e-01 : f32
    %111 = vector.broadcast %cst_47 : f32 to vector<8x256xf32>
    %112 = arith.mulf %111, %110 : vector<8x256xf32>
    %113 = math.tanh %112 : vector<8x256xf32>
    %cst_48 = arith.constant 1.000000e+00 : f32
    %114 = vector.broadcast %cst_48 : f32 to vector<8x256xf32>
    %115 = arith.addf %113, %114 : vector<8x256xf32>
    %cst_49 = arith.constant 5.000000e-01 : f32
    %116 = vector.broadcast %cst_49 : f32 to vector<8x256xf32>
    %117 = arith.mulf %116, %115 : vector<8x256xf32>
    %118 = arith.mulf %107, %83 : vector<8x256xf32>
    %119 = arith.mulf %99, %109 : vector<8x256xf32>
    %120 = arith.addf %118, %119 : vector<8x256xf32>
    %121 = math.tanh %120 : vector<8x256xf32>
    %122 = arith.mulf %117, %121 : vector<8x256xf32>
    %c3_i32 = arith.constant 3 : i32
    %123 = arith.index_cast %c3_i32 : i32 to index
    %c0_50 = arith.constant 0 : index
    %c0_51 = arith.constant 0 : index
    %124 = vector.load %arg7[%123, %c0_50, %c0_51] : memref<8x8x1024xf32, #tpu.memory_space<vmem>>, vector<1x8x1024xf32>
    %125 = vector.shape_cast %124 : vector<1x8x1024xf32> to vector<8x1024xf32>
    %126 = arith.truncf %122 : vector<8x256xf32> to vector<8x256xbf16>
    %cst_52 = arith.constant dense<0.000000e+00> : vector<8x1024xf32>
    %127 = tpu.matmul %126, %9, %cst_52 {dimension_numbers = #tpu.dot_dimension_numbers<[1], [0], [0], [1], [0, 0, 1, 1], [], []>} : vector<8x256xbf16>, vector<256x1024xbf16>, vector<8x1024xf32> -> vector<8x1024xf32>
    %128 = arith.addf %125, %127 : vector<8x1024xf32>
    %129 = vector.extract_strided_slice %128 {offsets = [0, 0], sizes = [8, 256], strides = [1, 1]} : vector<8x1024xf32> to vector<8x256xf32>
    %cst_53 = arith.constant 5.000000e-01 : f32
    %130 = vector.broadcast %cst_53 : f32 to vector<8x256xf32>
    %131 = arith.mulf %130, %129 : vector<8x256xf32>
    %132 = math.tanh %131 : vector<8x256xf32>
    %cst_54 = arith.constant 1.000000e+00 : f32
    %133 = vector.broadcast %cst_54 : f32 to vector<8x256xf32>
    %134 = arith.addf %132, %133 : vector<8x256xf32>
    %cst_55 = arith.constant 5.000000e-01 : f32
    %135 = vector.broadcast %cst_55 : f32 to vector<8x256xf32>
    %136 = arith.mulf %135, %134 : vector<8x256xf32>
    %137 = vector.extract_strided_slice %128 {offsets = [0, 256], sizes = [8, 256], strides = [1, 1]} : vector<8x1024xf32> to vector<8x256xf32>
    %cst_56 = arith.constant 5.000000e-01 : f32
    %138 = vector.broadcast %cst_56 : f32 to vector<8x256xf32>
    %139 = arith.mulf %138, %137 : vector<8x256xf32>
    %140 = math.tanh %139 : vector<8x256xf32>
    %cst_57 = arith.constant 1.000000e+00 : f32
    %141 = vector.broadcast %cst_57 : f32 to vector<8x256xf32>
    %142 = arith.addf %140, %141 : vector<8x256xf32>
    %cst_58 = arith.constant 5.000000e-01 : f32
    %143 = vector.broadcast %cst_58 : f32 to vector<8x256xf32>
    %144 = arith.mulf %143, %142 : vector<8x256xf32>
    %145 = vector.extract_strided_slice %128 {offsets = [0, 512], sizes = [8, 256], strides = [1, 1]} : vector<8x1024xf32> to vector<8x256xf32>
    %146 = math.tanh %145 : vector<8x256xf32>
    %147 = vector.extract_strided_slice %128 {offsets = [0, 768], sizes = [8, 256], strides = [1, 1]} : vector<8x1024xf32> to vector<8x256xf32>
    %cst_59 = arith.constant 5.000000e-01 : f32
    %148 = vector.broadcast %cst_59 : f32 to vector<8x256xf32>
    %149 = arith.mulf %148, %147 : vector<8x256xf32>
    %150 = math.tanh %149 : vector<8x256xf32>
    %cst_60 = arith.constant 1.000000e+00 : f32
    %151 = vector.broadcast %cst_60 : f32 to vector<8x256xf32>
    %152 = arith.addf %150, %151 : vector<8x256xf32>
    %cst_61 = arith.constant 5.000000e-01 : f32
    %153 = vector.broadcast %cst_61 : f32 to vector<8x256xf32>
    %154 = arith.mulf %153, %152 : vector<8x256xf32>
    %155 = arith.mulf %144, %120 : vector<8x256xf32>
    %156 = arith.mulf %136, %146 : vector<8x256xf32>
    %157 = arith.addf %155, %156 : vector<8x256xf32>
    %158 = math.tanh %157 : vector<8x256xf32>
    %159 = arith.mulf %154, %158 : vector<8x256xf32>
    %c4_i32 = arith.constant 4 : i32
    %160 = arith.index_cast %c4_i32 : i32 to index
    %c0_62 = arith.constant 0 : index
    %c0_63 = arith.constant 0 : index
    %161 = vector.load %arg7[%160, %c0_62, %c0_63] : memref<8x8x1024xf32, #tpu.memory_space<vmem>>, vector<1x8x1024xf32>
    %162 = vector.shape_cast %161 : vector<1x8x1024xf32> to vector<8x1024xf32>
    %163 = arith.truncf %159 : vector<8x256xf32> to vector<8x256xbf16>
    %cst_64 = arith.constant dense<0.000000e+00> : vector<8x1024xf32>
    %164 = tpu.matmul %163, %9, %cst_64 {dimension_numbers = #tpu.dot_dimension_numbers<[1], [0], [0], [1], [0, 0, 1, 1], [], []>} : vector<8x256xbf16>, vector<256x1024xbf16>, vector<8x1024xf32> -> vector<8x1024xf32>
    %165 = arith.addf %162, %164 : vector<8x1024xf32>
    %166 = vector.extract_strided_slice %165 {offsets = [0, 0], sizes = [8, 256], strides = [1, 1]} : vector<8x1024xf32> to vector<8x256xf32>
    %cst_65 = arith.constant 5.000000e-01 : f32
    %167 = vector.broadcast %cst_65 : f32 to vector<8x256xf32>
    %168 = arith.mulf %167, %166 : vector<8x256xf32>
    %169 = math.tanh %168 : vector<8x256xf32>
    %cst_66 = arith.constant 1.000000e+00 : f32
    %170 = vector.broadcast %cst_66 : f32 to vector<8x256xf32>
    %171 = arith.addf %169, %170 : vector<8x256xf32>
    %cst_67 = arith.constant 5.000000e-01 : f32
    %172 = vector.broadcast %cst_67 : f32 to vector<8x256xf32>
    %173 = arith.mulf %172, %171 : vector<8x256xf32>
    %174 = vector.extract_strided_slice %165 {offsets = [0, 256], sizes = [8, 256], strides = [1, 1]} : vector<8x1024xf32> to vector<8x256xf32>
    %cst_68 = arith.constant 5.000000e-01 : f32
    %175 = vector.broadcast %cst_68 : f32 to vector<8x256xf32>
    %176 = arith.mulf %175, %174 : vector<8x256xf32>
    %177 = math.tanh %176 : vector<8x256xf32>
    %cst_69 = arith.constant 1.000000e+00 : f32
    %178 = vector.broadcast %cst_69 : f32 to vector<8x256xf32>
    %179 = arith.addf %177, %178 : vector<8x256xf32>
    %cst_70 = arith.constant 5.000000e-01 : f32
    %180 = vector.broadcast %cst_70 : f32 to vector<8x256xf32>
    %181 = arith.mulf %180, %179 : vector<8x256xf32>
    %182 = vector.extract_strided_slice %165 {offsets = [0, 512], sizes = [8, 256], strides = [1, 1]} : vector<8x1024xf32> to vector<8x256xf32>
    %183 = math.tanh %182 : vector<8x256xf32>
    %184 = vector.extract_strided_slice %165 {offsets = [0, 768], sizes = [8, 256], strides = [1, 1]} : vector<8x1024xf32> to vector<8x256xf32>
    %cst_71 = arith.constant 5.000000e-01 : f32
    %185 = vector.broadcast %cst_71 : f32 to vector<8x256xf32>
    %186 = arith.mulf %185, %184 : vector<8x256xf32>
    %187 = math.tanh %186 : vector<8x256xf32>
    %cst_72 = arith.constant 1.000000e+00 : f32
    %188 = vector.broadcast %cst_72 : f32 to vector<8x256xf32>
    %189 = arith.addf %187, %188 : vector<8x256xf32>
    %cst_73 = arith.constant 5.000000e-01 : f32
    %190 = vector.broadcast %cst_73 : f32 to vector<8x256xf32>
    %191 = arith.mulf %190, %189 : vector<8x256xf32>
    %192 = arith.mulf %181, %157 : vector<8x256xf32>
    %193 = arith.mulf %173, %183 : vector<8x256xf32>
    %194 = arith.addf %192, %193 : vector<8x256xf32>
    %195 = math.tanh %194 : vector<8x256xf32>
    %196 = arith.mulf %191, %195 : vector<8x256xf32>
    %c5_i32 = arith.constant 5 : i32
    %197 = arith.index_cast %c5_i32 : i32 to index
    %c0_74 = arith.constant 0 : index
    %c0_75 = arith.constant 0 : index
    %198 = vector.load %arg7[%197, %c0_74, %c0_75] : memref<8x8x1024xf32, #tpu.memory_space<vmem>>, vector<1x8x1024xf32>
    %199 = vector.shape_cast %198 : vector<1x8x1024xf32> to vector<8x1024xf32>
    %200 = arith.truncf %196 : vector<8x256xf32> to vector<8x256xbf16>
    %cst_76 = arith.constant dense<0.000000e+00> : vector<8x1024xf32>
    %201 = tpu.matmul %200, %9, %cst_76 {dimension_numbers = #tpu.dot_dimension_numbers<[1], [0], [0], [1], [0, 0, 1, 1], [], []>} : vector<8x256xbf16>, vector<256x1024xbf16>, vector<8x1024xf32> -> vector<8x1024xf32>
    %202 = arith.addf %199, %201 : vector<8x1024xf32>
    %203 = vector.extract_strided_slice %202 {offsets = [0, 0], sizes = [8, 256], strides = [1, 1]} : vector<8x1024xf32> to vector<8x256xf32>
    %cst_77 = arith.constant 5.000000e-01 : f32
    %204 = vector.broadcast %cst_77 : f32 to vector<8x256xf32>
    %205 = arith.mulf %204, %203 : vector<8x256xf32>
    %206 = math.tanh %205 : vector<8x256xf32>
    %cst_78 = arith.constant 1.000000e+00 : f32
    %207 = vector.broadcast %cst_78 : f32 to vector<8x256xf32>
    %208 = arith.addf %206, %207 : vector<8x256xf32>
    %cst_79 = arith.constant 5.000000e-01 : f32
    %209 = vector.broadcast %cst_79 : f32 to vector<8x256xf32>
    %210 = arith.mulf %209, %208 : vector<8x256xf32>
    %211 = vector.extract_strided_slice %202 {offsets = [0, 256], sizes = [8, 256], strides = [1, 1]} : vector<8x1024xf32> to vector<8x256xf32>
    %cst_80 = arith.constant 5.000000e-01 : f32
    %212 = vector.broadcast %cst_80 : f32 to vector<8x256xf32>
    %213 = arith.mulf %212, %211 : vector<8x256xf32>
    %214 = math.tanh %213 : vector<8x256xf32>
    %cst_81 = arith.constant 1.000000e+00 : f32
    %215 = vector.broadcast %cst_81 : f32 to vector<8x256xf32>
    %216 = arith.addf %214, %215 : vector<8x256xf32>
    %cst_82 = arith.constant 5.000000e-01 : f32
    %217 = vector.broadcast %cst_82 : f32 to vector<8x256xf32>
    %218 = arith.mulf %217, %216 : vector<8x256xf32>
    %219 = vector.extract_strided_slice %202 {offsets = [0, 512], sizes = [8, 256], strides = [1, 1]} : vector<8x1024xf32> to vector<8x256xf32>
    %220 = math.tanh %219 : vector<8x256xf32>
    %221 = vector.extract_strided_slice %202 {offsets = [0, 768], sizes = [8, 256], strides = [1, 1]} : vector<8x1024xf32> to vector<8x256xf32>
    %cst_83 = arith.constant 5.000000e-01 : f32
    %222 = vector.broadcast %cst_83 : f32 to vector<8x256xf32>
    %223 = arith.mulf %222, %221 : vector<8x256xf32>
    %224 = math.tanh %223 : vector<8x256xf32>
    %cst_84 = arith.constant 1.000000e+00 : f32
    %225 = vector.broadcast %cst_84 : f32 to vector<8x256xf32>
    %226 = arith.addf %224, %225 : vector<8x256xf32>
    %cst_85 = arith.constant 5.000000e-01 : f32
    %227 = vector.broadcast %cst_85 : f32 to vector<8x256xf32>
    %228 = arith.mulf %227, %226 : vector<8x256xf32>
    %229 = arith.mulf %218, %194 : vector<8x256xf32>
    %230 = arith.mulf %210, %220 : vector<8x256xf32>
    %231 = arith.addf %229, %230 : vector<8x256xf32>
    %232 = math.tanh %231 : vector<8x256xf32>
    %233 = arith.mulf %228, %232 : vector<8x256xf32>
    %c6_i32 = arith.constant 6 : i32
    %234 = arith.index_cast %c6_i32 : i32 to index
    %c0_86 = arith.constant 0 : index
    %c0_87 = arith.constant 0 : index
    %235 = vector.load %arg7[%234, %c0_86, %c0_87] : memref<8x8x1024xf32, #tpu.memory_space<vmem>>, vector<1x8x1024xf32>
    %236 = vector.shape_cast %235 : vector<1x8x1024xf32> to vector<8x1024xf32>
    %237 = arith.truncf %233 : vector<8x256xf32> to vector<8x256xbf16>
    %cst_88 = arith.constant dense<0.000000e+00> : vector<8x1024xf32>
    %238 = tpu.matmul %237, %9, %cst_88 {dimension_numbers = #tpu.dot_dimension_numbers<[1], [0], [0], [1], [0, 0, 1, 1], [], []>} : vector<8x256xbf16>, vector<256x1024xbf16>, vector<8x1024xf32> -> vector<8x1024xf32>
    %239 = arith.addf %236, %238 : vector<8x1024xf32>
    %240 = vector.extract_strided_slice %239 {offsets = [0, 0], sizes = [8, 256], strides = [1, 1]} : vector<8x1024xf32> to vector<8x256xf32>
    %cst_89 = arith.constant 5.000000e-01 : f32
    %241 = vector.broadcast %cst_89 : f32 to vector<8x256xf32>
    %242 = arith.mulf %241, %240 : vector<8x256xf32>
    %243 = math.tanh %242 : vector<8x256xf32>
    %cst_90 = arith.constant 1.000000e+00 : f32
    %244 = vector.broadcast %cst_90 : f32 to vector<8x256xf32>
    %245 = arith.addf %243, %244 : vector<8x256xf32>
    %cst_91 = arith.constant 5.000000e-01 : f32
    %246 = vector.broadcast %cst_91 : f32 to vector<8x256xf32>
    %247 = arith.mulf %246, %245 : vector<8x256xf32>
    %248 = vector.extract_strided_slice %239 {offsets = [0, 256], sizes = [8, 256], strides = [1, 1]} : vector<8x1024xf32> to vector<8x256xf32>
    %cst_92 = arith.constant 5.000000e-01 : f32
    %249 = vector.broadcast %cst_92 : f32 to vector<8x256xf32>
    %250 = arith.mulf %249, %248 : vector<8x256xf32>
    %251 = math.tanh %250 : vector<8x256xf32>
    %cst_93 = arith.constant 1.000000e+00 : f32
    %252 = vector.broadcast %cst_93 : f32 to vector<8x256xf32>
    %253 = arith.addf %251, %252 : vector<8x256xf32>
    %cst_94 = arith.constant 5.000000e-01 : f32
    %254 = vector.broadcast %cst_94 : f32 to vector<8x256xf32>
    %255 = arith.mulf %254, %253 : vector<8x256xf32>
    %256 = vector.extract_strided_slice %239 {offsets = [0, 512], sizes = [8, 256], strides = [1, 1]} : vector<8x1024xf32> to vector<8x256xf32>
    %257 = math.tanh %256 : vector<8x256xf32>
    %258 = vector.extract_strided_slice %239 {offsets = [0, 768], sizes = [8, 256], strides = [1, 1]} : vector<8x1024xf32> to vector<8x256xf32>
    %cst_95 = arith.constant 5.000000e-01 : f32
    %259 = vector.broadcast %cst_95 : f32 to vector<8x256xf32>
    %260 = arith.mulf %259, %258 : vector<8x256xf32>
    %261 = math.tanh %260 : vector<8x256xf32>
    %cst_96 = arith.constant 1.000000e+00 : f32
    %262 = vector.broadcast %cst_96 : f32 to vector<8x256xf32>
    %263 = arith.addf %261, %262 : vector<8x256xf32>
    %cst_97 = arith.constant 5.000000e-01 : f32
    %264 = vector.broadcast %cst_97 : f32 to vector<8x256xf32>
    %265 = arith.mulf %264, %263 : vector<8x256xf32>
    %266 = arith.mulf %255, %231 : vector<8x256xf32>
    %267 = arith.mulf %247, %257 : vector<8x256xf32>
    %268 = arith.addf %266, %267 : vector<8x256xf32>
    %269 = math.tanh %268 : vector<8x256xf32>
    %270 = arith.mulf %265, %269 : vector<8x256xf32>
    %c7_i32 = arith.constant 7 : i32
    %271 = arith.index_cast %c7_i32 : i32 to index
    %c0_98 = arith.constant 0 : index
    %c0_99 = arith.constant 0 : index
    %272 = vector.load %arg7[%271, %c0_98, %c0_99] : memref<8x8x1024xf32, #tpu.memory_space<vmem>>, vector<1x8x1024xf32>
    %273 = vector.shape_cast %272 : vector<1x8x1024xf32> to vector<8x1024xf32>
    %274 = arith.truncf %270 : vector<8x256xf32> to vector<8x256xbf16>
    %cst_100 = arith.constant dense<0.000000e+00> : vector<8x1024xf32>
    %275 = tpu.matmul %274, %9, %cst_100 {dimension_numbers = #tpu.dot_dimension_numbers<[1], [0], [0], [1], [0, 0, 1, 1], [], []>} : vector<8x256xbf16>, vector<256x1024xbf16>, vector<8x1024xf32> -> vector<8x1024xf32>
    %276 = arith.addf %273, %275 : vector<8x1024xf32>
    %277 = vector.extract_strided_slice %276 {offsets = [0, 0], sizes = [8, 256], strides = [1, 1]} : vector<8x1024xf32> to vector<8x256xf32>
    %cst_101 = arith.constant 5.000000e-01 : f32
    %278 = vector.broadcast %cst_101 : f32 to vector<8x256xf32>
    %279 = arith.mulf %278, %277 : vector<8x256xf32>
    %280 = math.tanh %279 : vector<8x256xf32>
    %cst_102 = arith.constant 1.000000e+00 : f32
    %281 = vector.broadcast %cst_102 : f32 to vector<8x256xf32>
    %282 = arith.addf %280, %281 : vector<8x256xf32>
    %cst_103 = arith.constant 5.000000e-01 : f32
    %283 = vector.broadcast %cst_103 : f32 to vector<8x256xf32>
    %284 = arith.mulf %283, %282 : vector<8x256xf32>
    %285 = vector.extract_strided_slice %276 {offsets = [0, 256], sizes = [8, 256], strides = [1, 1]} : vector<8x1024xf32> to vector<8x256xf32>
    %cst_104 = arith.constant 5.000000e-01 : f32
    %286 = vector.broadcast %cst_104 : f32 to vector<8x256xf32>
    %287 = arith.mulf %286, %285 : vector<8x256xf32>
    %288 = math.tanh %287 : vector<8x256xf32>
    %cst_105 = arith.constant 1.000000e+00 : f32
    %289 = vector.broadcast %cst_105 : f32 to vector<8x256xf32>
    %290 = arith.addf %288, %289 : vector<8x256xf32>
    %cst_106 = arith.constant 5.000000e-01 : f32
    %291 = vector.broadcast %cst_106 : f32 to vector<8x256xf32>
    %292 = arith.mulf %291, %290 : vector<8x256xf32>
    %293 = vector.extract_strided_slice %276 {offsets = [0, 512], sizes = [8, 256], strides = [1, 1]} : vector<8x1024xf32> to vector<8x256xf32>
    %294 = math.tanh %293 : vector<8x256xf32>
    %295 = vector.extract_strided_slice %276 {offsets = [0, 768], sizes = [8, 256], strides = [1, 1]} : vector<8x1024xf32> to vector<8x256xf32>
    %cst_107 = arith.constant 5.000000e-01 : f32
    %296 = vector.broadcast %cst_107 : f32 to vector<8x256xf32>
    %297 = arith.mulf %296, %295 : vector<8x256xf32>
    %298 = math.tanh %297 : vector<8x256xf32>
    %cst_108 = arith.constant 1.000000e+00 : f32
    %299 = vector.broadcast %cst_108 : f32 to vector<8x256xf32>
    %300 = arith.addf %298, %299 : vector<8x256xf32>
    %cst_109 = arith.constant 5.000000e-01 : f32
    %301 = vector.broadcast %cst_109 : f32 to vector<8x256xf32>
    %302 = arith.mulf %301, %300 : vector<8x256xf32>
    %303 = arith.mulf %292, %268 : vector<8x256xf32>
    %304 = arith.mulf %284, %294 : vector<8x256xf32>
    %305 = arith.addf %303, %304 : vector<8x256xf32>
    %306 = math.tanh %305 : vector<8x256xf32>
    %307 = arith.mulf %302, %306 : vector<8x256xf32>
    %c8_i32 = arith.constant 8 : i32
    %c0_110 = arith.constant 0 : index
    %c0_111 = arith.constant 0 : index
    %308 = vector.load %arg4[%c0_110, %c0_111] : memref<256x128xf32, #tpu.memory_space<vmem>>, vector<256x128xf32>
    %cst_112 = arith.constant dense<0.000000e+00> : vector<8x128xf32>
    %309 = tpu.matmul %307, %308, %cst_112 {dimension_numbers = #tpu.dot_dimension_numbers<[1], [0], [0], [1], [0, 0, 1, 1], [], []>} : vector<8x256xf32>, vector<256x128xf32>, vector<8x128xf32> -> vector<8x128xf32>
    %c0_113 = arith.constant 0 : index
    %c0_114 = arith.constant 0 : index
    %310 = vector.load %arg5[%c0_113, %c0_114] : memref<1x128xf32, #tpu.memory_space<vmem>>, vector<1x128xf32>
    %311 = vector.broadcast %310 : vector<1x128xf32> to vector<8x128xf32>
    %312 = arith.addf %309, %311 : vector<8x128xf32>
    %c0_115 = arith.constant 0 : index
    %c0_116 = arith.constant 0 : index
    %313 = vector.load %arg6[%c0_115, %c0_116] : memref<8x128xf32, #tpu.memory_space<vmem>>, vector<8x128xf32>
    tpu.vector_store %arg6[%c0_115, %c0_116], %312 {strides = array<i32>} : memref<8x128xf32, #tpu.memory_space<vmem>>, vector<8x128xf32>,
    return
  }
}

</mosaic_0001>

<llo_original>
// kernel: char_model_forward.1
$region0: #{char_model_forward.1}
  #allocation0 [shape = 'u32[]', space=smem, size = 0x4, offset = 0x4, fixed_abs, tag = 'smem constant byte address 0x4 - core index']
  #allocation1 [shape = 'u32[144,128]{1,0:T(1,128)}', space=vmem, size = 0x12000, scoped, tag = 'internal scratch']
  #allocation2 [shape = 'f32[8,8,1024]{2,1,0:T(8,128)}', space=vmem, size = 0x40000, scoped, tag = 'scratch operand']
  %s0 = inlined_call_operand.vmem [shape: f32[8,8,1], index: 0, kind: input, shape index: {}]
  %s1 = inlined_call_operand.vmem [shape: f32[1,1,1024], index: 1, kind: input, shape index: {}]
  %s2 = inlined_call_operand.vmem [shape: f32[1,1,1024], index: 2, kind: input, shape index: {}]
  %s3 = inlined_call_operand.hbm [shape: bf16[256,1024], index: 3, kind: input, shape index: {}]
  %s4 = inlined_call_operand.hbm [shape: f32[256,128], index: 4, kind: input, shape index: {}]
  %s5 = inlined_call_operand.vmem [shape: f32[1,128], index: 5, kind: input, shape index: {}]
  %s6 = inlined_call_operand.vmem [shape: f32[8,128], index: 6, kind: output, shape index: {}]
  %s7 = sld [smem:[#allocation0]]
  $region42: #{char_model_forward.1} parent=0
    _
  %s9 = ssub.s32 1, %s7
  %s10 = scalar_select 0, %s9, %s7
  $region1: #{char_model_forward.1} parent=0
    #allocation3 [shape = 'u8[524288]{0}', space=vmem, size = 0x80000, scoped, tag = 'input window, operand 3, single buffered']
    #allocation4 [shape = 's32[1]{0}', space=sflag, size = 0x4, scoped, tag = 'scoped memory for char_model_forward.1']
    #allocation5 [shape = 'u8[131072]{0}', space=vmem, size = 0x20000, scoped, tag = 'input window, operand 4, single buffered']
    #allocation6 [shape = 's32[1]{0}', space=sflag, size = 0x4, scoped, tag = 'scoped memory for char_model_forward.1']
    %11 = vsyncpa [#allocation4], 0
    %12 = vsyncpa [#allocation6], 0
    // Predicated region
    $region2: #{char_model_forward.1} parent=1 // pred_check
      _
    $region3: #{char_model_forward.1} parent=1 // pred_check_branch
      %14 = sbr.rel (0) target = $region5
    $region4: #{char_model_forward.1} parent=1 // pred_region
      _
    $region5: #{char_model_forward.1} parent=1 // pred_fallthru
      _
    // Predicated region
    $region6: #{char_model_forward.1} parent=1 // pred_check
      _
    $region7: #{char_model_forward.1} parent=1 // pred_check_branch
      %16 = sbr.rel (0) target = $region9
    $region8: #{char_model_forward.1} parent=1 // pred_region
      _
    $region9: #{char_model_forward.1} parent=1 // pred_fallthru
      _
    // Predicated region
    $region10: #{char_model_forward.1} parent=1 // pred_check
      _
    $region11: #{char_model_forward.1} parent=1 // pred_check_branch
      %18 = sbr.rel (0) target = $region13
    $region12: #{char_model_forward.1} parent=1 // pred_region
      _
    $region13: #{char_model_forward.1} parent=1 // pred_fallthru
      _
    // Predicated region
    $region14: #{char_model_forward.1} parent=1 // pred_check
      _
    $region15: #{char_model_forward.1} parent=1 // pred_check_branch
      %20 = sbr.rel (0) target = $region17
    $region16: #{char_model_forward.1} parent=1 // pred_region
      %s22 = ssub.s32 16384, 16384
      %23 = vsyncadd [#allocation4], %s22
      %s24 = sshll.u32 [#allocation3], 4
      %s25 = int_to_ptr.vmem [resolvable:$true] %s24
      %30 = dma.hbm_to_vmem [thread:$0]  %s3, 16384, %s25, [#allocation4], 512, 512, 32
    $region17: #{char_model_forward.1} parent=1 // pred_fallthru
      _
    // Predicated region
    $region18: #{char_model_forward.1} parent=1 // pred_check
      _
    $region19: #{char_model_forward.1} parent=1 // pred_check_branch
      %32 = sbr.rel (0) target = $region21
    $region20: #{char_model_forward.1} parent=1 // pred_region
      %s34 = ssub.s32 4096, 4096
      %35 = vsyncadd [#allocation6], %s34
      %s36 = sshll.u32 [#allocation5], 4
      %s37 = int_to_ptr.vmem [resolvable:$true] %s36
      %42 = dma.hbm_to_vmem [thread:$0]  %s4, 4096, %s37, [#allocation6], 128, 128, 8
    $region21: #{char_model_forward.1} parent=1 // pred_fallthru
      _
    // Predicated region
    $region22: #{char_model_forward.1} parent=1 // pred_check
      _
    $region23: #{char_model_forward.1} parent=1 // pred_check_branch
      %44 = sbr.rel (0) target = $region25
    $region24: #{char_model_forward.1} parent=1 // pred_region
      _
    $region25: #{char_model_forward.1} parent=1 // pred_fallthru
      _
    // Predicated region
    $region26: #{char_model_forward.1} parent=1 // pred_check
      _
    $region27: #{char_model_forward.1} parent=1 // pred_check_branch
      %46 = sbr.rel (0) target = $region29
    $region28: #{char_model_forward.1} parent=1 // pred_region
      %47 = dma.done [#allocation4], 16384
    $region29: #{char_model_forward.1} parent=1 // pred_fallthru
      _
    // Predicated region
    $region30: #{char_model_forward.1} parent=1 // pred_check
      _
    $region31: #{char_model_forward.1} parent=1 // pred_check_branch
      %49 = sbr.rel (0) target = $region33
    $region32: #{char_model_forward.1} parent=1 // pred_region
      %50 = dma.done [#allocation6], 4096
    $region33: #{char_model_forward.1} parent=1 // pred_fallthru
      _
    %v52 = vld [vmem:[%s0] sm:$0xff]
    %v53 = vld [vmem:[%s0 + $0x8] sm:$0xff]
    %v54 = vld [vmem:[%s0 + $0x10] sm:$0xff]
    %v55 = vld [vmem:[%s0 + $0x18] sm:$0xff]
    %v56 = vld [vmem:[%s0 + $0x20] sm:$0xff]
    %v57 = vld [vmem:[%s0 + $0x28] sm:$0xff]
    %v58 = vld [vmem:[%s0 + $0x30] sm:$0xff]
    %v59 = vld [vmem:[%s0 + $0x38] sm:$0xff]
    %v60 = vld [vmem:[%s1] sm:$0xff]
    %62 = vset.pattern.permute.xlu0 0
    %63 = vperm.xlu0 %62, %v52
    %v64 = vpop.permute.xlu0 %63
    %67 = vset.pattern.permute.xlu0 0
    %68 = vperm.xlu0 %67, %v53
    %v69 = vpop.permute.xlu0 %68
    %72 = vset.pattern.permute.xlu0 0
    %73 = vperm.xlu0 %72, %v54
    %v74 = vpop.permute.xlu0 %73
    %77 = vset.pattern.permute.xlu0 0
    %78 = vperm.xlu0 %77, %v55
    %v79 = vpop.permute.xlu0 %78
    %82 = vset.pattern.permute.xlu0 0
    %83 = vperm.xlu0 %82, %v56
    %v84 = vpop.permute.xlu0 %83
    %87 = vset.pattern.permute.xlu0 0
    %88 = vperm.xlu0 %87, %v57
    %v89 = vpop.permute.xlu0 %88
    %92 = vset.pattern.permute.xlu0 0
    %93 = vperm.xlu0 %92, %v58
    %v94 = vpop.permute.xlu0 %93
    %97 = vset.pattern.permute.xlu0 0
    %98 = vperm.xlu0 %97, %v59
    %v99 = vpop.permute.xlu0 %98
    %v102 = vlaneseq
    %v103 = vshrl.u32 %v102, 7
    %v104 = vsub.s32 0, %v103
    %v105 = vrot.slane %v60, %v104
    %v106 = vlaneseq
    %v107 = vshrl.u32 %v106, 7
    %v108 = vsub.s32 1, %v107
    %v109 = vrot.slane %v60, %v108
    %v110 = vlaneseq
    %v111 = vshrl.u32 %v110, 7
    %v112 = vsub.s32 2, %v111
    %v113 = vrot.slane %v60, %v112
    %v114 = vlaneseq
    %v115 = vshrl.u32 %v114, 7
    %v116 = vsub.s32 3, %v115
    %v117 = vrot.slane %v60, %v116
    %v118 = vlaneseq
    %v119 = vshrl.u32 %v118, 7
    %v120 = vsub.s32 4, %v119
    %v121 = vrot.slane %v60, %v120
    %v122 = vlaneseq
    %v123 = vshrl.u32 %v122, 7
    %v124 = vsub.s32 5, %v123
    %v125 = vrot.slane %v60, %v124
    %v126 = vlaneseq
    %v127 = vshrl.u32 %v126, 7
    %v128 = vsub.s32 6, %v127
    %v129 = vrot.slane %v60, %v128
    %v130 = vlaneseq
    %v131 = vshrl.u32 %v130, 7
    %v132 = vsub.s32 7, %v131
    %v133 = vrot.slane %v60, %v132
    %v142 = vmul.f32 %v64, %v105
    %v143 = vmul.f32 %v64, %v109
    %v144 = vmul.f32 %v64, %v113
    %v145 = vmul.f32 %v64, %v117
    %v146 = vmul.f32 %v64, %v121
    %v147 = vmul.f32 %v64, %v125
    %v148 = vmul.f32 %v64, %v129
    %v149 = vmul.f32 %v64, %v133
    %v150 = vmul.f32 %v69, %v105
    %v151 = vmul.f32 %v69, %v109
    %v152 = vmul.f32 %v69, %v113
    %v153 = vmul.f32 %v69, %v117
    %v154 = vmul.f32 %v69, %v121
    %v155 = vmul.f32 %v69, %v125
    %v156 = vmul.f32 %v69, %v129
    %v157 = vmul.f32 %v69, %v133
    %v158 = vmul.f32 %v74, %v105
    %v159 = vmul.f32 %v74, %v109
    %v160 = vmul.f32 %v74, %v113
    %v161 = vmul.f32 %v74, %v117
    %v162 = vmul.f32 %v74, %v121
    %v163 = vmul.f32 %v74, %v125
    %v164 = vmul.f32 %v74, %v129
    %v165 = vmul.f32 %v74, %v133
    %v166 = vmul.f32 %v79, %v105
    %v167 = vmul.f32 %v79, %v109
    %v168 = vmul.f32 %v79, %v113
    %v169 = vmul.f32 %v79, %v117
    %v170 = vmul.f32 %v79, %v121
    %v171 = vmul.f32 %v79, %v125
    %v172 = vmul.f32 %v79, %v129
    %v173 = vmul.f32 %v79, %v133
    %v174 = vmul.f32 %v84, %v105
    %v175 = vmul.f32 %v84, %v109
    %v176 = vmul.f32 %v84, %v113
    %v177 = vmul.f32 %v84, %v117
    %v178 = vmul.f32 %v84, %v121
    %v179 = vmul.f32 %v84, %v125
    %v180 = vmul.f32 %v84, %v129
    %v181 = vmul.f32 %v84, %v133
    %v182 = vmul.f32 %v89, %v105
    %v183 = vmul.f32 %v89, %v109
    %v184 = vmul.f32 %v89, %v113
    %v185 = vmul.f32 %v89, %v117
    %v186 = vmul.f32 %v89, %v121
    %v187 = vmul.f32 %v89, %v125
    %v188 = vmul.f32 %v89, %v129
    %v189 = vmul.f32 %v89, %v133
    %v190 = vmul.f32 %v94, %v105
    %v191 = vmul.f32 %v94, %v109
    %v192 = vmul.f32 %v94, %v113
    %v193 = vmul.f32 %v94, %v117
    %v194 = vmul.f32 %v94, %v121
    %v195 = vmul.f32 %v94, %v125
    %v196 = vmul.f32 %v94, %v129
    %v197 = vmul.f32 %v94, %v133
    %v198 = vmul.f32 %v99, %v105
    %v199 = vmul.f32 %v99, %v109
    %v200 = vmul.f32 %v99, %v113
    %v201 = vmul.f32 %v99, %v117
    %v202 = vmul.f32 %v99, %v121
    %v203 = vmul.f32 %v99, %v125
    %v204 = vmul.f32 %v99, %v129
    %v205 = vmul.f32 %v99, %v133
    %v206 = vld [vmem:[%s2] sm:$0xff]
    %v208 = vlaneseq
    %v209 = vshrl.u32 %v208, 7
    %v210 = vsub.s32 0, %v209
    %v211 = vrot.slane %v206, %v210
    %v212 = vlaneseq
    %v213 = vshrl.u32 %v212, 7
    %v214 = vsub.s32 1, %v213
    %v215 = vrot.slane %v206, %v214
    %v216 = vlaneseq
    %v217 = vshrl.u32 %v216, 7
    %v218 = vsub.s32 2, %v217
    %v219 = vrot.slane %v206, %v218
    %v220 = vlaneseq
    %v221 = vshrl.u32 %v220, 7
    %v222 = vsub.s32 3, %v221
    %v223 = vrot.slane %v206, %v222
    %v224 = vlaneseq
    %v225 = vshrl.u32 %v224, 7
    %v226 = vsub.s32 4, %v225
    %v227 = vrot.slane %v206, %v226
    %v228 = vlaneseq
    %v229 = vshrl.u32 %v228, 7
    %v230 = vsub.s32 5, %v229
    %v231 = vrot.slane %v206, %v230
    %v232 = vlaneseq
    %v233 = vshrl.u32 %v232, 7
    %v234 = vsub.s32 6, %v233
    %v235 = vrot.slane %v206, %v234
    %v236 = vlaneseq
    %v237 = vshrl.u32 %v236, 7
    %v238 = vsub.s32 7, %v237
    %v239 = vrot.slane %v206, %v238
    %v248 = vadd.f32 %v142, %v211
    %v249 = vadd.f32 %v143, %v215
    %v250 = vadd.f32 %v144, %v219
    %v251 = vadd.f32 %v145, %v223
    %v252 = vadd.f32 %v146, %v227
    %v253 = vadd.f32 %v147, %v231
    %v254 = vadd.f32 %v148, %v235
    %v255 = vadd.f32 %v149, %v239
    %v256 = vadd.f32 %v150, %v211
    %v257 = vadd.f32 %v151, %v215
    %v258 = vadd.f32 %v152, %v219
    %v259 = vadd.f32 %v153, %v223
    %v260 = vadd.f32 %v154, %v227
    %v261 = vadd.f32 %v155, %v231
    %v262 = vadd.f32 %v156, %v235
    %v263 = vadd.f32 %v157, %v239
    %v264 = vadd.f32 %v158, %v211
    %v265 = vadd.f32 %v159, %v215
    %v266 = vadd.f32 %v160, %v219
    %v267 = vadd.f32 %v161, %v223
    %v268 = vadd.f32 %v162, %v227
    %v269 = vadd.f32 %v163, %v231
    %v270 = vadd.f32 %v164, %v235
    %v271 = vadd.f32 %v165, %v239
    %v272 = vadd.f32 %v166, %v211
    %v273 = vadd.f32 %v167, %v215
    %v274 = vadd.f32 %v168, %v219
    %v275 = vadd.f32 %v169, %v223
    %v276 = vadd.f32 %v170, %v227
    %v277 = vadd.f32 %v171, %v231
    %v278 = vadd.f32 %v172, %v235
    %v279 = vadd.f32 %v173, %v239
    %v280 = vadd.f32 %v174, %v211
    %v281 = vadd.f32 %v175, %v215
    %v282 = vadd.f32 %v176, %v219
    %v283 = vadd.f32 %v177, %v223
    %v284 = vadd.f32 %v178, %v227
    %v285 = vadd.f32 %v179, %v231
    %v286 = vadd.f32 %v180, %v235
    %v287 = vadd.f32 %v181, %v239
    %v288 = vadd.f32 %v182, %v211
    %v289 = vadd.f32 %v183, %v215
    %v290 = vadd.f32 %v184, %v219
    %v291 = vadd.f32 %v185, %v223
    %v292 = vadd.f32 %v186, %v227
    %v293 = vadd.f32 %v187, %v231
    %v294 = vadd.f32 %v188, %v235
    %v295 = vadd.f32 %v189, %v239
    %v296 = vadd.f32 %v190, %v211
    %v297 = vadd.f32 %v191, %v215
    %v298 = vadd.f32 %v192, %v219
    %v299 = vadd.f32 %v193, %v223
    %v300 = vadd.f32 %v194, %v227
    %v301 = vadd.f32 %v195, %v231
    %v302 = vadd.f32 %v196, %v235
    %v303 = vadd.f32 %v197, %v239
    %v304 = vadd.f32 %v198, %v211
    %v305 = vadd.f32 %v199, %v215
    %v306 = vadd.f32 %v200, %v219
    %v307 = vadd.f32 %v201, %v223
    %v308 = vadd.f32 %v202, %v227
    %v309 = vadd.f32 %v203, %v231
    %v310 = vadd.f32 %v204, %v235
    %v311 = vadd.f32 %v205, %v239
    %312 = vst [vmem:[#allocation2] sm:$0xff] %v248
    %313 = vst [vmem:[#allocation2 + $0x8] sm:$0xff] %v249
    %314 = vst [vmem:[#allocation2 + $0x10] sm:$0xff] %v250
    %315 = vst [vmem:[#allocation2 + $0x18] sm:$0xff] %v251
    %316 = vst [vmem:[#allocation2 + $0x20] sm:$0xff] %v252
    %317 = vst [vmem:[#allocation2 + $0x28] sm:$0xff] %v253
    %318 = vst [vmem:[#allocation2 + $0x30] sm:$0xff] %v254
    %319 = vst [vmem:[#allocation2 + $0x38] sm:$0xff] %v255
    %320 = vst [vmem:[#allocation2 + $0x40] sm:$0xff] %v256
    %321 = vst [vmem:[#allocation2 + $0x48] sm:$0xff] %v257
    %322 = vst [vmem:[#allocation2 + $0x50] sm:$0xff] %v258
    %323 = vst [vmem:[#allocation2 + $0x58] sm:$0xff] %v259
    %324 = vst [vmem:[#allocation2 + $0x60] sm:$0xff] %v260
    %325 = vst [vmem:[#allocation2 + $0x68] sm:$0xff] %v261
    %326 = vst [vmem:[#allocation2 + $0x70] sm:$0xff] %v262
    %327 = vst [vmem:[#allocation2 + $0x78] sm:$0xff] %v263
    %328 = vst [vmem:[#allocation2 + $0x80] sm:$0xff] %v264
    %329 = vst [vmem:[#allocation2 + $0x88] sm:$0xff] %v265
    %330 = vst [vmem:[#allocation2 + $0x90] sm:$0xff] %v266
    %331 = vst [vmem:[#allocation2 + $0x98] sm:$0xff] %v267
    %332 = vst [vmem:[#allocation2 + $0xa0] sm:$0xff] %v268
    %333 = vst [vmem:[#allocation2 + $0xa8] sm:$0xff] %v269
    %334 = vst [vmem:[#allocation2 + $0xb0] sm:$0xff] %v270
    %335 = vst [vmem:[#allocation2 + $0xb8] sm:$0xff] %v271
    %336 = vst [vmem:[#allocation2 + $0xc0] sm:$0xff] %v272
    %337 = vst [vmem:[#allocation2 + $0xc8] sm:$0xff] %v273
    %338 = vst [vmem:[#allocation2 + $0xd0] sm:$0xff] %v274
    %339 = vst [vmem:[#allocation2 + $0xd8] sm:$0xff] %v275
    %340 = vst [vmem:[#allocation2 + $0xe0] sm:$0xff] %v276
    %341 = vst [vmem:[#allocation2 + $0xe8] sm:$0xff] %v277
    %342 = vst [vmem:[#allocation2 + $0xf0] sm:$0xff] %v278
    %343 = vst [vmem:[#allocation2 + $0xf8] sm:$0xff] %v279
    %344 = vst [vmem:[#allocation2 + $0x100] sm:$0xff] %v280
    %345 = vst [vmem:[#allocation2 + $0x108] sm:$0xff] %v281
    %346 = vst [vmem:[#allocation2 + $0x110] sm:$0xff] %v282
    %347 = vst [vmem:[#allocation2 + $0x118] sm:$0xff] %v283
    %348 = vst [vmem:[#allocation2 + $0x120] sm:$0xff] %v284
    %349 = vst [vmem:[#allocation2 + $0x128] sm:$0xff] %v285
    %350 = vst [vmem:[#allocation2 + $0x130] sm:$0xff] %v286
    %351 = vst [vmem:[#allocation2 + $0x138] sm:$0xff] %v287
    %352 = vst [vmem:[#allocation2 + $0x140] sm:$0xff] %v288
    %353 = vst [vmem:[#allocation2 + $0x148] sm:$0xff] %v289
    %354 = vst [vmem:[#allocation2 + $0x150] sm:$0xff] %v290
    %355 = vst [vmem:[#allocation2 + $0x158] sm:$0xff] %v291
    %356 = vst [vmem:[#allocation2 + $0x160] sm:$0xff] %v292
    %357 = vst [vmem:[#allocation2 + $0x168] sm:$0xff] %v293
    %358 = vst [vmem:[#allocation2 + $0x170] sm:$0xff] %v294
    %359 = vst [vmem:[#allocation2 + $0x178] sm:$0xff] %v295
    %360 = vst [vmem:[#allocation2 + $0x180] sm:$0xff] %v296
    %361 = vst [vmem:[#allocation2 + $0x188] sm:$0xff] %v297
    %362 = vst [vmem:[#allocation2 + $0x190] sm:$0xff] %v298
    %363 = vst [vmem:[#allocation2 + $0x198] sm:$0xff] %v299
    %364 = vst [vmem:[#allocation2 + $0x1a0] sm:$0xff] %v300
    %365 = vst [vmem:[#allocation2 + $0x1a8] sm:$0xff] %v301
    %366 = vst [vmem:[#allocation2 + $0x1b0] sm:$0xff] %v302
    %367 = vst [vmem:[#allocation2 + $0x1b8] sm:$0xff] %v303
    %368 = vst [vmem:[#allocation2 + $0x1c0] sm:$0xff] %v304
    %369 = vst [vmem:[#allocation2 + $0x1c8] sm:$0xff] %v305
    %370 = vst [vmem:[#allocation2 + $0x1d0] sm:$0xff] %v306
    %371 = vst [vmem:[#allocation2 + $0x1d8] sm:$0xff] %v307
    %372 = vst [vmem:[#allocation2 + $0x1e0] sm:$0xff] %v308
    %373 = vst [vmem:[#allocation2 + $0x1e8] sm:$0xff] %v309
    %374 = vst [vmem:[#allocation2 + $0x1f0] sm:$0xff] %v310
    %375 = vst [vmem:[#allocation2 + $0x1f8] sm:$0xff] %v311
    %v376 = vld [vmem:[#allocation3] sm:$0xff]
    %v377 = vld [vmem:[#allocation3 + $0x8] sm:$0xff]
    %v378 = vld [vmem:[#allocation3 + $0x10] sm:$0xff]
    %v379 = vld [vmem:[#allocation3 + $0x18] sm:$0xff]
    %v380 = vld [vmem:[#allocation3 + $0x20] sm:$0xff]
    %v381 = vld [vmem:[#allocation3 + $0x28] sm:$0xff]
    %v382 = vld [vmem:[#allocation3 + $0x30] sm:$0xff]
    %v383 = vld [vmem:[#allocation3 + $0x38] sm:$0xff]
    %v384 = vld [vmem:[#allocation3 + $0x40] sm:$0xff]
    %v385 = vld [vmem:[#allocation3 + $0x48] sm:$0xff]
    %v386 = vld [vmem:[#allocation3 + $0x50] sm:$0xff]
    %v387 = vld [vmem:[#allocation3 + $0x58] sm:$0xff]
    %v388 = vld [vmem:[#allocation3 + $0x60] sm:$0xff]
    %v389 = vld [vmem:[#allocation3 + $0x68] sm:$0xff]
    %v390 = vld [vmem:[#allocation3 + $0x70] sm:$0xff]
    %v391 = vld [vmem:[#allocation3 + $0x78] sm:$0xff]
    %v392 = vld [vmem:[#allocation3 + $0x80] sm:$0xff]
    %v393 = vld [vmem:[#allocation3 + $0x88] sm:$0xff]
    %v394 = vld [vmem:[#allocation3 + $0x90] sm:$0xff]
    %v395 = vld [vmem:[#allocation3 + $0x98] sm:$0xff]
    %v396 = vld [vmem:[#allocation3 + $0xa0] sm:$0xff]
    %v397 = vld [vmem:[#allocation3 + $0xa8] sm:$0xff]
    %v398 = vld [vmem:[#allocation3 + $0xb0] sm:$0xff]
    %v399 = vld [vmem:[#allocation3 + $0xb8] sm:$0xff]
    %v400 = vld [vmem:[#allocation3 + $0xc0] sm:$0xff]
    %v401 = vld [vmem:[#allocation3 + $0xc8] sm:$0xff]
    %v402 = vld [vmem:[#allocation3 + $0xd0] sm:$0xff]
    %v403 = vld [vmem:[#allocation3 + $0xd8] sm:$0xff]
    %v404 = vld [vmem:[#allocation3 + $0xe0] sm:$0xff]
    %v405 = vld [vmem:[#allocation3 + $0xe8] sm:$0xff]
    %v406 = vld [vmem:[#allocation3 + $0xf0] sm:$0xff]
    %v407 = vld [vmem:[#allocation3 + $0xf8] sm:$0xff]
    %v408 = vld [vmem:[#allocation3 + $0x100] sm:$0xff]
    %v409 = vld [vmem:[#allocation3 + $0x108] sm:$0xff]
    %v410 = vld [vmem:[#allocation3 + $0x110] sm:$0xff]
    %v411 = vld [vmem:[#allocation3 + $0x118] sm:$0xff]
    %v412 = vld [vmem:[#allocation3 + $0x120] sm:$0xff]
    %v413 = vld [vmem:[#allocation3 + $0x128] sm:$0xff]
    %v414 = vld [vmem:[#allocation3 + $0x130] sm:$0xff]
    %v415 = vld [vmem:[#allocation3 + $0x138] sm:$0xff]
    %v416 = vld [vmem:[#allocation3 + $0x140] sm:$0xff]
    %v417 = vld [vmem:[#allocation3 + $0x148] sm:$0xff]
    %v418 = vld [vmem:[#allocation3 + $0x150] sm:$0xff]
    %v419 = vld [vmem:[#allocation3 + $0x158] sm:$0xff]
    %v420 = vld [vmem:[#allocation3 + $0x160] sm:$0xff]
    %v421 = vld [vmem:[#allocation3 + $0x168] sm:$0xff]
    %v422 = vld [vmem:[#allocation3 + $0x170] sm:$0xff]
    %v423 = vld [vmem:[#allocation3 + $0x178] sm:$0xff]
    %v424 = vld [vmem:[#allocation3 + $0x180] sm:$0xff]
    %v425 = vld [vmem:[#allocation3 + $0x188] sm:$0xff]
    %v426 = vld [vmem:[#allocation3 + $0x190] sm:$0xff]
    %v427 = vld [vmem:[#allocation3 + $0x198] sm:$0xff]
    %v428 = vld [vmem:[#allocation3 + $0x1a0] sm:$0xff]
    %v429 = vld [vmem:[#allocation3 + $0x1a8] sm:$0xff]
    %v430 = vld [vmem:[#allocation3 + $0x1b0] sm:$0xff]
    %v431 = vld [vmem:[#allocation3 + $0x1b8] sm:$0xff]
    %v432 = vld [vmem:[#allocation3 + $0x1c0] sm:$0xff]
    %v433 = vld [vmem:[#allocation3 + $0x1c8] sm:$0xff]
    %v434 = vld [vmem:[#allocation3 + $0x1d0] sm:$0xff]
    %v435 = vld [vmem:[#allocation3 + $0x1d8] sm:$0xff]
    %v436 = vld [vmem:[#allocation3 + $0x1e0] sm:$0xff]
    %v437 = vld [vmem:[#allocation3 + $0x1e8] sm:$0xff]
    %v438 = vld [vmem:[#allocation3 + $0x1f0] sm:$0xff]
    %v439 = vld [vmem:[#allocation3 + $0x1f8] sm:$0xff]
    %v440 = vld [vmem:[#allocation3 + $0x200] sm:$0xff]
    %v441 = vld [vmem:[#allocation3 + $0x208] sm:$0xff]
    %v442 = vld [vmem:[#allocation3 + $0x210] sm:$0xff]
    %v443 = vld [vmem:[#allocation3 + $0x218] sm:$0xff]
    %v444 = vld [vmem:[#allocation3 + $0x220] sm:$0xff]
    %v445 = vld [vmem:[#allocation3 + $0x228] sm:$0xff]
    %v446 = vld [vmem:[#allocation3 + $0x230] sm:$0xff]
    %v447 = vld [vmem:[#allocation3 + $0x238] sm:$0xff]
    %v448 = vld [vmem:[#allocation3 + $0x240] sm:$0xff]
    %v449 = vld [vmem:[#allocation3 + $0x248] sm:$0xff]
    %v450 = vld [vmem:[#allocation3 + $0x250] sm:$0xff]
    %v451 = vld [vmem:[#allocation3 + $0x258] sm:$0xff]
    %v452 = vld [vmem:[#allocation3 + $0x260] sm:$0xff]
    %v453 = vld [vmem:[#allocation3 + $0x268] sm:$0xff]
    %v454 = vld [vmem:[#allocation3 + $0x270] sm:$0xff]
    %v455 = vld [vmem:[#allocation3 + $0x278] sm:$0xff]
    %v456 = vld [vmem:[#allocation3 + $0x280] sm:$0xff]
    %v457 = vld [vmem:[#allocation3 + $0x288] sm:$0xff]
    %v458 = vld [vmem:[#allocation3 + $0x290] sm:$0xff]
    %v459 = vld [vmem:[#allocation3 + $0x298] sm:$0xff]
    %v460 = vld [vmem:[#allocation3 + $0x2a0] sm:$0xff]
    %v461 = vld [vmem:[#allocation3 + $0x2a8] sm:$0xff]
    %v462 = vld [vmem:[#allocation3 + $0x2b0] sm:$0xff]
    %v463 = vld [vmem:[#allocation3 + $0x2b8] sm:$0xff]
    %v464 = vld [vmem:[#allocation3 + $0x2c0] sm:$0xff]
    %v465 = vld [vmem:[#allocation3 + $0x2c8] sm:$0xff]
    %v466 = vld [vmem:[#allocation3 + $0x2d0] sm:$0xff]
    %v467 = vld [vmem:[#allocation3 + $0x2d8] sm:$0xff]
    %v468 = vld [vmem:[#allocation3 + $0x2e0] sm:$0xff]
    %v469 = vld [vmem:[#allocation3 + $0x2e8] sm:$0xff]
    %v470 = vld [vmem:[#allocation3 + $0x2f0] sm:$0xff]
    %v471 = vld [vmem:[#allocation3 + $0x2f8] sm:$0xff]
    %v472 = vld [vmem:[#allocation3 + $0x300] sm:$0xff]
    %v473 = vld [vmem:[#allocation3 + $0x308] sm:$0xff]
    %v474 = vld [vmem:[#allocation3 + $0x310] sm:$0xff]
    %v475 = vld [vmem:[#allocation3 + $0x318] sm:$0xff]
    %v476 = vld [vmem:[#allocation3 + $0x320] sm:$0xff]
    %v477 = vld [vmem:[#allocation3 + $0x328] sm:$0xff]
    %v478 = vld [vmem:[#allocation3 + $0x330] sm:$0xff]
    %v479 = vld [vmem:[#allocation3 + $0x338] sm:$0xff]
    %v480 = vld [vmem:[#allocation3 + $0x340] sm:$0xff]
    %v481 = vld [vmem:[#allocation3 + $0x348] sm:$0xff]
    %v482 = vld [vmem:[#allocation3 + $0x350] sm:$0xff]
    %v483 = vld [vmem:[#allocation3 + $0x358] sm:$0xff]
    %v484 = vld [vmem:[#allocation3 + $0x360] sm:$0xff]
    %v485 = vld [vmem:[#allocation3 + $0x368] sm:$0xff]
    %v486 = vld [vmem:[#allocation3 + $0x370] sm:$0xff]
    %v487 = vld [vmem:[#allocation3 + $0x378] sm:$0xff]
    %v488 = vld [vmem:[#allocation3 + $0x380] sm:$0xff]
    %v489 = vld [vmem:[#allocation3 + $0x388] sm:$0xff]
    %v490 = vld [vmem:[#allocation3 + $0x390] sm:$0xff]
    %v491 = vld [vmem:[#allocation3 + $0x398] sm:$0xff]
    %v492 = vld [vmem:[#allocation3 + $0x3a0] sm:$0xff]
    %v493 = vld [vmem:[#allocation3 + $0x3a8] sm:$0xff]
    %v494 = vld [vmem:[#allocation3 + $0x3b0] sm:$0xff]
    %v495 = vld [vmem:[#allocation3 + $0x3b8] sm:$0xff]
    %v496 = vld [vmem:[#allocation3 + $0x3c0] sm:$0xff]
    %v497 = vld [vmem:[#allocation3 + $0x3c8] sm:$0xff]
    %v498 = vld [vmem:[#allocation3 + $0x3d0] sm:$0xff]
    %v499 = vld [vmem:[#allocation3 + $0x3d8] sm:$0xff]
    %v500 = vld [vmem:[#allocation3 + $0x3e0] sm:$0xff]
    %v501 = vld [vmem:[#allocation3 + $0x3e8] sm:$0xff]
    %v502 = vld [vmem:[#allocation3 + $0x3f0] sm:$0xff]
    %v503 = vld [vmem:[#allocation3 + $0x3f8] sm:$0xff]
    %v504 = vld [vmem:[#allocation2] sm:$0xff]
    %v505 = vld [vmem:[#allocation2 + $0x8] sm:$0xff]
    %v506 = vld [vmem:[#allocation2 + $0x10] sm:$0xff]
    %v507 = vld [vmem:[#allocation2 + $0x18] sm:$0xff]
    %v508 = vld [vmem:[#allocation2 + $0x20] sm:$0xff]
    %v509 = vld [vmem:[#allocation2 + $0x28] sm:$0xff]
    %v510 = vld [vmem:[#allocation2 + $0x30] sm:$0xff]
    %v511 = vld [vmem:[#allocation2 + $0x38] sm:$0xff]
    %v640 = vunpack.c.l.b16 %v376
    %v641 = vunpack.c.h.b16 %v376
    %v642 = vunpack.c.l.b16 %v377
    %v643 = vunpack.c.h.b16 %v377
    %v644 = vunpack.c.l.b16 %v378
    %v645 = vunpack.c.h.b16 %v378
    %v646 = vunpack.c.l.b16 %v379
    %v647 = vunpack.c.h.b16 %v379
    %v648 = vunpack.c.l.b16 %v380
    %v649 = vunpack.c.h.b16 %v380
    %v650 = vunpack.c.l.b16 %v381
    %v651 = vunpack.c.h.b16 %v381
    %v652 = vunpack.c.l.b16 %v382
    %v653 = vunpack.c.h.b16 %v382
    %v654 = vunpack.c.l.b16 %v383
    %v655 = vunpack.c.h.b16 %v383
    %v656 = vunpack.c.l.b16 %v384
    %v657 = vunpack.c.h.b16 %v384
    %v658 = vunpack.c.l.b16 %v385
    %v659 = vunpack.c.h.b16 %v385
    %v660 = vunpack.c.l.b16 %v386
    %v661 = vunpack.c.h.b16 %v386
    %v662 = vunpack.c.l.b16 %v387
    %v663 = vunpack.c.h.b16 %v387
    %v664 = vunpack.c.l.b16 %v388
    %v665 = vunpack.c.h.b16 %v388
    %v666 = vunpack.c.l.b16 %v389
    %v667 = vunpack.c.h.b16 %v389
    %v668 = vunpack.c.l.b16 %v390
    %v669 = vunpack.c.h.b16 %v390
    %v670 = vunpack.c.l.b16 %v391
    %v671 = vunpack.c.h.b16 %v391
    %v672 = vunpack.c.l.b16 %v392
    %v673 = vunpack.c.h.b16 %v392
    %v674 = vunpack.c.l.b16 %v393
    %v675 = vunpack.c.h.b16 %v393
    %v676 = vunpack.c.l.b16 %v394
    %v677 = vunpack.c.h.b16 %v394
    %v678 = vunpack.c.l.b16 %v395
    %v679 = vunpack.c.h.b16 %v395
    %v680 = vunpack.c.l.b16 %v396
    %v681 = vunpack.c.h.b16 %v396
    %v682 = vunpack.c.l.b16 %v397
    %v683 = vunpack.c.h.b16 %v397
    %v684 = vunpack.c.l.b16 %v398
    %v685 = vunpack.c.h.b16 %v398
    %v686 = vunpack.c.l.b16 %v399
    %v687 = vunpack.c.h.b16 %v399
    %v688 = vunpack.c.l.b16 %v400
    %v689 = vunpack.c.h.b16 %v400
    %v690 = vunpack.c.l.b16 %v401
    %v691 = vunpack.c.h.b16 %v401
    %v692 = vunpack.c.l.b16 %v402
    %v693 = vunpack.c.h.b16 %v402
    %v694 = vunpack.c.l.b16 %v403
    %v695 = vunpack.c.h.b16 %v403
    %v696 = vunpack.c.l.b16 %v404
    %v697 = vunpack.c.h.b16 %v404
    %v698 = vunpack.c.l.b16 %v405
    %v699 = vunpack.c.h.b16 %v405
    %v700 = vunpack.c.l.b16 %v406
    %v701 = vunpack.c.h.b16 %v406
    %v702 = vunpack.c.l.b16 %v407
    %v703 = vunpack.c.h.b16 %v407
    %v704 = vunpack.c.l.b16 %v408
    %v705 = vunpack.c.h.b16 %v408
    %v706 = vunpack.c.l.b16 %v409
    %v707 = vunpack.c.h.b16 %v409
    %v708 = vunpack.c.l.b16 %v410
    %v709 = vunpack.c.h.b16 %v410
    %v710 = vunpack.c.l.b16 %v411
    %v711 = vunpack.c.h.b16 %v411
    %v712 = vunpack.c.l.b16 %v412
    %v713 = vunpack.c.h.b16 %v412
    %v714 = vunpack.c.l.b16 %v413
    %v715 = vunpack.c.h.b16 %v413
    %v716 = vunpack.c.l.b16 %v414
    %v717 = vunpack.c.h.b16 %v414
    %v718 = vunpack.c.l.b16 %v415
    %v719 = vunpack.c.h.b16 %v415
    %v720 = vunpack.c.l.b16 %v416
    %v721 = vunpack.c.h.b16 %v416
    %v722 = vunpack.c.l.b16 %v417
    %v723 = vunpack.c.h.b16 %v417
    %v724 = vunpack.c.l.b16 %v418
    %v725 = vunpack.c.h.b16 %v418
    %v726 = vunpack.c.l.b16 %v419
    %v727 = vunpack.c.h.b16 %v419
    %v728 = vunpack.c.l.b16 %v420
    %v729 = vunpack.c.h.b16 %v420
    %v730 = vunpack.c.l.b16 %v421
    %v731 = vunpack.c.h.b16 %v421
    %v732 = vunpack.c.l.b16 %v422
    %v733 = vunpack.c.h.b16 %v422
    %v734 = vunpack.c.l.b16 %v423
    %v735 = vunpack.c.h.b16 %v423
    %v736 = vunpack.c.l.b16 %v424
    %v737 = vunpack.c.h.b16 %v424
    %v738 = vunpack.c.l.b16 %v425
    %v739 = vunpack.c.h.b16 %v425
    %v740 = vunpack.c.l.b16 %v426
    %v741 = vunpack.c.h.b16 %v426
    %v742 = vunpack.c.l.b16 %v427
    %v743 = vunpack.c.h.b16 %v427
    %v744 = vunpack.c.l.b16 %v428
    %v745 = vunpack.c.h.b16 %v428
    %v746 = vunpack.c.l.b16 %v429
    %v747 = vunpack.c.h.b16 %v429
    %v748 = vunpack.c.l.b16 %v430
    %v749 = vunpack.c.h.b16 %v430
    %v750 = vunpack.c.l.b16 %v431
    %v751 = vunpack.c.h.b16 %v431
    %v752 = vunpack.c.l.b16 %v432
    %v753 = vunpack.c.h.b16 %v432
    %v754 = vunpack.c.l.b16 %v433
    %v755 = vunpack.c.h.b16 %v433
    %v756 = vunpack.c.l.b16 %v434
    %v757 = vunpack.c.h.b16 %v434
    %v758 = vunpack.c.l.b16 %v435
    %v759 = vunpack.c.h.b16 %v435
    %v760 = vunpack.c.l.b16 %v436
    %v761 = vunpack.c.h.b16 %v436
    %v762 = vunpack.c.l.b16 %v437
    %v763 = vunpack.c.h.b16 %v437
    %v764 = vunpack.c.l.b16 %v438
    %v765 = vunpack.c.h.b16 %v438
    %v766 = vunpack.c.l.b16 %v439
    %v767 = vunpack.c.h.b16 %v439
    %v768 = vunpack.c.l.b16 %v440
    %v769 = vunpack.c.h.b16 %v440
    %v770 = vunpack.c.l.b16 %v441
    %v771 = vunpack.c.h.b16 %v441
    %v772 = vunpack.c.l.b16 %v442
    %v773 = vunpack.c.h.b16 %v442
    %v774 = vunpack.c.l.b16 %v443
    %v775 = vunpack.c.h.b16 %v443
    %v776 = vunpack.c.l.b16 %v444
    %v777 = vunpack.c.h.b16 %v444
    %v778 = vunpack.c.l.b16 %v445
    %v779 = vunpack.c.h.b16 %v445
    %v780 = vunpack.c.l.b16 %v446
    %v781 = vunpack.c.h.b16 %v446
    %v782 = vunpack.c.l.b16 %v447
    %v783 = vunpack.c.h.b16 %v447
    %v784 = vunpack.c.l.b16 %v448
    %v785 = vunpack.c.h.b16 %v448
    %v786 = vunpack.c.l.b16 %v449
    %v787 = vunpack.c.h.b16 %v449
    %v788 = vunpack.c.l.b16 %v450
    %v789 = vunpack.c.h.b16 %v450
    %v790 = vunpack.c.l.b16 %v451
    %v791 = vunpack.c.h.b16 %v451
    %v792 = vunpack.c.l.b16 %v452
    %v793 = vunpack.c.h.b16 %v452
    %v794 = vunpack.c.l.b16 %v453
    %v795 = vunpack.c.h.b16 %v453
    %v796 = vunpack.c.l.b16 %v454
    %v797 = vunpack.c.h.b16 %v454
    %v798 = vunpack.c.l.b16 %v455
    %v799 = vunpack.c.h.b16 %v455
    %v800 = vunpack.c.l.b16 %v456
    %v801 = vunpack.c.h.b16 %v456
    %v802 = vunpack.c.l.b16 %v457
    %v803 = vunpack.c.h.b16 %v457
    %v804 = vunpack.c.l.b16 %v458
    %v805 = vunpack.c.h.b16 %v458
    %v806 = vunpack.c.l.b16 %v459
    %v807 = vunpack.c.h.b16 %v459
    %v808 = vunpack.c.l.b16 %v460
    %v809 = vunpack.c.h.b16 %v460
    %v810 = vunpack.c.l.b16 %v461
    %v811 = vunpack.c.h.b16 %v461
    %v812 = vunpack.c.l.b16 %v462
    %v813 = vunpack.c.h.b16 %v462
    %v814 = vunpack.c.l.b16 %v463
    %v815 = vunpack.c.h.b16 %v463
    %v816 = vunpack.c.l.b16 %v464
    %v817 = vunpack.c.h.b16 %v464
    %v818 = vunpack.c.l.b16 %v465
    %v819 = vunpack.c.h.b16 %v465
    %v820 = vunpack.c.l.b16 %v466
    %v821 = vunpack.c.h.b16 %v466
    %v822 = vunpack.c.l.b16 %v467
    %v823 = vunpack.c.h.b16 %v467
    %v824 = vunpack.c.l.b16 %v468
    %v825 = vunpack.c.h.b16 %v468
    %v826 = vunpack.c.l.b16 %v469
    %v827 = vunpack.c.h.b16 %v469
    %v828 = vunpack.c.l.b16 %v470
    %v829 = vunpack.c.h.b16 %v470
    %v830 = vunpack.c.l.b16 %v471
    %v831 = vunpack.c.h.b16 %v471
    %v832 = vunpack.c.l.b16 %v472
    %v833 = vunpack.c.h.b16 %v472
    %v834 = vunpack.c.l.b16 %v473
    %v835 = vunpack.c.h.b16 %v473
    %v836 = vunpack.c.l.b16 %v474
    %v837 = vunpack.c.h.b16 %v474
    %v838 = vunpack.c.l.b16 %v475
    %v839 = vunpack.c.h.b16 %v475
    %v840 = vunpack.c.l.b16 %v476
    %v841 = vunpack.c.h.b16 %v476
    %v842 = vunpack.c.l.b16 %v477
    %v843 = vunpack.c.h.b16 %v477
    %v844 = vunpack.c.l.b16 %v478
    %v845 = vunpack.c.h.b16 %v478
    %v846 = vunpack.c.l.b16 %v479
    %v847 = vunpack.c.h.b16 %v479
    %v848 = vunpack.c.l.b16 %v480
    %v849 = vunpack.c.h.b16 %v480
    %v850 = vunpack.c.l.b16 %v481
    %v851 = vunpack.c.h.b16 %v481
    %v852 = vunpack.c.l.b16 %v482
    %v853 = vunpack.c.h.b16 %v482
    %v854 = vunpack.c.l.b16 %v483
    %v855 = vunpack.c.h.b16 %v483
    %v856 = vunpack.c.l.b16 %v484
    %v857 = vunpack.c.h.b16 %v484
    %v858 = vunpack.c.l.b16 %v485
    %v859 = vunpack.c.h.b16 %v485
    %v860 = vunpack.c.l.b16 %v486
    %v861 = vunpack.c.h.b16 %v486
    %v862 = vunpack.c.l.b16 %v487
    %v863 = vunpack.c.h.b16 %v487
    %v864 = vunpack.c.l.b16 %v488
    %v865 = vunpack.c.h.b16 %v488
    %v866 = vunpack.c.l.b16 %v489
    %v867 = vunpack.c.h.b16 %v489
    %v868 = vunpack.c.l.b16 %v490
    %v869 = vunpack.c.h.b16 %v490
    %v870 = vunpack.c.l.b16 %v491
    %v871 = vunpack.c.h.b16 %v491
    %v872 = vunpack.c.l.b16 %v492
    %v873 = vunpack.c.h.b16 %v492
    %v874 = vunpack.c.l.b16 %v493
    %v875 = vunpack.c.h.b16 %v493
    %v876 = vunpack.c.l.b16 %v494
    %v877 = vunpack.c.h.b16 %v494
    %v878 = vunpack.c.l.b16 %v495
    %v879 = vunpack.c.h.b16 %v495
    %v880 = vunpack.c.l.b16 %v496
    %v881 = vunpack.c.h.b16 %v496
    %v882 = vunpack.c.l.b16 %v497
    %v883 = vunpack.c.h.b16 %v497
    %v884 = vunpack.c.l.b16 %v498
    %v885 = vunpack.c.h.b16 %v498
    %v886 = vunpack.c.l.b16 %v499
    %v887 = vunpack.c.h.b16 %v499
    %v888 = vunpack.c.l.b16 %v500
    %v889 = vunpack.c.h.b16 %v500
    %v890 = vunpack.c.l.b16 %v501
    %v891 = vunpack.c.h.b16 %v501
    %v892 = vunpack.c.l.b16 %v502
    %v893 = vunpack.c.h.b16 %v502
    %v894 = vunpack.c.l.b16 %v503
    %v895 = vunpack.c.h.b16 %v503
    %v896 = vpack.c.b16 %v648, %v640
    %v897 = vpack.c.b16 %v649, %v641
    %v898 = vpack.c.b16 %v650, %v642
    %v899 = vpack.c.b16 %v651, %v643
    %v900 = vpack.c.b16 %v652, %v644
    %v901 = vpack.c.b16 %v653, %v645
    %v902 = vpack.c.b16 %v654, %v646
    %v903 = vpack.c.b16 %v655, %v647
    %v904 = vpack.c.b16 %v664, %v656
    %v905 = vpack.c.b16 %v665, %v657
    %v906 = vpack.c.b16 %v666, %v658
    %v907 = vpack.c.b16 %v667, %v659
    %v908 = vpack.c.b16 %v668, %v660
    %v909 = vpack.c.b16 %v669, %v661
    %v910 = vpack.c.b16 %v670, %v662
    %v911 = vpack.c.b16 %v671, %v663
    %v912 = vpack.c.b16 %v680, %v672
    %v913 = vpack.c.b16 %v681, %v673
    %v914 = vpack.c.b16 %v682, %v674
    %v915 = vpack.c.b16 %v683, %v675
    %v916 = vpack.c.b16 %v684, %v676
    %v917 = vpack.c.b16 %v685, %v677
    %v918 = vpack.c.b16 %v686, %v678
    %v919 = vpack.c.b16 %v687, %v679
    %v920 = vpack.c.b16 %v696, %v688
    %v921 = vpack.c.b16 %v697, %v689
    %v922 = vpack.c.b16 %v698, %v690
    %v923 = vpack.c.b16 %v699, %v691
    %v924 = vpack.c.b16 %v700, %v692
    %v925 = vpack.c.b16 %v701, %v693
    %v926 = vpack.c.b16 %v702, %v694
    %v927 = vpack.c.b16 %v703, %v695
    %v928 = vpack.c.b16 %v712, %v704
    %v929 = vpack.c.b16 %v713, %v705
    %v930 = vpack.c.b16 %v714, %v706
    %v931 = vpack.c.b16 %v715, %v707
    %v932 = vpack.c.b16 %v716, %v708
    %v933 = vpack.c.b16 %v717, %v709
    %v934 = vpack.c.b16 %v718, %v710
    %v935 = vpack.c.b16 %v719, %v711
    %v936 = vpack.c.b16 %v728, %v720
    %v937 = vpack.c.b16 %v729, %v721
    %v938 = vpack.c.b16 %v730, %v722
    %v939 = vpack.c.b16 %v731, %v723
    %v940 = vpack.c.b16 %v732, %v724
    %v941 = vpack.c.b16 %v733, %v725
    %v942 = vpack.c.b16 %v734, %v726
    %v943 = vpack.c.b16 %v735, %v727
    %v944 = vpack.c.b16 %v744, %v736
    %v945 = vpack.c.b16 %v745, %v737
    %v946 = vpack.c.b16 %v746, %v738
    %v947 = vpack.c.b16 %v747, %v739
    %v948 = vpack.c.b16 %v748, %v740
    %v949 = vpack.c.b16 %v749, %v741
    %v950 = vpack.c.b16 %v750, %v742
    %v951 = vpack.c.b16 %v751, %v743
    %v952 = vpack.c.b16 %v760, %v752
    %v953 = vpack.c.b16 %v761, %v753
    %v954 = vpack.c.b16 %v762, %v754
    %v955 = vpack.c.b16 %v763, %v755
    %v956 = vpack.c.b16 %v764, %v756
    %v957 = vpack.c.b16 %v765, %v757
    %v958 = vpack.c.b16 %v766, %v758
    %v959 = vpack.c.b16 %v767, %v759
    %v960 = vpack.c.b16 %v776, %v768
    %v961 = vpack.c.b16 %v777, %v769
    %v962 = vpack.c.b16 %v778, %v770
    %v963 = vpack.c.b16 %v779, %v771
    %v964 = vpack.c.b16 %v780, %v772
    %v965 = vpack.c.b16 %v781, %v773
    %v966 = vpack.c.b16 %v782, %v774
    %v967 = vpack.c.b16 %v783, %v775
    %v968 = vpack.c.b16 %v792, %v784
    %v969 = vpack.c.b16 %v793, %v785
    %v970 = vpack.c.b16 %v794, %v786
    %v971 = vpack.c.b16 %v795, %v787
    %v972 = vpack.c.b16 %v796, %v788
    %v973 = vpack.c.b16 %v797, %v789
    %v974 = vpack.c.b16 %v798, %v790
    %v975 = vpack.c.b16 %v799, %v791
    %v976 = vpack.c.b16 %v808, %v800
    %v977 = vpack.c.b16 %v809, %v801
    %v978 = vpack.c.b16 %v810, %v802
    %v979 = vpack.c.b16 %v811, %v803
    %v980 = vpack.c.b16 %v812, %v804
    %v981 = vpack.c.b16 %v813, %v805
    %v982 = vpack.c.b16 %v814, %v806
    %v983 = vpack.c.b16 %v815, %v807
    %v984 = vpack.c.b16 %v824, %v816
    %v985 = vpack.c.b16 %v825, %v817
    %v986 = vpack.c.b16 %v826, %v818
    %v987 = vpack.c.b16 %v827, %v819
    %v988 = vpack.c.b16 %v828, %v820
    %v989 = vpack.c.b16 %v829, %v821
    %v990 = vpack.c.b16 %v830, %v822
    %v991 = vpack.c.b16 %v831, %v823
    %v992 = vpack.c.b16 %v840, %v832
    %v993 = vpack.c.b16 %v841, %v833
    %v994 = vpack.c.b16 %v842, %v834
    %v995 = vpack.c.b16 %v843, %v835
    %v996 = vpack.c.b16 %v844, %v836
    %v997 = vpack.c.b16 %v845, %v837
    %v998 = vpack.c.b16 %v846, %v838
    %v999 = vpack.c.b16 %v847, %v839
    %v1000 = vpack.c.b16 %v856, %v848
    %v1001 = vpack.c.b16 %v857, %v849
    %v1002 = vpack.c.b16 %v858, %v850
    %v1003 = vpack.c.b16 %v859, %v851
    %v1004 = vpack.c.b16 %v860, %v852
    %v1005 = vpack.c.b16 %v861, %v853
    %v1006 = vpack.c.b16 %v862, %v854
    %v1007 = vpack.c.b16 %v863, %v855
    %v1008 = vpack.c.b16 %v872, %v864
    %v1009 = vpack.c.b16 %v873, %v865
    %v1010 = vpack.c.b16 %v874, %v866
    %v1011 = vpack.c.b16 %v875, %v867
    %v1012 = vpack.c.b16 %v876, %v868
    %v1013 = vpack.c.b16 %v877, %v869
    %v1014 = vpack.c.b16 %v878, %v870
    %v1015 = vpack.c.b16 %v879, %v871
    %v1016 = vpack.c.b16 %v888, %v880
    %v1017 = vpack.c.b16 %v889, %v881
    %v1018 = vpack.c.b16 %v890, %v882
    %v1019 = vpack.c.b16 %v891, %v883
    %v1020 = vpack.c.b16 %v892, %v884
    %v1021 = vpack.c.b16 %v893, %v885
    %v1022 = vpack.c.b16 %v894, %v886
    %v1023 = vpack.c.b16 %v895, %v887
    %1152 = vmatprep.subr.bf16.mxu0 %v897
    %1153 = vmatpush1.bf16.msra.mxu0 %v896
    %1154 = vmatprep.subr.bf16.mxu0 %v905
    %1155 = vmatpush1.bf16.msra.mxu0 %v904
    %1156 = vmatprep.subr.bf16.mxu0 %v913
    %1157 = vmatpush1.bf16.msra.mxu0 %v912
    %1158 = vmatprep.subr.bf16.mxu0 %v921
    %1159 = vmatpush1.bf16.msra.mxu0 %v920
    %1160 = vmatprep.subr.bf16.mxu0 %v929
    %1161 = vmatpush1.bf16.msra.mxu0 %v928
    %1162 = vmatprep.subr.bf16.mxu0 %v937
    %1163 = vmatpush1.bf16.msra.mxu0 %v936
    %1164 = vmatprep.subr.bf16.mxu0 %v945
    %1165 = vmatpush1.bf16.msra.mxu0 %v944
    %1166 = vmatprep.subr.bf16.mxu0 %v953
    %1167 = vmatpush1.bf16.msra.mxu0 %v952
    %1168 = vmatprep.subr.bf16.mxu0 %v961
    %1169 = vmatpush1.bf16.msra.mxu0 %v960
    %1170 = vmatprep.subr.bf16.mxu0 %v969
    %1171 = vmatpush1.bf16.msra.mxu0 %v968
    %1172 = vmatprep.subr.bf16.mxu0 %v977
    %1173 = vmatpush1.bf16.msra.mxu0 %v976
    %1174 = vmatprep.subr.bf16.mxu0 %v985
    %1175 = vmatpush1.bf16.msra.mxu0 %v984
    %1176 = vmatprep.subr.bf16.mxu0 %v993
    %1177 = vmatpush1.bf16.msra.mxu0 %v992
    %1178 = vmatprep.subr.bf16.mxu0 %v1001
    %1179 = vmatpush1.bf16.msra.mxu0 %v1000
    %1180 = vmatprep.subr.bf16.mxu0 %v1009
    %1181 = vmatpush1.bf16.msra.mxu0 %v1008
    %1182 = vmatprep.subr.bf16.mxu0 %v1017
    %1183 = vmatpush1.bf16.msra.mxu0 %v1016
    %1184 = vmatprep.mubr.bf16.mxu0 0
    %1185 = vmatmul.mubr.bf16.gmra.mrb[0].mxu0 0
    %v1186 = vpop.f32.mrb[0].mxu0
    %v1187 = vadd.f32 0.0, %v1186
    %v1188 = vpop.f32.mrb[0].mxu0
    %v1189 = vadd.f32 0.0, %v1188
    %v1190 = vpop.f32.mrb[0].mxu0
    %v1191 = vpop.f32.mrb[0].mxu0
    %1192 = vdwg.mxu0
    %1193 = vmatprep.subr.bf16.mxu0 %v899
    %1194 = vmatpush1.bf16.msra.mxu0 %v898
    %1195 = vmatprep.subr.bf16.mxu0 %v907
    %1196 = vmatpush1.bf16.msra.mxu0 %v906
    %1197 = vmatprep.subr.bf16.mxu0 %v915
    %1198 = vmatpush1.bf16.msra.mxu0 %v914
    %1199 = vmatprep.subr.bf16.mxu0 %v923
    %1200 = vmatpush1.bf16.msra.mxu0 %v922
    %1201 = vmatprep.subr.bf16.mxu0 %v931
    %1202 = vmatpush1.bf16.msra.mxu0 %v930
    %1203 = vmatprep.subr.bf16.mxu0 %v939
    %1204 = vmatpush1.bf16.msra.mxu0 %v938
    %1205 = vmatprep.subr.bf16.mxu0 %v947
    %1206 = vmatpush1.bf16.msra.mxu0 %v946
    %1207 = vmatprep.subr.bf16.mxu0 %v955
    %1208 = vmatpush1.bf16.msra.mxu0 %v954
    %1209 = vmatprep.subr.bf16.mxu0 %v963
    %1210 = vmatpush1.bf16.msra.mxu0 %v962
    %1211 = vmatprep.subr.bf16.mxu0 %v971
    %1212 = vmatpush1.bf16.msra.mxu0 %v970
    %1213 = vmatprep.subr.bf16.mxu0 %v979
    %1214 = vmatpush1.bf16.msra.mxu0 %v978
    %1215 = vmatprep.subr.bf16.mxu0 %v987
    %1216 = vmatpush1.bf16.msra.mxu0 %v986
    %1217 = vmatprep.subr.bf16.mxu0 %v995
    %1218 = vmatpush1.bf16.msra.mxu0 %v994
    %1219 = vmatprep.subr.bf16.mxu0 %v1003
    %1220 = vmatpush1.bf16.msra.mxu0 %v1002
    %1221 = vmatprep.subr.bf16.mxu0 %v1011
    %1222 = vmatpush1.bf16.msra.mxu0 %v1010
    %1223 = vmatprep.subr.bf16.mxu0 %v1019
    %1224 = vmatpush1.bf16.msra.mxu0 %v1018
    %1225 = vmatprep.mubr.bf16.mxu0 0
    %1226 = vmatmul.mubr.bf16.gmra.mrb[0].mxu0 0
    %v1227 = vpop.f32.mrb[0].mxu0
    %v1228 = vadd.f32 0.0, %v1227
    %v1229 = vpop.f32.mrb[0].mxu0
    %v1230 = vadd.f32 0.0, %v1229
    %v1231 = vpop.f32.mrb[0].mxu0
    %v1232 = vpop.f32.mrb[0].mxu0
    %1233 = vdwg.mxu0
    %1234 = vmatprep.subr.bf16.mxu0 %v901
    %1235 = vmatpush1.bf16.msra.mxu0 %v900
    %1236 = vmatprep.subr.bf16.mxu0 %v909
    %1237 = vmatpush1.bf16.msra.mxu0 %v908
    %1238 = vmatprep.subr.bf16.mxu0 %v917
    %1239 = vmatpush1.bf16.msra.mxu0 %v916
    %1240 = vmatprep.subr.bf16.mxu0 %v925
    %1241 = vmatpush1.bf16.msra.mxu0 %v924
    %1242 = vmatprep.subr.bf16.mxu0 %v933
    %1243 = vmatpush1.bf16.msra.mxu0 %v932
    %1244 = vmatprep.subr.bf16.mxu0 %v941
    %1245 = vmatpush1.bf16.msra.mxu0 %v940
    %1246 = vmatprep.subr.bf16.mxu0 %v949
    %1247 = vmatpush1.bf16.msra.mxu0 %v948
    %1248 = vmatprep.subr.bf16.mxu0 %v957
    %1249 = vmatpush1.bf16.msra.mxu0 %v956
    %1250 = vmatprep.subr.bf16.mxu0 %v965
    %1251 = vmatpush1.bf16.msra.mxu0 %v964
    %1252 = vmatprep.subr.bf16.mxu0 %v973
    %1253 = vmatpush1.bf16.msra.mxu0 %v972
    %1254 = vmatprep.subr.bf16.mxu0 %v981
    %1255 = vmatpush1.bf16.msra.mxu0 %v980
    %1256 = vmatprep.subr.bf16.mxu0 %v989
    %1257 = vmatpush1.bf16.msra.mxu0 %v988
    %1258 = vmatprep.subr.bf16.mxu0 %v997
    %1259 = vmatpush1.bf16.msra.mxu0 %v996
    %1260 = vmatprep.subr.bf16.mxu0 %v1005
    %1261 = vmatpush1.bf16.msra.mxu0 %v1004
    %1262 = vmatprep.subr.bf16.mxu0 %v1013
    %1263 = vmatpush1.bf16.msra.mxu0 %v1012
    %1264 = vmatprep.subr.bf16.mxu0 %v1021
    %1265 = vmatpush1.bf16.msra.mxu0 %v1020
    %1266 = vmatprep.mubr.bf16.mxu0 0
    %1267 = vmatmul.mubr.bf16.gmra.mrb[0].mxu0 0
    %v1268 = vpop.f32.mrb[0].mxu0
    %v1269 = vadd.f32 0.0, %v1268
    %v1270 = vpop.f32.mrb[0].mxu0
    %v1271 = vadd.f32 0.0, %v1270
    %v1272 = vpop.f32.mrb[0].mxu0
    %v1273 = vpop.f32.mrb[0].mxu0
    %1274 = vdwg.mxu0
    %1275 = vmatprep.subr.bf16.mxu0 %v903
    %1276 = vmatpush1.bf16.msra.mxu0 %v902
    %1277 = vmatprep.subr.bf16.mxu0 %v911
    %1278 = vmatpush1.bf16.msra.mxu0 %v910
    %1279 = vmatprep.subr.bf16.mxu0 %v919
    %1280 = vmatpush1.bf16.msra.mxu0 %v918
    %1281 = vmatprep.subr.bf16.mxu0 %v927
    %1282 = vmatpush1.bf16.msra.mxu0 %v926
    %1283 = vmatprep.subr.bf16.mxu0 %v935
    %1284 = vmatpush1.bf16.msra.mxu0 %v934
    %1285 = vmatprep.subr.bf16.mxu0 %v943
    %1286 = vmatpush1.bf16.msra.mxu0 %v942
    %1287 = vmatprep.subr.bf16.mxu0 %v951
    %1288 = vmatpush1.bf16.msra.mxu0 %v950
    %1289 = vmatprep.subr.bf16.mxu0 %v959
    %1290 = vmatpush1.bf16.msra.mxu0 %v958
    %1291 = vmatprep.subr.bf16.mxu0 %v967
    %1292 = vmatpush1.bf16.msra.mxu0 %v966
    %1293 = vmatprep.subr.bf16.mxu0 %v975
    %1294 = vmatpush1.bf16.msra.mxu0 %v974
    %1295 = vmatprep.subr.bf16.mxu0 %v983
    %1296 = vmatpush1.bf16.msra.mxu0 %v982
    %1297 = vmatprep.subr.bf16.mxu0 %v991
    %1298 = vmatpush1.bf16.msra.mxu0 %v990
    %1299 = vmatprep.subr.bf16.mxu0 %v999
    %1300 = vmatpush1.bf16.msra.mxu0 %v998
    %1301 = vmatprep.subr.bf16.mxu0 %v1007
    %1302 = vmatpush1.bf16.msra.mxu0 %v1006
    %1303 = vmatprep.subr.bf16.mxu0 %v1015
    %1304 = vmatpush1.bf16.msra.mxu0 %v1014
    %1305 = vmatprep.subr.bf16.mxu0 %v1023
    %1306 = vmatpush1.bf16.msra.mxu0 %v1022
    %1307 = vmatprep.mubr.bf16.mxu0 0
    %1308 = vmatmul.mubr.bf16.gmra.mrb[0].mxu0 0
    %v1309 = vpop.f32.mrb[0].mxu0
    %v1310 = vadd.f32 0.0, %v1309
    %v1311 = vpop.f32.mrb[0].mxu0
    %v1312 = vadd.f32 0.0, %v1311
    %v1313 = vpop.f32.mrb[0].mxu0
    %v1314 = vpop.f32.mrb[0].mxu0
    %1315 = vdwg.mxu0
    %v1316 = vadd.f32 %v504, %v1187
    %v1317 = vadd.f32 %v505, %v1189
    %v1318 = vadd.f32 %v506, %v1228
    %v1319 = vadd.f32 %v507, %v1230
    %v1320 = vadd.f32 %v508, %v1269
    %v1321 = vadd.f32 %v509, %v1271
    %v1322 = vadd.f32 %v510, %v1310
    %v1323 = vadd.f32 %v511, %v1312
    %v1324 = vmul.f32 %v1316, 0.5
    %v1325 = vmul.f32 %v1317, 0.5
    %v1326 = vtanh.pop %v1324
    %v1327 = vtanh.pop %v1325
    %v1328 = vadd.f32 %v1326, 1.0
    %v1329 = vadd.f32 %v1327, 1.0
    %v1330 = vmul.f32 %v1328, 0.5
    %v1331 = vmul.f32 %v1329, 0.5
    %v1332 = vmul.f32 %v1318, 0.5
    %v1333 = vmul.f32 %v1319, 0.5
    %v1334 = vtanh.pop %v1332
    %v1335 = vtanh.pop %v1333
    %v1336 = vadd.f32 %v1334, 1.0
    %v1337 = vadd.f32 %v1335, 1.0
    %v1338 = vmul.f32 %v1336, 0.5
    %v1339 = vmul.f32 %v1337, 0.5
    %v1340 = vtanh.pop %v1320
    %v1341 = vtanh.pop %v1321
    %v1342 = vmul.f32 %v1322, 0.5
    %v1343 = vmul.f32 %v1323, 0.5
    %v1344 = vtanh.pop %v1342
    %v1345 = vtanh.pop %v1343
    %v1346 = vadd.f32 %v1344, 1.0
    %v1347 = vadd.f32 %v1345, 1.0
    %v1348 = vmul.f32 %v1346, 0.5
    %v1349 = vmul.f32 %v1347, 0.5
    %v1350 = vmul.f32 %v1338, 0.0
    %v1351 = vmul.f32 %v1339, 0.0
    %v1352 = vmul.f32 %v1330, %v1340
    %v1353 = vmul.f32 %v1331, %v1341
    %v1354 = vadd.f32 %v1350, %v1352
    %v1355 = vadd.f32 %v1351, %v1353
    %v1356 = vtanh.pop %v1354
    %v1357 = vtanh.pop %v1355
    %v1358 = vmul.f32 %v1348, %v1356
    %v1359 = vmul.f32 %v1349, %v1357
    %s1360 = scalar_lea.vmem [#allocation2], 64
    %v1361 = vld [vmem:[%s1360] sm:$0xff]
    %v1362 = vld [vmem:[%s1360 + $0x8] sm:$0xff]
    %v1363 = vld [vmem:[%s1360 + $0x10] sm:$0xff]
    %v1364 = vld [vmem:[%s1360 + $0x18] sm:$0xff]
    %v1365 = vld [vmem:[%s1360 + $0x20] sm:$0xff]
    %v1366 = vld [vmem:[%s1360 + $0x28] sm:$0xff]
    %v1367 = vld [vmem:[%s1360 + $0x30] sm:$0xff]
    %v1368 = vld [vmem:[%s1360 + $0x38] sm:$0xff]
    %v1369 = vpack.c.bf16 %v1358, %v1358
    %v1370 = vpack.c.bf16 %v1359, %v1359
    %1371 = vmatprep.subr.bf16.mxu0 %v897
    %1372 = vmatpush1.bf16.msra.mxu0 %v896
    %1373 = vmatprep.subr.bf16.mxu0 %v905
    %1374 = vmatpush1.bf16.msra.mxu0 %v904
    %1375 = vmatprep.subr.bf16.mxu0 %v913
    %1376 = vmatpush1.bf16.msra.mxu0 %v912
    %1377 = vmatprep.subr.bf16.mxu0 %v921
    %1378 = vmatpush1.bf16.msra.mxu0 %v920
    %1379 = vmatprep.subr.bf16.mxu0 %v929
    %1380 = vmatpush1.bf16.msra.mxu0 %v928
    %1381 = vmatprep.subr.bf16.mxu0 %v937
    %1382 = vmatpush1.bf16.msra.mxu0 %v936
    %1383 = vmatprep.subr.bf16.mxu0 %v945
    %1384 = vmatpush1.bf16.msra.mxu0 %v944
    %1385 = vmatprep.subr.bf16.mxu0 %v953
    %1386 = vmatpush1.bf16.msra.mxu0 %v952
    %1387 = vmatprep.subr.bf16.mxu0 %v961
    %1388 = vmatpush1.bf16.msra.mxu0 %v960
    %1389 = vmatprep.subr.bf16.mxu0 %v969
    %1390 = vmatpush1.bf16.msra.mxu0 %v968
    %1391 = vmatprep.subr.bf16.mxu0 %v977
    %1392 = vmatpush1.bf16.msra.mxu0 %v976
    %1393 = vmatprep.subr.bf16.mxu0 %v985
    %1394 = vmatpush1.bf16.msra.mxu0 %v984
    %1395 = vmatprep.subr.bf16.mxu0 %v993
    %1396 = vmatpush1.bf16.msra.mxu0 %v992
    %1397 = vmatprep.subr.bf16.mxu0 %v1001
    %1398 = vmatpush1.bf16.msra.mxu0 %v1000
    %1399 = vmatprep.subr.bf16.mxu0 %v1009
    %1400 = vmatpush1.bf16.msra.mxu0 %v1008
    %1401 = vmatprep.subr.bf16.mxu0 %v1017
    %1402 = vmatpush1.bf16.msra.mxu0 %v1016
    %1403 = vmatprep.mubr.bf16.mxu0 %v1370
    %1404 = vmatmul.mubr.bf16.gmra.mrb[0].mxu0 %v1369
    %v1405 = vpop.f32.mrb[0].mxu0
    %v1406 = vadd.f32 0.0, %v1405
    %v1407 = vpop.f32.mrb[0].mxu0
    %v1408 = vadd.f32 0.0, %v1407
    %v1409 = vpop.f32.mrb[0].mxu0
    %v1410 = vpop.f32.mrb[0].mxu0
    %1411 = vdwg.mxu0
    %1412 = vmatprep.subr.bf16.mxu0 %v899
    %1413 = vmatpush1.bf16.msra.mxu0 %v898
    %1414 = vmatprep.subr.bf16.mxu0 %v907
    %1415 = vmatpush1.bf16.msra.mxu0 %v906
    %1416 = vmatprep.subr.bf16.mxu0 %v915
    %1417 = vmatpush1.bf16.msra.mxu0 %v914
    %1418 = vmatprep.subr.bf16.mxu0 %v923
    %1419 = vmatpush1.bf16.msra.mxu0 %v922
    %1420 = vmatprep.subr.bf16.mxu0 %v931
    %1421 = vmatpush1.bf16.msra.mxu0 %v930
    %1422 = vmatprep.subr.bf16.mxu0 %v939
    %1423 = vmatpush1.bf16.msra.mxu0 %v938
    %1424 = vmatprep.subr.bf16.mxu0 %v947
    %1425 = vmatpush1.bf16.msra.mxu0 %v946
    %1426 = vmatprep.subr.bf16.mxu0 %v955
    %1427 = vmatpush1.bf16.msra.mxu0 %v954
    %1428 = vmatprep.subr.bf16.mxu0 %v963
    %1429 = vmatpush1.bf16.msra.mxu0 %v962
    %1430 = vmatprep.subr.bf16.mxu0 %v971
    %1431 = vmatpush1.bf16.msra.mxu0 %v970
    %1432 = vmatprep.subr.bf16.mxu0 %v979
    %1433 = vmatpush1.bf16.msra.mxu0 %v978
    %1434 = vmatprep.subr.bf16.mxu0 %v987
    %1435 = vmatpush1.bf16.msra.mxu0 %v986
    %1436 = vmatprep.subr.bf16.mxu0 %v995
    %1437 = vmatpush1.bf16.msra.mxu0 %v994
    %1438 = vmatprep.subr.bf16.mxu0 %v1003
    %1439 = vmatpush1.bf16.msra.mxu0 %v1002
    %1440 = vmatprep.subr.bf16.mxu0 %v1011
    %1441 = vmatpush1.bf16.msra.mxu0 %v1010
    %1442 = vmatprep.subr.bf16.mxu0 %v1019
    %1443 = vmatpush1.bf16.msra.mxu0 %v1018
    %1444 = vmatprep.mubr.bf16.mxu0 %v1370
    %1445 = vmatmul.mubr.bf16.gmra.mrb[0].mxu0 %v1369
    %v1446 = vpop.f32.mrb[0].mxu0
    %v1447 = vadd.f32 0.0, %v1446
    %v1448 = vpop.f32.mrb[0].mxu0
    %v1449 = vadd.f32 0.0, %v1448
    %v1450 = vpop.f32.mrb[0].mxu0
    %v1451 = vpop.f32.mrb[0].mxu0
    %1452 = vdwg.mxu0
    %1453 = vmatprep.subr.bf16.mxu0 %v901
    %1454 = vmatpush1.bf16.msra.mxu0 %v900
    %1455 = vmatprep.subr.bf16.mxu0 %v909
    %1456 = vmatpush1.bf16.msra.mxu0 %v908
    %1457 = vmatprep.subr.bf16.mxu0 %v917
    %1458 = vmatpush1.bf16.msra.mxu0 %v916
    %1459 = vmatprep.subr.bf16.mxu0 %v925
    %1460 = vmatpush1.bf16.msra.mxu0 %v924
    %1461 = vmatprep.subr.bf16.mxu0 %v933
    %1462 = vmatpush1.bf16.msra.mxu0 %v932
    %1463 = vmatprep.subr.bf16.mxu0 %v941
    %1464 = vmatpush1.bf16.msra.mxu0 %v940
    %1465 = vmatprep.subr.bf16.mxu0 %v949
    %1466 = vmatpush1.bf16.msra.mxu0 %v948
    %1467 = vmatprep.subr.bf16.mxu0 %v957
    %1468 = vmatpush1.bf16.msra.mxu0 %v956
    %1469 = vmatprep.subr.bf16.mxu0 %v965
    %1470 = vmatpush1.bf16.msra.mxu0 %v964
    %1471 = vmatprep.subr.bf16.mxu0 %v973
    %1472 = vmatpush1.bf16.msra.mxu0 %v972
    %1473 = vmatprep.subr.bf16.mxu0 %v981
    %1474 = vmatpush1.bf16.msra.mxu0 %v980
    %1475 = vmatprep.subr.bf16.mxu0 %v989
    %1476 = vmatpush1.bf16.msra.mxu0 %v988
    %1477 = vmatprep.subr.bf16.mxu0 %v997
    %1478 = vmatpush1.bf16.msra.mxu0 %v996
    %1479 = vmatprep.subr.bf16.mxu0 %v1005
    %1480 = vmatpush1.bf16.msra.mxu0 %v1004
    %1481 = vmatprep.subr.bf16.mxu0 %v1013
    %1482 = vmatpush1.bf16.msra.mxu0 %v1012
    %1483 = vmatprep.subr.bf16.mxu0 %v1021
    %1484 = vmatpush1.bf16.msra.mxu0 %v1020
    %1485 = vmatprep.mubr.bf16.mxu0 %v1370
    %1486 = vmatmul.mubr.bf16.gmra.mrb[0].mxu0 %v1369
    %v1487 = vpop.f32.mrb[0].mxu0
    %v1488 = vadd.f32 0.0, %v1487
    %v1489 = vpop.f32.mrb[0].mxu0
    %v1490 = vadd.f32 0.0, %v1489
    %v1491 = vpop.f32.mrb[0].mxu0
    %v1492 = vpop.f32.mrb[0].mxu0
    %1493 = vdwg.mxu0
    %1494 = vmatprep.subr.bf16.mxu0 %v903
    %1495 = vmatpush1.bf16.msra.mxu0 %v902
    %1496 = vmatprep.subr.bf16.mxu0 %v911
    %1497 = vmatpush1.bf16.msra.mxu0 %v910
    %1498 = vmatprep.subr.bf16.mxu0 %v919
    %1499 = vmatpush1.bf16.msra.mxu0 %v918
    %1500 = vmatprep.subr.bf16.mxu0 %v927
    %1501 = vmatpush1.bf16.msra.mxu0 %v926
    %1502 = vmatprep.subr.bf16.mxu0 %v935
    %1503 = vmatpush1.bf16.msra.mxu0 %v934
    %1504 = vmatprep.subr.bf16.mxu0 %v943
    %1505 = vmatpush1.bf16.msra.mxu0 %v942
    %1506 = vmatprep.subr.bf16.mxu0 %v951
    %1507 = vmatpush1.bf16.msra.mxu0 %v950
    %1508 = vmatprep.subr.bf16.mxu0 %v959
    %1509 = vmatpush1.bf16.msra.mxu0 %v958
    %1510 = vmatprep.subr.bf16.mxu0 %v967
    %1511 = vmatpush1.bf16.msra.mxu0 %v966
    %1512 = vmatprep.subr.bf16.mxu0 %v975
    %1513 = vmatpush1.bf16.msra.mxu0 %v974
    %1514 = vmatprep.subr.bf16.mxu0 %v983
    %1515 = vmatpush1.bf16.msra.mxu0 %v982
    %1516 = vmatprep.subr.bf16.mxu0 %v991
    %1517 = vmatpush1.bf16.msra.mxu0 %v990
    %1518 = vmatprep.subr.bf16.mxu0 %v999
    %1519 = vmatpush1.bf16.msra.mxu0 %v998
    %1520 = vmatprep.subr.bf16.mxu0 %v1007
    %1521 = vmatpush1.bf16.msra.mxu0 %v1006
    %1522 = vmatprep.subr.bf16.mxu0 %v1015
    %1523 = vmatpush1.bf16.msra.mxu0 %v1014
    %1524 = vmatprep.subr.bf16.mxu0 %v1023
    %1525 = vmatpush1.bf16.msra.mxu0 %v1022
    %1526 = vmatprep.mubr.bf16.mxu0 %v1370
    %1527 = vmatmul.mubr.bf16.gmra.mrb[0].mxu0 %v1369
    %v1528 = vpop.f32.mrb[0].mxu0
    %v1529 = vadd.f32 0.0, %v1528
    %v1530 = vpop.f32.mrb[0].mxu0
    %v1531 = vadd.f32 0.0, %v1530
    %v1532 = vpop.f32.mrb[0].mxu0
    %v1533 = vpop.f32.mrb[0].mxu0
    %1534 = vdwg.mxu0
    %v1535 = vadd.f32 %v1361, %v1406
    %v1536 = vadd.f32 %v1362, %v1408
    %v1537 = vadd.f32 %v1363, %v1447
    %v1538 = vadd.f32 %v1364, %v1449
    %v1539 = vadd.f32 %v1365, %v1488
    %v1540 = vadd.f32 %v1366, %v1490
    %v1541 = vadd.f32 %v1367, %v1529
    %v1542 = vadd.f32 %v1368, %v1531
    %v1543 = vmul.f32 %v1535, 0.5
    %v1544 = vmul.f32 %v1536, 0.5
    %v1545 = vtanh.pop %v1543
    %v1546 = vtanh.pop %v1544
    %v1547 = vadd.f32 %v1545, 1.0
    %v1548 = vadd.f32 %v1546, 1.0
    %v1549 = vmul.f32 %v1547, 0.5
    %v1550 = vmul.f32 %v1548, 0.5
    %v1551 = vmul.f32 %v1537, 0.5
    %v1552 = vmul.f32 %v1538, 0.5
    %v1553 = vtanh.pop %v1551
    %v1554 = vtanh.pop %v1552
    %v1555 = vadd.f32 %v1553, 1.0
    %v1556 = vadd.f32 %v1554, 1.0
    %v1557 = vmul.f32 %v1555, 0.5
    %v1558 = vmul.f32 %v1556, 0.5
    %v1559 = vtanh.pop %v1539
    %v1560 = vtanh.pop %v1540
    %v1561 = vmul.f32 %v1541, 0.5
    %v1562 = vmul.f32 %v1542, 0.5
    %v1563 = vtanh.pop %v1561
    %v1564 = vtanh.pop %v1562
    %v1565 = vadd.f32 %v1563, 1.0
    %v1566 = vadd.f32 %v1564, 1.0
    %v1567 = vmul.f32 %v1565, 0.5
    %v1568 = vmul.f32 %v1566, 0.5
    %v1569 = vmul.f32 %v1557, %v1354
    %v1570 = vmul.f32 %v1558, %v1355
    %v1571 = vmul.f32 %v1549, %v1559
    %v1572 = vmul.f32 %v1550, %v1560
    %v1573 = vadd.f32 %v1569, %v1571
    %v1574 = vadd.f32 %v1570, %v1572
    %v1575 = vtanh.pop %v1573
    %v1576 = vtanh.pop %v1574
    %v1577 = vmul.f32 %v1567, %v1575
    %v1578 = vmul.f32 %v1568, %v1576
    %s1579 = scalar_lea.vmem [#allocation2], 128
    %v1580 = vld [vmem:[%s1579] sm:$0xff]
    %v1581 = vld [vmem:[%s1579 + $0x8] sm:$0xff]
    %v1582 = vld [vmem:[%s1579 + $0x10] sm:$0xff]
    %v1583 = vld [vmem:[%s1579 + $0x18] sm:$0xff]
    %v1584 = vld [vmem:[%s1579 + $0x20] sm:$0xff]
    %v1585 = vld [vmem:[%s1579 + $0x28] sm:$0xff]
    %v1586 = vld [vmem:[%s1579 + $0x30] sm:$0xff]
    %v1587 = vld [vmem:[%s1579 + $0x38] sm:$0xff]
    %v1588 = vpack.c.bf16 %v1577, %v1577
    %v1589 = vpack.c.bf16 %v1578, %v1578
    %1590 = vmatprep.subr.bf16.mxu0 %v897
    %1591 = vmatpush1.bf16.msra.mxu0 %v896
    %1592 = vmatprep.subr.bf16.mxu0 %v905
    %1593 = vmatpush1.bf16.msra.mxu0 %v904
    %1594 = vmatprep.subr.bf16.mxu0 %v913
    %1595 = vmatpush1.bf16.msra.mxu0 %v912
    %1596 = vmatprep.subr.bf16.mxu0 %v921
    %1597 = vmatpush1.bf16.msra.mxu0 %v920
    %1598 = vmatprep.subr.bf16.mxu0 %v929
    %1599 = vmatpush1.bf16.msra.mxu0 %v928
    %1600 = vmatprep.subr.bf16.mxu0 %v937
    %1601 = vmatpush1.bf16.msra.mxu0 %v936
    %1602 = vmatprep.subr.bf16.mxu0 %v945
    %1603 = vmatpush1.bf16.msra.mxu0 %v944
    %1604 = vmatprep.subr.bf16.mxu0 %v953
    %1605 = vmatpush1.bf16.msra.mxu0 %v952
    %1606 = vmatprep.subr.bf16.mxu0 %v961
    %1607 = vmatpush1.bf16.msra.mxu0 %v960
    %1608 = vmatprep.subr.bf16.mxu0 %v969
    %1609 = vmatpush1.bf16.msra.mxu0 %v968
    %1610 = vmatprep.subr.bf16.mxu0 %v977
    %1611 = vmatpush1.bf16.msra.mxu0 %v976
    %1612 = vmatprep.subr.bf16.mxu0 %v985
    %1613 = vmatpush1.bf16.msra.mxu0 %v984
    %1614 = vmatprep.subr.bf16.mxu0 %v993
    %1615 = vmatpush1.bf16.msra.mxu0 %v992
    %1616 = vmatprep.subr.bf16.mxu0 %v1001
    %1617 = vmatpush1.bf16.msra.mxu0 %v1000
    %1618 = vmatprep.subr.bf16.mxu0 %v1009
    %1619 = vmatpush1.bf16.msra.mxu0 %v1008
    %1620 = vmatprep.subr.bf16.mxu0 %v1017
    %1621 = vmatpush1.bf16.msra.mxu0 %v1016
    %1622 = vmatprep.mubr.bf16.mxu0 %v1589
    %1623 = vmatmul.mubr.bf16.gmra.mrb[0].mxu0 %v1588
    %v1624 = vpop.f32.mrb[0].mxu0
    %v1625 = vadd.f32 0.0, %v1624
    %v1626 = vpop.f32.mrb[0].mxu0
    %v1627 = vadd.f32 0.0, %v1626
    %v1628 = vpop.f32.mrb[0].mxu0
    %v1629 = vpop.f32.mrb[0].mxu0
    %1630 = vdwg.mxu0
    %1631 = vmatprep.subr.bf16.mxu0 %v899
    %1632 = vmatpush1.bf16.msra.mxu0 %v898
    %1633 = vmatprep.subr.bf16.mxu0 %v907
    %1634 = vmatpush1.bf16.msra.mxu0 %v906
    %1635 = vmatprep.subr.bf16.mxu0 %v915
    %1636 = vmatpush1.bf16.msra.mxu0 %v914
    %1637 = vmatprep.subr.bf16.mxu0 %v923
    %1638 = vmatpush1.bf16.msra.mxu0 %v922
    %1639 = vmatprep.subr.bf16.mxu0 %v931
    %1640 = vmatpush1.bf16.msra.mxu0 %v930
    %1641 = vmatprep.subr.bf16.mxu0 %v939
    %1642 = vmatpush1.bf16.msra.mxu0 %v938
    %1643 = vmatprep.subr.bf16.mxu0 %v947
    %1644 = vmatpush1.bf16.msra.mxu0 %v946
    %1645 = vmatprep.subr.bf16.mxu0 %v955
    %1646 = vmatpush1.bf16.msra.mxu0 %v954
    %1647 = vmatprep.subr.bf16.mxu0 %v963
    %1648 = vmatpush1.bf16.msra.mxu0 %v962
    %1649 = vmatprep.subr.bf16.mxu0 %v971
    %1650 = vmatpush1.bf16.msra.mxu0 %v970
    %1651 = vmatprep.subr.bf16.mxu0 %v979
    %1652 = vmatpush1.bf16.msra.mxu0 %v978
    %1653 = vmatprep.subr.bf16.mxu0 %v987
    %1654 = vmatpush1.bf16.msra.mxu0 %v986
    %1655 = vmatprep.subr.bf16.mxu0 %v995
    %1656 = vmatpush1.bf16.msra.mxu0 %v994
    %1657 = vmatprep.subr.bf16.mxu0 %v1003
    %1658 = vmatpush1.bf16.msra.mxu0 %v1002
    %1659 = vmatprep.subr.bf16.mxu0 %v1011
    %1660 = vmatpush1.bf16.msra.mxu0 %v1010
    %1661 = vmatprep.subr.bf16.mxu0 %v1019
    %1662 = vmatpush1.bf16.msra.mxu0 %v1018
    %1663 = vmatprep.mubr.bf16.mxu0 %v1589
    %1664 = vmatmul.mubr.bf16.gmra.mrb[0].mxu0 %v1588
    %v1665 = vpop.f32.mrb[0].mxu0
    %v1666 = vadd.f32 0.0, %v1665
    %v1667 = vpop.f32.mrb[0].mxu0
    %v1668 = vadd.f32 0.0, %v1667
    %v1669 = vpop.f32.mrb[0].mxu0
    %v1670 = vpop.f32.mrb[0].mxu0
    %1671 = vdwg.mxu0
    %1672 = vmatprep.subr.bf16.mxu0 %v901
    %1673 = vmatpush1.bf16.msra.mxu0 %v900
    %1674 = vmatprep.subr.bf16.mxu0 %v909
    %1675 = vmatpush1.bf16.msra.mxu0 %v908
    %1676 = vmatprep.subr.bf16.mxu0 %v917
    %1677 = vmatpush1.bf16.msra.mxu0 %v916
    %1678 = vmatprep.subr.bf16.mxu0 %v925
    %1679 = vmatpush1.bf16.msra.mxu0 %v924
    %1680 = vmatprep.subr.bf16.mxu0 %v933
    %1681 = vmatpush1.bf16.msra.mxu0 %v932
    %1682 = vmatprep.subr.bf16.mxu0 %v941
    %1683 = vmatpush1.bf16.msra.mxu0 %v940
    %1684 = vmatprep.subr.bf16.mxu0 %v949
    %1685 = vmatpush1.bf16.msra.mxu0 %v948
    %1686 = vmatprep.subr.bf16.mxu0 %v957
    %1687 = vmatpush1.bf16.msra.mxu0 %v956
    %1688 = vmatprep.subr.bf16.mxu0 %v965
    %1689 = vmatpush1.bf16.msra.mxu0 %v964
    %1690 = vmatprep.subr.bf16.mxu0 %v973
    %1691 = vmatpush1.bf16.msra.mxu0 %v972
    %1692 = vmatprep.subr.bf16.mxu0 %v981
    %1693 = vmatpush1.bf16.msra.mxu0 %v980
    %1694 = vmatprep.subr.bf16.mxu0 %v989
    %1695 = vmatpush1.bf16.msra.mxu0 %v988
    %1696 = vmatprep.subr.bf16.mxu0 %v997
    %1697 = vmatpush1.bf16.msra.mxu0 %v996
    %1698 = vmatprep.subr.bf16.mxu0 %v1005
    %1699 = vmatpush1.bf16.msra.mxu0 %v1004
    %1700 = vmatprep.subr.bf16.mxu0 %v1013
    %1701 = vmatpush1.bf16.msra.mxu0 %v1012
    %1702 = vmatprep.subr.bf16.mxu0 %v1021
    %1703 = vmatpush1.bf16.msra.mxu0 %v1020
    %1704 = vmatprep.mubr.bf16.mxu0 %v1589
    %1705 = vmatmul.mubr.bf16.gmra.mrb[0].mxu0 %v1588
    %v1706 = vpop.f32.mrb[0].mxu0
    %v1707 = vadd.f32 0.0, %v1706
    %v1708 = vpop.f32.mrb[0].mxu0
    %v1709 = vadd.f32 0.0, %v1708
    %v1710 = vpop.f32.mrb[0].mxu0
    %v1711 = vpop.f32.mrb[0].mxu0
    %1712 = vdwg.mxu0
    %1713 = vmatprep.subr.bf16.mxu0 %v903
    %1714 = vmatpush1.bf16.msra.mxu0 %v902
    %1715 = vmatprep.subr.bf16.mxu0 %v911
    %1716 = vmatpush1.bf16.msra.mxu0 %v910
    %1717 = vmatprep.subr.bf16.mxu0 %v919
    %1718 = vmatpush1.bf16.msra.mxu0 %v918
    %1719 = vmatprep.subr.bf16.mxu0 %v927
    %1720 = vmatpush1.bf16.msra.mxu0 %v926
    %1721 = vmatprep.subr.bf16.mxu0 %v935
    %1722 = vmatpush1.bf16.msra.mxu0 %v934
    %1723 = vmatprep.subr.bf16.mxu0 %v943
    %1724 = vmatpush1.bf16.msra.mxu0 %v942
    %1725 = vmatprep.subr.bf16.mxu0 %v951
    %1726 = vmatpush1.bf16.msra.mxu0 %v950
    %1727 = vmatprep.subr.bf16.mxu0 %v959
    %1728 = vmatpush1.bf16.msra.mxu0 %v958
    %1729 = vmatprep.subr.bf16.mxu0 %v967
    %1730 = vmatpush1.bf16.msra.mxu0 %v966
    %1731 = vmatprep.subr.bf16.mxu0 %v975
    %1732 = vmatpush1.bf16.msra.mxu0 %v974
    %1733 = vmatprep.subr.bf16.mxu0 %v983
    %1734 = vmatpush1.bf16.msra.mxu0 %v982
    %1735 = vmatprep.subr.bf16.mxu0 %v991
    %1736 = vmatpush1.bf16.msra.mxu0 %v990
    %1737 = vmatprep.subr.bf16.mxu0 %v999
    %1738 = vmatpush1.bf16.msra.mxu0 %v998
    %1739 = vmatprep.subr.bf16.mxu0 %v1007
    %1740 = vmatpush1.bf16.msra.mxu0 %v1006
    %1741 = vmatprep.subr.bf16.mxu0 %v1015
    %1742 = vmatpush1.bf16.msra.mxu0 %v1014
    %1743 = vmatprep.subr.bf16.mxu0 %v1023
    %1744 = vmatpush1.bf16.msra.mxu0 %v1022
    %1745 = vmatprep.mubr.bf16.mxu0 %v1589
    %1746 = vmatmul.mubr.bf16.gmra.mrb[0].mxu0 %v1588
    %v1747 = vpop.f32.mrb[0].mxu0
    %v1748 = vadd.f32 0.0, %v1747
    %v1749 = vpop.f32.mrb[0].mxu0
    %v1750 = vadd.f32 0.0, %v1749
    %v1751 = vpop.f32.mrb[0].mxu0
    %v1752 = vpop.f32.mrb[0].mxu0
    %1753 = vdwg.mxu0
    %v1754 = vadd.f32 %v1580, %v1625
    %v1755 = vadd.f32 %v1581, %v1627
    %v1756 = vadd.f32 %v1582, %v1666
    %v1757 = vadd.f32 %v1583, %v1668
    %v1758 = vadd.f32 %v1584, %v1707
    %v1759 = vadd.f32 %v1585, %v1709
    %v1760 = vadd.f32 %v1586, %v1748
    %v1761 = vadd.f32 %v1587, %v1750
    %v1762 = vmul.f32 %v1754, 0.5
    %v1763 = vmul.f32 %v1755, 0.5
    %v1764 = vtanh.pop %v1762
    %v1765 = vtanh.pop %v1763
    %v1766 = vadd.f32 %v1764, 1.0
    %v1767 = vadd.f32 %v1765, 1.0
    %v1768 = vmul.f32 %v1766, 0.5
    %v1769 = vmul.f32 %v1767, 0.5
    %v1770 = vmul.f32 %v1756, 0.5
    %v1771 = vmul.f32 %v1757, 0.5
    %v1772 = vtanh.pop %v1770
    %v1773 = vtanh.pop %v1771
    %v1774 = vadd.f32 %v1772, 1.0
    %v1775 = vadd.f32 %v1773, 1.0
    %v1776 = vmul.f32 %v1774, 0.5
    %v1777 = vmul.f32 %v1775, 0.5
    %v1778 = vtanh.pop %v1758
    %v1779 = vtanh.pop %v1759
    %v1780 = vmul.f32 %v1760, 0.5
    %v1781 = vmul.f32 %v1761, 0.5
    %v1782 = vtanh.pop %v1780
    %v1783 = vtanh.pop %v1781
    %v1784 = vadd.f32 %v1782, 1.0
    %v1785 = vadd.f32 %v1783, 1.0
    %v1786 = vmul.f32 %v1784, 0.5
    %v1787 = vmul.f32 %v1785, 0.5
    %v1788 = vmul.f32 %v1776, %v1573
    %v1789 = vmul.f32 %v1777, %v1574
    %v1790 = vmul.f32 %v1768, %v1778
    %v1791 = vmul.f32 %v1769, %v1779
    %v1792 = vadd.f32 %v1788, %v1790
    %v1793 = vadd.f32 %v1789, %v1791
    %v1794 = vtanh.pop %v1792
    %v1795 = vtanh.pop %v1793
    %v1796 = vmul.f32 %v1786, %v1794
    %v1797 = vmul.f32 %v1787, %v1795
    %s1798 = scalar_lea.vmem [#allocation2], 192
    %v1799 = vld [vmem:[%s1798] sm:$0xff]
    %v1800 = vld [vmem:[%s1798 + $0x8] sm:$0xff]
    %v1801 = vld [vmem:[%s1798 + $0x10] sm:$0xff]
    %v1802 = vld [vmem:[%s1798 + $0x18] sm:$0xff]
    %v1803 = vld [vmem:[%s1798 + $0x20] sm:$0xff]
    %v1804 = vld [vmem:[%s1798 + $0x28] sm:$0xff]
    %v1805 = vld [vmem:[%s1798 + $0x30] sm:$0xff]
    %v1806 = vld [vmem:[%s1798 + $0x38] sm:$0xff]
    %v1807 = vpack.c.bf16 %v1796, %v1796
    %v1808 = vpack.c.bf16 %v1797, %v1797
    %1809 = vmatprep.subr.bf16.mxu0 %v897
    %1810 = vmatpush1.bf16.msra.mxu0 %v896
    %1811 = vmatprep.subr.bf16.mxu0 %v905
    %1812 = vmatpush1.bf16.msra.mxu0 %v904
    %1813 = vmatprep.subr.bf16.mxu0 %v913
    %1814 = vmatpush1.bf16.msra.mxu0 %v912
    %1815 = vmatprep.subr.bf16.mxu0 %v921
    %1816 = vmatpush1.bf16.msra.mxu0 %v920
    %1817 = vmatprep.subr.bf16.mxu0 %v929
    %1818 = vmatpush1.bf16.msra.mxu0 %v928
    %1819 = vmatprep.subr.bf16.mxu0 %v937
    %1820 = vmatpush1.bf16.msra.mxu0 %v936
    %1821 = vmatprep.subr.bf16.mxu0 %v945
    %1822 = vmatpush1.bf16.msra.mxu0 %v944
    %1823 = vmatprep.subr.bf16.mxu0 %v953
    %1824 = vmatpush1.bf16.msra.mxu0 %v952
    %1825 = vmatprep.subr.bf16.mxu0 %v961
    %1826 = vmatpush1.bf16.msra.mxu0 %v960
    %1827 = vmatprep.subr.bf16.mxu0 %v969
    %1828 = vmatpush1.bf16.msra.mxu0 %v968
    %1829 = vmatprep.subr.bf16.mxu0 %v977
    %1830 = vmatpush1.bf16.msra.mxu0 %v976
    %1831 = vmatprep.subr.bf16.mxu0 %v985
    %1832 = vmatpush1.bf16.msra.mxu0 %v984
    %1833 = vmatprep.subr.bf16.mxu0 %v993
    %1834 = vmatpush1.bf16.msra.mxu0 %v992
    %1835 = vmatprep.subr.bf16.mxu0 %v1001
    %1836 = vmatpush1.bf16.msra.mxu0 %v1000
    %1837 = vmatprep.subr.bf16.mxu0 %v1009
    %1838 = vmatpush1.bf16.msra.mxu0 %v1008
    %1839 = vmatprep.subr.bf16.mxu0 %v1017
    %1840 = vmatpush1.bf16.msra.mxu0 %v1016
    %1841 = vmatprep.mubr.bf16.mxu0 %v1808
    %1842 = vmatmul.mubr.bf16.gmra.mrb[0].mxu0 %v1807
    %v1843 = vpop.f32.mrb[0].mxu0
    %v1844 = vadd.f32 0.0, %v1843
    %v1845 = vpop.f32.mrb[0].mxu0
    %v1846 = vadd.f32 0.0, %v1845
    %v1847 = vpop.f32.mrb[0].mxu0
    %v1848 = vpop.f32.mrb[0].mxu0
    %1849 = vdwg.mxu0
    %1850 = vmatprep.subr.bf16.mxu0 %v899
    %1851 = vmatpush1.bf16.msra.mxu0 %v898
    %1852 = vmatprep.subr.bf16.mxu0 %v907
    %1853 = vmatpush1.bf16.msra.mxu0 %v906
    %1854 = vmatprep.subr.bf16.mxu0 %v915
    %1855 = vmatpush1.bf16.msra.mxu0 %v914
    %1856 = vmatprep.subr.bf16.mxu0 %v923
    %1857 = vmatpush1.bf16.msra.mxu0 %v922
    %1858 = vmatprep.subr.bf16.mxu0 %v931
    %1859 = vmatpush1.bf16.msra.mxu0 %v930
    %1860 = vmatprep.subr.bf16.mxu0 %v939
    %1861 = vmatpush1.bf16.msra.mxu0 %v938
    %1862 = vmatprep.subr.bf16.mxu0 %v947
    %1863 = vmatpush1.bf16.msra.mxu0 %v946
    %1864 = vmatprep.subr.bf16.mxu0 %v955
    %1865 = vmatpush1.bf16.msra.mxu0 %v954
    %1866 = vmatprep.subr.bf16.mxu0 %v963
    %1867 = vmatpush1.bf16.msra.mxu0 %v962
    %1868 = vmatprep.subr.bf16.mxu0 %v971
    %1869 = vmatpush1.bf16.msra.mxu0 %v970
    %1870 = vmatprep.subr.bf16.mxu0 %v979
    %1871 = vmatpush1.bf16.msra.mxu0 %v978
    %1872 = vmatprep.subr.bf16.mxu0 %v987
    %1873 = vmatpush1.bf16.msra.mxu0 %v986
    %1874 = vmatprep.subr.bf16.mxu0 %v995
    %1875 = vmatpush1.bf16.msra.mxu0 %v994
    %1876 = vmatprep.subr.bf16.mxu0 %v1003
    %1877 = vmatpush1.bf16.msra.mxu0 %v1002
    %1878 = vmatprep.subr.bf16.mxu0 %v1011
    %1879 = vmatpush1.bf16.msra.mxu0 %v1010
    %1880 = vmatprep.subr.bf16.mxu0 %v1019
    %1881 = vmatpush1.bf16.msra.mxu0 %v1018
    %1882 = vmatprep.mubr.bf16.mxu0 %v1808
    %1883 = vmatmul.mubr.bf16.gmra.mrb[0].mxu0 %v1807
    %v1884 = vpop.f32.mrb[0].mxu0
    %v1885 = vadd.f32 0.0, %v1884
    %v1886 = vpop.f32.mrb[0].mxu0
    %v1887 = vadd.f32 0.0, %v1886
    %v1888 = vpop.f32.mrb[0].mxu0
    %v1889 = vpop.f32.mrb[0].mxu0
    %1890 = vdwg.mxu0
    %1891 = vmatprep.subr.bf16.mxu0 %v901
    %1892 = vmatpush1.bf16.msra.mxu0 %v900
    %1893 = vmatprep.subr.bf16.mxu0 %v909
    %1894 = vmatpush1.bf16.msra.mxu0 %v908
    %1895 = vmatprep.subr.bf16.mxu0 %v917
    %1896 = vmatpush1.bf16.msra.mxu0 %v916
    %1897 = vmatprep.subr.bf16.mxu0 %v925
    %1898 = vmatpush1.bf16.msra.mxu0 %v924
    %1899 = vmatprep.subr.bf16.mxu0 %v933
    %1900 = vmatpush1.bf16.msra.mxu0 %v932
    %1901 = vmatprep.subr.bf16.mxu0 %v941
    %1902 = vmatpush1.bf16.msra.mxu0 %v940
    %1903 = vmatprep.subr.bf16.mxu0 %v949
    %1904 = vmatpush1.bf16.msra.mxu0 %v948
    %1905 = vmatprep.subr.bf16.mxu0 %v957
    %1906 = vmatpush1.bf16.msra.mxu0 %v956
    %1907 = vmatprep.subr.bf16.mxu0 %v965
    %1908 = vmatpush1.bf16.msra.mxu0 %v964
    %1909 = vmatprep.subr.bf16.mxu0 %v973
    %1910 = vmatpush1.bf16.msra.mxu0 %v972
    %1911 = vmatprep.subr.bf16.mxu0 %v981
    %1912 = vmatpush1.bf16.msra.mxu0 %v980
    %1913 = vmatprep.subr.bf16.mxu0 %v989
    %1914 = vmatpush1.bf16.msra.mxu0 %v988
    %1915 = vmatprep.subr.bf16.mxu0 %v997
    %1916 = vmatpush1.bf16.msra.mxu0 %v996
    %1917 = vmatprep.subr.bf16.mxu0 %v1005
    %1918 = vmatpush1.bf16.msra.mxu0 %v1004
    %1919 = vmatprep.subr.bf16.mxu0 %v1013
    %1920 = vmatpush1.bf16.msra.mxu0 %v1012
    %1921 = vmatprep.subr.bf16.mxu0 %v1021
    %1922 = vmatpush1.bf16.msra.mxu0 %v1020
    %1923 = vmatprep.mubr.bf16.mxu0 %v1808
    %1924 = vmatmul.mubr.bf16.gmra.mrb[0].mxu0 %v1807
    %v1925 = vpop.f32.mrb[0].mxu0
    %v1926 = vadd.f32 0.0, %v1925
    %v1927 = vpop.f32.mrb[0].mxu0
    %v1928 = vadd.f32 0.0, %v1927
    %v1929 = vpop.f32.mrb[0].mxu0
    %v1930 = vpop.f32.mrb[0].mxu0
    %1931 = vdwg.mxu0
    %1932 = vmatprep.subr.bf16.mxu0 %v903
    %1933 = vmatpush1.bf16.msra.mxu0 %v902
    %1934 = vmatprep.subr.bf16.mxu0 %v911
    %1935 = vmatpush1.bf16.msra.mxu0 %v910
    %1936 = vmatprep.subr.bf16.mxu0 %v919
    %1937 = vmatpush1.bf16.msra.mxu0 %v918
    %1938 = vmatprep.subr.bf16.mxu0 %v927
    %1939 = vmatpush1.bf16.msra.mxu0 %v926
    %1940 = vmatprep.subr.bf16.mxu0 %v935
    %1941 = vmatpush1.bf16.msra.mxu0 %v934
    %1942 = vmatprep.subr.bf16.mxu0 %v943
    %1943 = vmatpush1.bf16.msra.mxu0 %v942
    %1944 = vmatprep.subr.bf16.mxu0 %v951
    %1945 = vmatpush1.bf16.msra.mxu0 %v950
    %1946 = vmatprep.subr.bf16.mxu0 %v959
    %1947 = vmatpush1.bf16.msra.mxu0 %v958
    %1948 = vmatprep.subr.bf16.mxu0 %v967
    %1949 = vmatpush1.bf16.msra.mxu0 %v966
    %1950 = vmatprep.subr.bf16.mxu0 %v975
    %1951 = vmatpush1.bf16.msra.mxu0 %v974
    %1952 = vmatprep.subr.bf16.mxu0 %v983
    %1953 = vmatpush1.bf16.msra.mxu0 %v982
    %1954 = vmatprep.subr.bf16.mxu0 %v991
    %1955 = vmatpush1.bf16.msra.mxu0 %v990
    %1956 = vmatprep.subr.bf16.mxu0 %v999
    %1957 = vmatpush1.bf16.msra.mxu0 %v998
    %1958 = vmatprep.subr.bf16.mxu0 %v1007
    %1959 = vmatpush1.bf16.msra.mxu0 %v1006
    %1960 = vmatprep.subr.bf16.mxu0 %v1015
    %1961 = vmatpush1.bf16.msra.mxu0 %v1014
    %1962 = vmatprep.subr.bf16.mxu0 %v1023
    %1963 = vmatpush1.bf16.msra.mxu0 %v1022
    %1964 = vmatprep.mubr.bf16.mxu0 %v1808
    %1965 = vmatmul.mubr.bf16.gmra.mrb[0].mxu0 %v1807
    %v1966 = vpop.f32.mrb[0].mxu0
    %v1967 = vadd.f32 0.0, %v1966
    %v1968 = vpop.f32.mrb[0].mxu0
    %v1969 = vadd.f32 0.0, %v1968
    %v1970 = vpop.f32.mrb[0].mxu0
    %v1971 = vpop.f32.mrb[0].mxu0
    %1972 = vdwg.mxu0
    %v1973 = vadd.f32 %v1799, %v1844
    %v1974 = vadd.f32 %v1800, %v1846
    %v1975 = vadd.f32 %v1801, %v1885
    %v1976 = vadd.f32 %v1802, %v1887
    %v1977 = vadd.f32 %v1803, %v1926
    %v1978 = vadd.f32 %v1804, %v1928
    %v1979 = vadd.f32 %v1805, %v1967
    %v1980 = vadd.f32 %v1806, %v1969
    %v1981 = vmul.f32 %v1973, 0.5
    %v1982 = vmul.f32 %v1974, 0.5
    %v1983 = vtanh.pop %v1981
    %v1984 = vtanh.pop %v1982
    %v1985 = vadd.f32 %v1983, 1.0
    %v1986 = vadd.f32 %v1984, 1.0
    %v1987 = vmul.f32 %v1985, 0.5
    %v1988 = vmul.f32 %v1986, 0.5
    %v1989 = vmul.f32 %v1975, 0.5
    %v1990 = vmul.f32 %v1976, 0.5
    %v1991 = vtanh.pop %v1989
    %v1992 = vtanh.pop %v1990
    %v1993 = vadd.f32 %v1991, 1.0
    %v1994 = vadd.f32 %v1992, 1.0
    %v1995 = vmul.f32 %v1993, 0.5
    %v1996 = vmul.f32 %v1994, 0.5
    %v1997 = vtanh.pop %v1977
    %v1998 = vtanh.pop %v1978
    %v1999 = vmul.f32 %v1979, 0.5
    %v2000 = vmul.f32 %v1980, 0.5
    %v2001 = vtanh.pop %v1999
    %v2002 = vtanh.pop %v2000
    %v2003 = vadd.f32 %v2001, 1.0
    %v2004 = vadd.f32 %v2002, 1.0
    %v2005 = vmul.f32 %v2003, 0.5
    %v2006 = vmul.f32 %v2004, 0.5
    %v2007 = vmul.f32 %v1995, %v1792
    %v2008 = vmul.f32 %v1996, %v1793
    %v2009 = vmul.f32 %v1987, %v1997
    %v2010 = vmul.f32 %v1988, %v1998
    %v2011 = vadd.f32 %v2007, %v2009
    %v2012 = vadd.f32 %v2008, %v2010
    %v2013 = vtanh.pop %v2011
    %v2014 = vtanh.pop %v2012
    %v2015 = vmul.f32 %v2005, %v2013
    %v2016 = vmul.f32 %v2006, %v2014
    %s2017 = scalar_lea.vmem [#allocation2], 256
    %v2018 = vld [vmem:[%s2017] sm:$0xff]
    %v2019 = vld [vmem:[%s2017 + $0x8] sm:$0xff]
    %v2020 = vld [vmem:[%s2017 + $0x10] sm:$0xff]
    %v2021 = vld [vmem:[%s2017 + $0x18] sm:$0xff]
    %v2022 = vld [vmem:[%s2017 + $0x20] sm:$0xff]
    %v2023 = vld [vmem:[%s2017 + $0x28] sm:$0xff]
    %v2024 = vld [vmem:[%s2017 + $0x30] sm:$0xff]
    %v2025 = vld [vmem:[%s2017 + $0x38] sm:$0xff]
    %v2026 = vpack.c.bf16 %v2015, %v2015
    %v2027 = vpack.c.bf16 %v2016, %v2016
    %2028 = vmatprep.subr.bf16.mxu0 %v897
    %2029 = vmatpush1.bf16.msra.mxu0 %v896
    %2030 = vmatprep.subr.bf16.mxu0 %v905
    %2031 = vmatpush1.bf16.msra.mxu0 %v904
    %2032 = vmatprep.subr.bf16.mxu0 %v913
    %2033 = vmatpush1.bf16.msra.mxu0 %v912
    %2034 = vmatprep.subr.bf16.mxu0 %v921
    %2035 = vmatpush1.bf16.msra.mxu0 %v920
    %2036 = vmatprep.subr.bf16.mxu0 %v929
    %2037 = vmatpush1.bf16.msra.mxu0 %v928
    %2038 = vmatprep.subr.bf16.mxu0 %v937
    %2039 = vmatpush1.bf16.msra.mxu0 %v936
    %2040 = vmatprep.subr.bf16.mxu0 %v945
    %2041 = vmatpush1.bf16.msra.mxu0 %v944
    %2042 = vmatprep.subr.bf16.mxu0 %v953
    %2043 = vmatpush1.bf16.msra.mxu0 %v952
    %2044 = vmatprep.subr.bf16.mxu0 %v961
    %2045 = vmatpush1.bf16.msra.mxu0 %v960
    %2046 = vmatprep.subr.bf16.mxu0 %v969
    %2047 = vmatpush1.bf16.msra.mxu0 %v968
    %2048 = vmatprep.subr.bf16.mxu0 %v977
    %2049 = vmatpush1.bf16.msra.mxu0 %v976
    %2050 = vmatprep.subr.bf16.mxu0 %v985
    %2051 = vmatpush1.bf16.msra.mxu0 %v984
    %2052 = vmatprep.subr.bf16.mxu0 %v993
    %2053 = vmatpush1.bf16.msra.mxu0 %v992
    %2054 = vmatprep.subr.bf16.mxu0 %v1001
    %2055 = vmatpush1.bf16.msra.mxu0 %v1000
    %2056 = vmatprep.subr.bf16.mxu0 %v1009
    %2057 = vmatpush1.bf16.msra.mxu0 %v1008
    %2058 = vmatprep.subr.bf16.mxu0 %v1017
    %2059 = vmatpush1.bf16.msra.mxu0 %v1016
    %2060 = vmatprep.mubr.bf16.mxu0 %v2027
    %2061 = vmatmul.mubr.bf16.gmra.mrb[0].mxu0 %v2026
    %v2062 = vpop.f32.mrb[0].mxu0
    %v2063 = vadd.f32 0.0, %v2062
    %v2064 = vpop.f32.mrb[0].mxu0
    %v2065 = vadd.f32 0.0, %v2064
    %v2066 = vpop.f32.mrb[0].mxu0
    %v2067 = vpop.f32.mrb[0].mxu0
    %2068 = vdwg.mxu0
    %2069 = vmatprep.subr.bf16.mxu0 %v899
    %2070 = vmatpush1.bf16.msra.mxu0 %v898
    %2071 = vmatprep.subr.bf16.mxu0 %v907
    %2072 = vmatpush1.bf16.msra.mxu0 %v906
    %2073 = vmatprep.subr.bf16.mxu0 %v915
    %2074 = vmatpush1.bf16.msra.mxu0 %v914
    %2075 = vmatprep.subr.bf16.mxu0 %v923
    %2076 = vmatpush1.bf16.msra.mxu0 %v922
    %2077 = vmatprep.subr.bf16.mxu0 %v931
    %2078 = vmatpush1.bf16.msra.mxu0 %v930
    %2079 = vmatprep.subr.bf16.mxu0 %v939
    %2080 = vmatpush1.bf16.msra.mxu0 %v938
    %2081 = vmatprep.subr.bf16.mxu0 %v947
    %2082 = vmatpush1.bf16.msra.mxu0 %v946
    %2083 = vmatprep.subr.bf16.mxu0 %v955
    %2084 = vmatpush1.bf16.msra.mxu0 %v954
    %2085 = vmatprep.subr.bf16.mxu0 %v963
    %2086 = vmatpush1.bf16.msra.mxu0 %v962
    %2087 = vmatprep.subr.bf16.mxu0 %v971
    %2088 = vmatpush1.bf16.msra.mxu0 %v970
    %2089 = vmatprep.subr.bf16.mxu0 %v979
    %2090 = vmatpush1.bf16.msra.mxu0 %v978
    %2091 = vmatprep.subr.bf16.mxu0 %v987
    %2092 = vmatpush1.bf16.msra.mxu0 %v986
    %2093 = vmatprep.subr.bf16.mxu0 %v995
    %2094 = vmatpush1.bf16.msra.mxu0 %v994
    %2095 = vmatprep.subr.bf16.mxu0 %v1003
    %2096 = vmatpush1.bf16.msra.mxu0 %v1002
    %2097 = vmatprep.subr.bf16.mxu0 %v1011
    %2098 = vmatpush1.bf16.msra.mxu0 %v1010
    %2099 = vmatprep.subr.bf16.mxu0 %v1019
    %2100 = vmatpush1.bf16.msra.mxu0 %v1018
    %2101 = vmatprep.mubr.bf16.mxu0 %v2027
    %2102 = vmatmul.mubr.bf16.gmra.mrb[0].mxu0 %v2026
    %v2103 = vpop.f32.mrb[0].mxu0
    %v2104 = vadd.f32 0.0, %v2103
    %v2105 = vpop.f32.mrb[0].mxu0
    %v2106 = vadd.f32 0.0, %v2105
    %v2107 = vpop.f32.mrb[0].mxu0
    %v2108 = vpop.f32.mrb[0].mxu0
    %2109 = vdwg.mxu0
    %2110 = vmatprep.subr.bf16.mxu0 %v901
    %2111 = vmatpush1.bf16.msra.mxu0 %v900
    %2112 = vmatprep.subr.bf16.mxu0 %v909
    %2113 = vmatpush1.bf16.msra.mxu0 %v908
    %2114 = vmatprep.subr.bf16.mxu0 %v917
    %2115 = vmatpush1.bf16.msra.mxu0 %v916
    %2116 = vmatprep.subr.bf16.mxu0 %v925
    %2117 = vmatpush1.bf16.msra.mxu0 %v924
    %2118 = vmatprep.subr.bf16.mxu0 %v933
    %2119 = vmatpush1.bf16.msra.mxu0 %v932
    %2120 = vmatprep.subr.bf16.mxu0 %v941
    %2121 = vmatpush1.bf16.msra.mxu0 %v940
    %2122 = vmatprep.subr.bf16.mxu0 %v949
    %2123 = vmatpush1.bf16.msra.mxu0 %v948
    %2124 = vmatprep.subr.bf16.mxu0 %v957
    %2125 = vmatpush1.bf16.msra.mxu0 %v956
    %2126 = vmatprep.subr.bf16.mxu0 %v965
    %2127 = vmatpush1.bf16.msra.mxu0 %v964
    %2128 = vmatprep.subr.bf16.mxu0 %v973
    %2129 = vmatpush1.bf16.msra.mxu0 %v972
    %2130 = vmatprep.subr.bf16.mxu0 %v981
    %2131 = vmatpush1.bf16.msra.mxu0 %v980
    %2132 = vmatprep.subr.bf16.mxu0 %v989
    %2133 = vmatpush1.bf16.msra.mxu0 %v988
    %2134 = vmatprep.subr.bf16.mxu0 %v997
    %2135 = vmatpush1.bf16.msra.mxu0 %v996
    %2136 = vmatprep.subr.bf16.mxu0 %v1005
    %2137 = vmatpush1.bf16.msra.mxu0 %v1004
    %2138 = vmatprep.subr.bf16.mxu0 %v1013
    %2139 = vmatpush1.bf16.msra.mxu0 %v1012
    %2140 = vmatprep.subr.bf16.mxu0 %v1021
    %2141 = vmatpush1.bf16.msra.mxu0 %v1020
    %2142 = vmatprep.mubr.bf16.mxu0 %v2027
    %2143 = vmatmul.mubr.bf16.gmra.mrb[0].mxu0 %v2026
    %v2144 = vpop.f32.mrb[0].mxu0
    %v2145 = vadd.f32 0.0, %v2144
    %v2146 = vpop.f32.mrb[0].mxu0
    %v2147 = vadd.f32 0.0, %v2146
    %v2148 = vpop.f32.mrb[0].mxu0
    %v2149 = vpop.f32.mrb[0].mxu0
    %2150 = vdwg.mxu0
    %2151 = vmatprep.subr.bf16.mxu0 %v903
    %2152 = vmatpush1.bf16.msra.mxu0 %v902
    %2153 = vmatprep.subr.bf16.mxu0 %v911
    %2154 = vmatpush1.bf16.msra.mxu0 %v910
    %2155 = vmatprep.subr.bf16.mxu0 %v919
    %2156 = vmatpush1.bf16.msra.mxu0 %v918
    %2157 = vmatprep.subr.bf16.mxu0 %v927
    %2158 = vmatpush1.bf16.msra.mxu0 %v926
    %2159 = vmatprep.subr.bf16.mxu0 %v935
    %2160 = vmatpush1.bf16.msra.mxu0 %v934
    %2161 = vmatprep.subr.bf16.mxu0 %v943
    %2162 = vmatpush1.bf16.msra.mxu0 %v942
    %2163 = vmatprep.subr.bf16.mxu0 %v951
    %2164 = vmatpush1.bf16.msra.mxu0 %v950
    %2165 = vmatprep.subr.bf16.mxu0 %v959
    %2166 = vmatpush1.bf16.msra.mxu0 %v958
    %2167 = vmatprep.subr.bf16.mxu0 %v967
    %2168 = vmatpush1.bf16.msra.mxu0 %v966
    %2169 = vmatprep.subr.bf16.mxu0 %v975
    %2170 = vmatpush1.bf16.msra.mxu0 %v974
    %2171 = vmatprep.subr.bf16.mxu0 %v983
    %2172 = vmatpush1.bf16.msra.mxu0 %v982
    %2173 = vmatprep.subr.bf16.mxu0 %v991
    %2174 = vmatpush1.bf16.msra.mxu0 %v990
    %2175 = vmatprep.subr.bf16.mxu0 %v999
    %2176 = vmatpush1.bf16.msra.mxu0 %v998
    %2177 = vmatprep.subr.bf16.mxu0 %v1007
    %2178 = vmatpush1.bf16.msra.mxu0 %v1006
    %2179 = vmatprep.subr.bf16.mxu0 %v1015
    %2180 = vmatpush1.bf16.msra.mxu0 %v1014
    %2181 = vmatprep.subr.bf16.mxu0 %v1023
    %2182 = vmatpush1.bf16.msra.mxu0 %v1022
    %2183 = vmatprep.mubr.bf16.mxu0 %v2027
    %2184 = vmatmul.mubr.bf16.gmra.mrb[0].mxu0 %v2026
    %v2185 = vpop.f32.mrb[0].mxu0
    %v2186 = vadd.f32 0.0, %v2185
    %v2187 = vpop.f32.mrb[0].mxu0
    %v2188 = vadd.f32 0.0, %v2187
    %v2189 = vpop.f32.mrb[0].mxu0
    %v2190 = vpop.f32.mrb[0].mxu0
    %2191 = vdwg.mxu0
    %v2192 = vadd.f32 %v2018, %v2063
    %v2193 = vadd.f32 %v2019, %v2065
    %v2194 = vadd.f32 %v2020, %v2104
    %v2195 = vadd.f32 %v2021, %v2106
    %v2196 = vadd.f32 %v2022, %v2145
    %v2197 = vadd.f32 %v2023, %v2147
    %v2198 = vadd.f32 %v2024, %v2186
    %v2199 = vadd.f32 %v2025, %v2188
    %v2200 = vmul.f32 %v2192, 0.5
    %v2201 = vmul.f32 %v2193, 0.5
    %v2202 = vtanh.pop %v2200
    %v2203 = vtanh.pop %v2201
    %v2204 = vadd.f32 %v2202, 1.0
    %v2205 = vadd.f32 %v2203, 1.0
    %v2206 = vmul.f32 %v2204, 0.5
    %v2207 = vmul.f32 %v2205, 0.5
    %v2208 = vmul.f32 %v2194, 0.5
    %v2209 = vmul.f32 %v2195, 0.5
    %v2210 = vtanh.pop %v2208
    %v2211 = vtanh.pop %v2209
    %v2212 = vadd.f32 %v2210, 1.0
    %v2213 = vadd.f32 %v2211, 1.0
    %v2214 = vmul.f32 %v2212, 0.5
    %v2215 = vmul.f32 %v2213, 0.5
    %v2216 = vtanh.pop %v2196
    %v2217 = vtanh.pop %v2197
    %v2218 = vmul.f32 %v2198, 0.5
    %v2219 = vmul.f32 %v2199, 0.5
    %v2220 = vtanh.pop %v2218
    %v2221 = vtanh.pop %v2219
    %v2222 = vadd.f32 %v2220, 1.0
    %v2223 = vadd.f32 %v2221, 1.0
    %v2224 = vmul.f32 %v2222, 0.5
    %v2225 = vmul.f32 %v2223, 0.5
    %v2226 = vmul.f32 %v2214, %v2011
    %v2227 = vmul.f32 %v2215, %v2012
    %v2228 = vmul.f32 %v2206, %v2216
    %v2229 = vmul.f32 %v2207, %v2217
    %v2230 = vadd.f32 %v2226, %v2228
    %v2231 = vadd.f32 %v2227, %v2229
    %v2232 = vtanh.pop %v2230
    %v2233 = vtanh.pop %v2231
    %v2234 = vmul.f32 %v2224, %v2232
    %v2235 = vmul.f32 %v2225, %v2233
    %s2236 = scalar_lea.vmem [#allocation2], 320
    %v2237 = vld [vmem:[%s2236] sm:$0xff]
    %v2238 = vld [vmem:[%s2236 + $0x8] sm:$0xff]
    %v2239 = vld [vmem:[%s2236 + $0x10] sm:$0xff]
    %v2240 = vld [vmem:[%s2236 + $0x18] sm:$0xff]
    %v2241 = vld [vmem:[%s2236 + $0x20] sm:$0xff]
    %v2242 = vld [vmem:[%s2236 + $0x28] sm:$0xff]
    %v2243 = vld [vmem:[%s2236 + $0x30] sm:$0xff]
    %v2244 = vld [vmem:[%s2236 + $0x38] sm:$0xff]
    %v2245 = vpack.c.bf16 %v2234, %v2234
    %v2246 = vpack.c.bf16 %v2235, %v2235
    %2247 = vmatprep.subr.bf16.mxu0 %v897
    %2248 = vmatpush1.bf16.msra.mxu0 %v896
    %2249 = vmatprep.subr.bf16.mxu0 %v905
    %2250 = vmatpush1.bf16.msra.mxu0 %v904
    %2251 = vmatprep.subr.bf16.mxu0 %v913
    %2252 = vmatpush1.bf16.msra.mxu0 %v912
    %2253 = vmatprep.subr.bf16.mxu0 %v921
    %2254 = vmatpush1.bf16.msra.mxu0 %v920
    %2255 = vmatprep.subr.bf16.mxu0 %v929
    %2256 = vmatpush1.bf16.msra.mxu0 %v928
    %2257 = vmatprep.subr.bf16.mxu0 %v937
    %2258 = vmatpush1.bf16.msra.mxu0 %v936
    %2259 = vmatprep.subr.bf16.mxu0 %v945
    %2260 = vmatpush1.bf16.msra.mxu0 %v944
    %2261 = vmatprep.subr.bf16.mxu0 %v953
    %2262 = vmatpush1.bf16.msra.mxu0 %v952
    %2263 = vmatprep.subr.bf16.mxu0 %v961
    %2264 = vmatpush1.bf16.msra.mxu0 %v960
    %2265 = vmatprep.subr.bf16.mxu0 %v969
    %2266 = vmatpush1.bf16.msra.mxu0 %v968
    %2267 = vmatprep.subr.bf16.mxu0 %v977
    %2268 = vmatpush1.bf16.msra.mxu0 %v976
    %2269 = vmatprep.subr.bf16.mxu0 %v985
    %2270 = vmatpush1.bf16.msra.mxu0 %v984
    %2271 = vmatprep.subr.bf16.mxu0 %v993
    %2272 = vmatpush1.bf16.msra.mxu0 %v992
    %2273 = vmatprep.subr.bf16.mxu0 %v1001
    %2274 = vmatpush1.bf16.msra.mxu0 %v1000
    %2275 = vmatprep.subr.bf16.mxu0 %v1009
    %2276 = vmatpush1.bf16.msra.mxu0 %v1008
    %2277 = vmatprep.subr.bf16.mxu0 %v1017
    %2278 = vmatpush1.bf16.msra.mxu0 %v1016
    %2279 = vmatprep.mubr.bf16.mxu0 %v2246
    %2280 = vmatmul.mubr.bf16.gmra.mrb[0].mxu0 %v2245
    %v2281 = vpop.f32.mrb[0].mxu0
    %v2282 = vadd.f32 0.0, %v2281
    %v2283 = vpop.f32.mrb[0].mxu0
    %v2284 = vadd.f32 0.0, %v2283
    %v2285 = vpop.f32.mrb[0].mxu0
    %v2286 = vpop.f32.mrb[0].mxu0
    %2287 = vdwg.mxu0
    %2288 = vmatprep.subr.bf16.mxu0 %v899
    %2289 = vmatpush1.bf16.msra.mxu0 %v898
    %2290 = vmatprep.subr.bf16.mxu0 %v907
    %2291 = vmatpush1.bf16.msra.mxu0 %v906
    %2292 = vmatprep.subr.bf16.mxu0 %v915
    %2293 = vmatpush1.bf16.msra.mxu0 %v914
    %2294 = vmatprep.subr.bf16.mxu0 %v923
    %2295 = vmatpush1.bf16.msra.mxu0 %v922
    %2296 = vmatprep.subr.bf16.mxu0 %v931
    %2297 = vmatpush1.bf16.msra.mxu0 %v930
    %2298 = vmatprep.subr.bf16.mxu0 %v939
    %2299 = vmatpush1.bf16.msra.mxu0 %v938
    %2300 = vmatprep.subr.bf16.mxu0 %v947
    %2301 = vmatpush1.bf16.msra.mxu0 %v946
    %2302 = vmatprep.subr.bf16.mxu0 %v955
    %2303 = vmatpush1.bf16.msra.mxu0 %v954
    %2304 = vmatprep.subr.bf16.mxu0 %v963
    %2305 = vmatpush1.bf16.msra.mxu0 %v962
    %2306 = vmatprep.subr.bf16.mxu0 %v971
    %2307 = vmatpush1.bf16.msra.mxu0 %v970
    %2308 = vmatprep.subr.bf16.mxu0 %v979
    %2309 = vmatpush1.bf16.msra.mxu0 %v978
    %2310 = vmatprep.subr.bf16.mxu0 %v987
    %2311 = vmatpush1.bf16.msra.mxu0 %v986
    %2312 = vmatprep.subr.bf16.mxu0 %v995
    %2313 = vmatpush1.bf16.msra.mxu0 %v994
    %2314 = vmatprep.subr.bf16.mxu0 %v1003
    %2315 = vmatpush1.bf16.msra.mxu0 %v1002
    %2316 = vmatprep.subr.bf16.mxu0 %v1011
    %2317 = vmatpush1.bf16.msra.mxu0 %v1010
    %2318 = vmatprep.subr.bf16.mxu0 %v1019
    %2319 = vmatpush1.bf16.msra.mxu0 %v1018
    %2320 = vmatprep.mubr.bf16.mxu0 %v2246
    %2321 = vmatmul.mubr.bf16.gmra.mrb[0].mxu0 %v2245
    %v2322 = vpop.f32.mrb[0].mxu0
    %v2323 = vadd.f32 0.0, %v2322
    %v2324 = vpop.f32.mrb[0].mxu0
    %v2325 = vadd.f32 0.0, %v2324
    %v2326 = vpop.f32.mrb[0].mxu0
    %v2327 = vpop.f32.mrb[0].mxu0
    %2328 = vdwg.mxu0
    %2329 = vmatprep.subr.bf16.mxu0 %v901
    %2330 = vmatpush1.bf16.msra.mxu0 %v900
    %2331 = vmatprep.subr.bf16.mxu0 %v909
    %2332 = vmatpush1.bf16.msra.mxu0 %v908
    %2333 = vmatprep.subr.bf16.mxu0 %v917
    %2334 = vmatpush1.bf16.msra.mxu0 %v916
    %2335 = vmatprep.subr.bf16.mxu0 %v925
    %2336 = vmatpush1.bf16.msra.mxu0 %v924
    %2337 = vmatprep.subr.bf16.mxu0 %v933
    %2338 = vmatpush1.bf16.msra.mxu0 %v932
    %2339 = vmatprep.subr.bf16.mxu0 %v941
    %2340 = vmatpush1.bf16.msra.mxu0 %v940
    %2341 = vmatprep.subr.bf16.mxu0 %v949
    %2342 = vmatpush1.bf16.msra.mxu0 %v948
    %2343 = vmatprep.subr.bf16.mxu0 %v957
    %2344 = vmatpush1.bf16.msra.mxu0 %v956
    %2345 = vmatprep.subr.bf16.mxu0 %v965
    %2346 = vmatpush1.bf16.msra.mxu0 %v964
    %2347 = vmatprep.subr.bf16.mxu0 %v973
    %2348 = vmatpush1.bf16.msra.mxu0 %v972
    %2349 = vmatprep.subr.bf16.mxu0 %v981
    %2350 = vmatpush1.bf16.msra.mxu0 %v980
    %2351 = vmatprep.subr.bf16.mxu0 %v989
    %2352 = vmatpush1.bf16.msra.mxu0 %v988
    %2353 = vmatprep.subr.bf16.mxu0 %v997
    %2354 = vmatpush1.bf16.msra.mxu0 %v996
    %2355 = vmatprep.subr.bf16.mxu0 %v1005
    %2356 = vmatpush1.bf16.msra.mxu0 %v1004
    %2357 = vmatprep.subr.bf16.mxu0 %v1013
    %2358 = vmatpush1.bf16.msra.mxu0 %v1012
    %2359 = vmatprep.subr.bf16.mxu0 %v1021
    %2360 = vmatpush1.bf16.msra.mxu0 %v1020
    %2361 = vmatprep.mubr.bf16.mxu0 %v2246
    %2362 = vmatmul.mubr.bf16.gmra.mrb[0].mxu0 %v2245
    %v2363 = vpop.f32.mrb[0].mxu0
    %v2364 = vadd.f32 0.0, %v2363
    %v2365 = vpop.f32.mrb[0].mxu0
    %v2366 = vadd.f32 0.0, %v2365
    %v2367 = vpop.f32.mrb[0].mxu0
    %v2368 = vpop.f32.mrb[0].mxu0
    %2369 = vdwg.mxu0
    %2370 = vmatprep.subr.bf16.mxu0 %v903
    %2371 = vmatpush1.bf16.msra.mxu0 %v902
    %2372 = vmatprep.subr.bf16.mxu0 %v911
    %2373 = vmatpush1.bf16.msra.mxu0 %v910
    %2374 = vmatprep.subr.bf16.mxu0 %v919
    %2375 = vmatpush1.bf16.msra.mxu0 %v918
    %2376 = vmatprep.subr.bf16.mxu0 %v927
    %2377 = vmatpush1.bf16.msra.mxu0 %v926
    %2378 = vmatprep.subr.bf16.mxu0 %v935
    %2379 = vmatpush1.bf16.msra.mxu0 %v934
    %2380 = vmatprep.subr.bf16.mxu0 %v943
    %2381 = vmatpush1.bf16.msra.mxu0 %v942
    %2382 = vmatprep.subr.bf16.mxu0 %v951
    %2383 = vmatpush1.bf16.msra.mxu0 %v950
    %2384 = vmatprep.subr.bf16.mxu0 %v959
    %2385 = vmatpush1.bf16.msra.mxu0 %v958
    %2386 = vmatprep.subr.bf16.mxu0 %v967
    %2387 = vmatpush1.bf16.msra.mxu0 %v966
    %2388 = vmatprep.subr.bf16.mxu0 %v975
    %2389 = vmatpush1.bf16.msra.mxu0 %v974
    %2390 = vmatprep.subr.bf16.mxu0 %v983
    %2391 = vmatpush1.bf16.msra.mxu0 %v982
    %2392 = vmatprep.subr.bf16.mxu0 %v991
    %2393 = vmatpush1.bf16.msra.mxu0 %v990
    %2394 = vmatprep.subr.bf16.mxu0 %v999
    %2395 = vmatpush1.bf16.msra.mxu0 %v998
    %2396 = vmatprep.subr.bf16.mxu0 %v1007
    %2397 = vmatpush1.bf16.msra.mxu0 %v1006
    %2398 = vmatprep.subr.bf16.mxu0 %v1015
    %2399 = vmatpush1.bf16.msra.mxu0 %v1014
    %2400 = vmatprep.subr.bf16.mxu0 %v1023
    %2401 = vmatpush1.bf16.msra.mxu0 %v1022
    %2402 = vmatprep.mubr.bf16.mxu0 %v2246
    %2403 = vmatmul.mubr.bf16.gmra.mrb[0].mxu0 %v2245
    %v2404 = vpop.f32.mrb[0].mxu0
    %v2405 = vadd.f32 0.0, %v2404
    %v2406 = vpop.f32.mrb[0].mxu0
    %v2407 = vadd.f32 0.0, %v2406
    %v2408 = vpop.f32.mrb[0].mxu0
    %v2409 = vpop.f32.mrb[0].mxu0
    %2410 = vdwg.mxu0
    %v2411 = vadd.f32 %v2237, %v2282
    %v2412 = vadd.f32 %v2238, %v2284
    %v2413 = vadd.f32 %v2239, %v2323
    %v2414 = vadd.f32 %v2240, %v2325
    %v2415 = vadd.f32 %v2241, %v2364
    %v2416 = vadd.f32 %v2242, %v2366
    %v2417 = vadd.f32 %v2243, %v2405
    %v2418 = vadd.f32 %v2244, %v2407
    %v2419 = vmul.f32 %v2411, 0.5
    %v2420 = vmul.f32 %v2412, 0.5
    %v2421 = vtanh.pop %v2419
    %v2422 = vtanh.pop %v2420
    %v2423 = vadd.f32 %v2421, 1.0
    %v2424 = vadd.f32 %v2422, 1.0
    %v2425 = vmul.f32 %v2423, 0.5
    %v2426 = vmul.f32 %v2424, 0.5
    %v2427 = vmul.f32 %v2413, 0.5
    %v2428 = vmul.f32 %v2414, 0.5
    %v2429 = vtanh.pop %v2427
    %v2430 = vtanh.pop %v2428
    %v2431 = vadd.f32 %v2429, 1.0
    %v2432 = vadd.f32 %v2430, 1.0
    %v2433 = vmul.f32 %v2431, 0.5
    %v2434 = vmul.f32 %v2432, 0.5
    %v2435 = vtanh.pop %v2415
    %v2436 = vtanh.pop %v2416
    %v2437 = vmul.f32 %v2417, 0.5
    %v2438 = vmul.f32 %v2418, 0.5
    %v2439 = vtanh.pop %v2437
    %v2440 = vtanh.pop %v2438
    %v2441 = vadd.f32 %v2439, 1.0
    %v2442 = vadd.f32 %v2440, 1.0
    %v2443 = vmul.f32 %v2441, 0.5
    %v2444 = vmul.f32 %v2442, 0.5
    %v2445 = vmul.f32 %v2433, %v2230
    %v2446 = vmul.f32 %v2434, %v2231
    %v2447 = vmul.f32 %v2425, %v2435
    %v2448 = vmul.f32 %v2426, %v2436
    %v2449 = vadd.f32 %v2445, %v2447
    %v2450 = vadd.f32 %v2446, %v2448
    %v2451 = vtanh.pop %v2449
    %v2452 = vtanh.pop %v2450
    %v2453 = vmul.f32 %v2443, %v2451
    %v2454 = vmul.f32 %v2444, %v2452
    %s2455 = scalar_lea.vmem [#allocation2], 384
    %v2456 = vld [vmem:[%s2455] sm:$0xff]
    %v2457 = vld [vmem:[%s2455 + $0x8] sm:$0xff]
    %v2458 = vld [vmem:[%s2455 + $0x10] sm:$0xff]
    %v2459 = vld [vmem:[%s2455 + $0x18] sm:$0xff]
    %v2460 = vld [vmem:[%s2455 + $0x20] sm:$0xff]
    %v2461 = vld [vmem:[%s2455 + $0x28] sm:$0xff]
    %v2462 = vld [vmem:[%s2455 + $0x30] sm:$0xff]
    %v2463 = vld [vmem:[%s2455 + $0x38] sm:$0xff]
    %v2464 = vpack.c.bf16 %v2453, %v2453
    %v2465 = vpack.c.bf16 %v2454, %v2454
    %2466 = vmatprep.subr.bf16.mxu0 %v897
    %2467 = vmatpush1.bf16.msra.mxu0 %v896
    %2468 = vmatprep.subr.bf16.mxu0 %v905
    %2469 = vmatpush1.bf16.msra.mxu0 %v904
    %2470 = vmatprep.subr.bf16.mxu0 %v913
    %2471 = vmatpush1.bf16.msra.mxu0 %v912
    %2472 = vmatprep.subr.bf16.mxu0 %v921
    %2473 = vmatpush1.bf16.msra.mxu0 %v920
    %2474 = vmatprep.subr.bf16.mxu0 %v929
    %2475 = vmatpush1.bf16.msra.mxu0 %v928
    %2476 = vmatprep.subr.bf16.mxu0 %v937
    %2477 = vmatpush1.bf16.msra.mxu0 %v936
    %2478 = vmatprep.subr.bf16.mxu0 %v945
    %2479 = vmatpush1.bf16.msra.mxu0 %v944
    %2480 = vmatprep.subr.bf16.mxu0 %v953
    %2481 = vmatpush1.bf16.msra.mxu0 %v952
    %2482 = vmatprep.subr.bf16.mxu0 %v961
    %2483 = vmatpush1.bf16.msra.mxu0 %v960
    %2484 = vmatprep.subr.bf16.mxu0 %v969
    %2485 = vmatpush1.bf16.msra.mxu0 %v968
    %2486 = vmatprep.subr.bf16.mxu0 %v977
    %2487 = vmatpush1.bf16.msra.mxu0 %v976
    %2488 = vmatprep.subr.bf16.mxu0 %v985
    %2489 = vmatpush1.bf16.msra.mxu0 %v984
    %2490 = vmatprep.subr.bf16.mxu0 %v993
    %2491 = vmatpush1.bf16.msra.mxu0 %v992
    %2492 = vmatprep.subr.bf16.mxu0 %v1001
    %2493 = vmatpush1.bf16.msra.mxu0 %v1000
    %2494 = vmatprep.subr.bf16.mxu0 %v1009
    %2495 = vmatpush1.bf16.msra.mxu0 %v1008
    %2496 = vmatprep.subr.bf16.mxu0 %v1017
    %2497 = vmatpush1.bf16.msra.mxu0 %v1016
    %2498 = vmatprep.mubr.bf16.mxu0 %v2465
    %2499 = vmatmul.mubr.bf16.gmra.mrb[0].mxu0 %v2464
    %v2500 = vpop.f32.mrb[0].mxu0
    %v2501 = vadd.f32 0.0, %v2500
    %v2502 = vpop.f32.mrb[0].mxu0
    %v2503 = vadd.f32 0.0, %v2502
    %v2504 = vpop.f32.mrb[0].mxu0
    %v2505 = vpop.f32.mrb[0].mxu0
    %2506 = vdwg.mxu0
    %2507 = vmatprep.subr.bf16.mxu0 %v899
    %2508 = vmatpush1.bf16.msra.mxu0 %v898
    %2509 = vmatprep.subr.bf16.mxu0 %v907
    %2510 = vmatpush1.bf16.msra.mxu0 %v906
    %2511 = vmatprep.subr.bf16.mxu0 %v915
    %2512 = vmatpush1.bf16.msra.mxu0 %v914
    %2513 = vmatprep.subr.bf16.mxu0 %v923
    %2514 = vmatpush1.bf16.msra.mxu0 %v922
    %2515 = vmatprep.subr.bf16.mxu0 %v931
    %2516 = vmatpush1.bf16.msra.mxu0 %v930
    %2517 = vmatprep.subr.bf16.mxu0 %v939
    %2518 = vmatpush1.bf16.msra.mxu0 %v938
    %2519 = vmatprep.subr.bf16.mxu0 %v947
    %2520 = vmatpush1.bf16.msra.mxu0 %v946
    %2521 = vmatprep.subr.bf16.mxu0 %v955
    %2522 = vmatpush1.bf16.msra.mxu0 %v954
    %2523 = vmatprep.subr.bf16.mxu0 %v963
    %2524 = vmatpush1.bf16.msra.mxu0 %v962
    %2525 = vmatprep.subr.bf16.mxu0 %v971
    %2526 = vmatpush1.bf16.msra.mxu0 %v970
    %2527 = vmatprep.subr.bf16.mxu0 %v979
    %2528 = vmatpush1.bf16.msra.mxu0 %v978
    %2529 = vmatprep.subr.bf16.mxu0 %v987
    %2530 = vmatpush1.bf16.msra.mxu0 %v986
    %2531 = vmatprep.subr.bf16.mxu0 %v995
    %2532 = vmatpush1.bf16.msra.mxu0 %v994
    %2533 = vmatprep.subr.bf16.mxu0 %v1003
    %2534 = vmatpush1.bf16.msra.mxu0 %v1002
    %2535 = vmatprep.subr.bf16.mxu0 %v1011
    %2536 = vmatpush1.bf16.msra.mxu0 %v1010
    %2537 = vmatprep.subr.bf16.mxu0 %v1019
    %2538 = vmatpush1.bf16.msra.mxu0 %v1018
    %2539 = vmatprep.mubr.bf16.mxu0 %v2465
    %2540 = vmatmul.mubr.bf16.gmra.mrb[0].mxu0 %v2464
    %v2541 = vpop.f32.mrb[0].mxu0
    %v2542 = vadd.f32 0.0, %v2541
    %v2543 = vpop.f32.mrb[0].mxu0
    %v2544 = vadd.f32 0.0, %v2543
    %v2545 = vpop.f32.mrb[0].mxu0
    %v2546 = vpop.f32.mrb[0].mxu0
    %2547 = vdwg.mxu0
    %2548 = vmatprep.subr.bf16.mxu0 %v901
    %2549 = vmatpush1.bf16.msra.mxu0 %v900
    %2550 = vmatprep.subr.bf16.mxu0 %v909
    %2551 = vmatpush1.bf16.msra.mxu0 %v908
    %2552 = vmatprep.subr.bf16.mxu0 %v917
    %2553 = vmatpush1.bf16.msra.mxu0 %v916
    %2554 = vmatprep.subr.bf16.mxu0 %v925
    %2555 = vmatpush1.bf16.msra.mxu0 %v924
    %2556 = vmatprep.subr.bf16.mxu0 %v933
    %2557 = vmatpush1.bf16.msra.mxu0 %v932
    %2558 = vmatprep.subr.bf16.mxu0 %v941
    %2559 = vmatpush1.bf16.msra.mxu0 %v940
    %2560 = vmatprep.subr.bf16.mxu0 %v949
    %2561 = vmatpush1.bf16.msra.mxu0 %v948
    %2562 = vmatprep.subr.bf16.mxu0 %v957
    %2563 = vmatpush1.bf16.msra.mxu0 %v956
    %2564 = vmatprep.subr.bf16.mxu0 %v965
    %2565 = vmatpush1.bf16.msra.mxu0 %v964
    %2566 = vmatprep.subr.bf16.mxu0 %v973
    %2567 = vmatpush1.bf16.msra.mxu0 %v972
    %2568 = vmatprep.subr.bf16.mxu0 %v981
    %2569 = vmatpush1.bf16.msra.mxu0 %v980
    %2570 = vmatprep.subr.bf16.mxu0 %v989
    %2571 = vmatpush1.bf16.msra.mxu0 %v988
    %2572 = vmatprep.subr.bf16.mxu0 %v997
    %2573 = vmatpush1.bf16.msra.mxu0 %v996
    %2574 = vmatprep.subr.bf16.mxu0 %v1005
    %2575 = vmatpush1.bf16.msra.mxu0 %v1004
    %2576 = vmatprep.subr.bf16.mxu0 %v1013
    %2577 = vmatpush1.bf16.msra.mxu0 %v1012
    %2578 = vmatprep.subr.bf16.mxu0 %v1021
    %2579 = vmatpush1.bf16.msra.mxu0 %v1020
    %2580 = vmatprep.mubr.bf16.mxu0 %v2465
    %2581 = vmatmul.mubr.bf16.gmra.mrb[0].mxu0 %v2464
    %v2582 = vpop.f32.mrb[0].mxu0
    %v2583 = vadd.f32 0.0, %v2582
    %v2584 = vpop.f32.mrb[0].mxu0
    %v2585 = vadd.f32 0.0, %v2584
    %v2586 = vpop.f32.mrb[0].mxu0
    %v2587 = vpop.f32.mrb[0].mxu0
    %2588 = vdwg.mxu0
    %2589 = vmatprep.subr.bf16.mxu0 %v903
    %2590 = vmatpush1.bf16.msra.mxu0 %v902
    %2591 = vmatprep.subr.bf16.mxu0 %v911
    %2592 = vmatpush1.bf16.msra.mxu0 %v910
    %2593 = vmatprep.subr.bf16.mxu0 %v919
    %2594 = vmatpush1.bf16.msra.mxu0 %v918
    %2595 = vmatprep.subr.bf16.mxu0 %v927
    %2596 = vmatpush1.bf16.msra.mxu0 %v926
    %2597 = vmatprep.subr.bf16.mxu0 %v935
    %2598 = vmatpush1.bf16.msra.mxu0 %v934
    %2599 = vmatprep.subr.bf16.mxu0 %v943
    %2600 = vmatpush1.bf16.msra.mxu0 %v942
    %2601 = vmatprep.subr.bf16.mxu0 %v951
    %2602 = vmatpush1.bf16.msra.mxu0 %v950
    %2603 = vmatprep.subr.bf16.mxu0 %v959
    %2604 = vmatpush1.bf16.msra.mxu0 %v958
    %2605 = vmatprep.subr.bf16.mxu0 %v967
    %2606 = vmatpush1.bf16.msra.mxu0 %v966
    %2607 = vmatprep.subr.bf16.mxu0 %v975
    %2608 = vmatpush1.bf16.msra.mxu0 %v974
    %2609 = vmatprep.subr.bf16.mxu0 %v983
    %2610 = vmatpush1.bf16.msra.mxu0 %v982
    %2611 = vmatprep.subr.bf16.mxu0 %v991
    %2612 = vmatpush1.bf16.msra.mxu0 %v990
    %2613 = vmatprep.subr.bf16.mxu0 %v999
    %2614 = vmatpush1.bf16.msra.mxu0 %v998
    %2615 = vmatprep.subr.bf16.mxu0 %v1007
    %2616 = vmatpush1.bf16.msra.mxu0 %v1006
    %2617 = vmatprep.subr.bf16.mxu0 %v1015
    %2618 = vmatpush1.bf16.msra.mxu0 %v1014
    %2619 = vmatprep.subr.bf16.mxu0 %v1023
    %2620 = vmatpush1.bf16.msra.mxu0 %v1022
    %2621 = vmatprep.mubr.bf16.mxu0 %v2465
    %2622 = vmatmul.mubr.bf16.gmra.mrb[0].mxu0 %v2464
    %v2623 = vpop.f32.mrb[0].mxu0
    %v2624 = vadd.f32 0.0, %v2623
    %v2625 = vpop.f32.mrb[0].mxu0
    %v2626 = vadd.f32 0.0, %v2625
    %v2627 = vpop.f32.mrb[0].mxu0
    %v2628 = vpop.f32.mrb[0].mxu0
    %2629 = vdwg.mxu0
    %v2630 = vadd.f32 %v2456, %v2501
    %v2631 = vadd.f32 %v2457, %v2503
    %v2632 = vadd.f32 %v2458, %v2542
    %v2633 = vadd.f32 %v2459, %v2544
    %v2634 = vadd.f32 %v2460, %v2583
    %v2635 = vadd.f32 %v2461, %v2585
    %v2636 = vadd.f32 %v2462, %v2624
    %v2637 = vadd.f32 %v2463, %v2626
    %v2638 = vmul.f32 %v2630, 0.5
    %v2639 = vmul.f32 %v2631, 0.5
    %v2640 = vtanh.pop %v2638
    %v2641 = vtanh.pop %v2639
    %v2642 = vadd.f32 %v2640, 1.0
    %v2643 = vadd.f32 %v2641, 1.0
    %v2644 = vmul.f32 %v2642, 0.5
    %v2645 = vmul.f32 %v2643, 0.5
    %v2646 = vmul.f32 %v2632, 0.5
    %v2647 = vmul.f32 %v2633, 0.5
    %v2648 = vtanh.pop %v2646
    %v2649 = vtanh.pop %v2647
    %v2650 = vadd.f32 %v2648, 1.0
    %v2651 = vadd.f32 %v2649, 1.0
    %v2652 = vmul.f32 %v2650, 0.5
    %v2653 = vmul.f32 %v2651, 0.5
    %v2654 = vtanh.pop %v2634
    %v2655 = vtanh.pop %v2635
    %v2656 = vmul.f32 %v2636, 0.5
    %v2657 = vmul.f32 %v2637, 0.5
    %v2658 = vtanh.pop %v2656
    %v2659 = vtanh.pop %v2657
    %v2660 = vadd.f32 %v2658, 1.0
    %v2661 = vadd.f32 %v2659, 1.0
    %v2662 = vmul.f32 %v2660, 0.5
    %v2663 = vmul.f32 %v2661, 0.5
    %v2664 = vmul.f32 %v2652, %v2449
    %v2665 = vmul.f32 %v2653, %v2450
    %v2666 = vmul.f32 %v2644, %v2654
    %v2667 = vmul.f32 %v2645, %v2655
    %v2668 = vadd.f32 %v2664, %v2666
    %v2669 = vadd.f32 %v2665, %v2667
    %v2670 = vtanh.pop %v2668
    %v2671 = vtanh.pop %v2669
    %v2672 = vmul.f32 %v2662, %v2670
    %v2673 = vmul.f32 %v2663, %v2671
    %s2674 = scalar_lea.vmem [#allocation2], 448
    %v2675 = vld [vmem:[%s2674] sm:$0xff]
    %v2676 = vld [vmem:[%s2674 + $0x8] sm:$0xff]
    %v2677 = vld [vmem:[%s2674 + $0x10] sm:$0xff]
    %v2678 = vld [vmem:[%s2674 + $0x18] sm:$0xff]
    %v2679 = vld [vmem:[%s2674 + $0x20] sm:$0xff]
    %v2680 = vld [vmem:[%s2674 + $0x28] sm:$0xff]
    %v2681 = vld [vmem:[%s2674 + $0x30] sm:$0xff]
    %v2682 = vld [vmem:[%s2674 + $0x38] sm:$0xff]
    %v2683 = vpack.c.bf16 %v2672, %v2672
    %v2684 = vpack.c.bf16 %v2673, %v2673
    %2685 = vmatprep.subr.bf16.mxu0 %v897
    %2686 = vmatpush1.bf16.msra.mxu0 %v896
    %2687 = vmatprep.subr.bf16.mxu0 %v905
    %2688 = vmatpush1.bf16.msra.mxu0 %v904
    %2689 = vmatprep.subr.bf16.mxu0 %v913
    %2690 = vmatpush1.bf16.msra.mxu0 %v912
    %2691 = vmatprep.subr.bf16.mxu0 %v921
    %2692 = vmatpush1.bf16.msra.mxu0 %v920
    %2693 = vmatprep.subr.bf16.mxu0 %v929
    %2694 = vmatpush1.bf16.msra.mxu0 %v928
    %2695 = vmatprep.subr.bf16.mxu0 %v937
    %2696 = vmatpush1.bf16.msra.mxu0 %v936
    %2697 = vmatprep.subr.bf16.mxu0 %v945
    %2698 = vmatpush1.bf16.msra.mxu0 %v944
    %2699 = vmatprep.subr.bf16.mxu0 %v953
    %2700 = vmatpush1.bf16.msra.mxu0 %v952
    %2701 = vmatprep.subr.bf16.mxu0 %v961
    %2702 = vmatpush1.bf16.msra.mxu0 %v960
    %2703 = vmatprep.subr.bf16.mxu0 %v969
    %2704 = vmatpush1.bf16.msra.mxu0 %v968
    %2705 = vmatprep.subr.bf16.mxu0 %v977
    %2706 = vmatpush1.bf16.msra.mxu0 %v976
    %2707 = vmatprep.subr.bf16.mxu0 %v985
    %2708 = vmatpush1.bf16.msra.mxu0 %v984
    %2709 = vmatprep.subr.bf16.mxu0 %v993
    %2710 = vmatpush1.bf16.msra.mxu0 %v992
    %2711 = vmatprep.subr.bf16.mxu0 %v1001
    %2712 = vmatpush1.bf16.msra.mxu0 %v1000
    %2713 = vmatprep.subr.bf16.mxu0 %v1009
    %2714 = vmatpush1.bf16.msra.mxu0 %v1008
    %2715 = vmatprep.subr.bf16.mxu0 %v1017
    %2716 = vmatpush1.bf16.msra.mxu0 %v1016
    %2717 = vmatprep.mubr.bf16.mxu0 %v2684
    %2718 = vmatmul.mubr.bf16.gmra.mrb[0].mxu0 %v2683
    %v2719 = vpop.f32.mrb[0].mxu0
    %v2720 = vadd.f32 0.0, %v2719
    %v2721 = vpop.f32.mrb[0].mxu0
    %v2722 = vadd.f32 0.0, %v2721
    %v2723 = vpop.f32.mrb[0].mxu0
    %v2724 = vpop.f32.mrb[0].mxu0
    %2725 = vdwg.mxu0
    %2726 = vmatprep.subr.bf16.mxu0 %v899
    %2727 = vmatpush1.bf16.msra.mxu0 %v898
    %2728 = vmatprep.subr.bf16.mxu0 %v907
    %2729 = vmatpush1.bf16.msra.mxu0 %v906
    %2730 = vmatprep.subr.bf16.mxu0 %v915
    %2731 = vmatpush1.bf16.msra.mxu0 %v914
    %2732 = vmatprep.subr.bf16.mxu0 %v923
    %2733 = vmatpush1.bf16.msra.mxu0 %v922
    %2734 = vmatprep.subr.bf16.mxu0 %v931
    %2735 = vmatpush1.bf16.msra.mxu0 %v930
    %2736 = vmatprep.subr.bf16.mxu0 %v939
    %2737 = vmatpush1.bf16.msra.mxu0 %v938
    %2738 = vmatprep.subr.bf16.mxu0 %v947
    %2739 = vmatpush1.bf16.msra.mxu0 %v946
    %2740 = vmatprep.subr.bf16.mxu0 %v955
    %2741 = vmatpush1.bf16.msra.mxu0 %v954
    %2742 = vmatprep.subr.bf16.mxu0 %v963
    %2743 = vmatpush1.bf16.msra.mxu0 %v962
    %2744 = vmatprep.subr.bf16.mxu0 %v971
    %2745 = vmatpush1.bf16.msra.mxu0 %v970
    %2746 = vmatprep.subr.bf16.mxu0 %v979
    %2747 = vmatpush1.bf16.msra.mxu0 %v978
    %2748 = vmatprep.subr.bf16.mxu0 %v987
    %2749 = vmatpush1.bf16.msra.mxu0 %v986
    %2750 = vmatprep.subr.bf16.mxu0 %v995
    %2751 = vmatpush1.bf16.msra.mxu0 %v994
    %2752 = vmatprep.subr.bf16.mxu0 %v1003
    %2753 = vmatpush1.bf16.msra.mxu0 %v1002
    %2754 = vmatprep.subr.bf16.mxu0 %v1011
    %2755 = vmatpush1.bf16.msra.mxu0 %v1010
    %2756 = vmatprep.subr.bf16.mxu0 %v1019
    %2757 = vmatpush1.bf16.msra.mxu0 %v1018
    %2758 = vmatprep.mubr.bf16.mxu0 %v2684
    %2759 = vmatmul.mubr.bf16.gmra.mrb[0].mxu0 %v2683
    %v2760 = vpop.f32.mrb[0].mxu0
    %v2761 = vadd.f32 0.0, %v2760
    %v2762 = vpop.f32.mrb[0].mxu0
    %v2763 = vadd.f32 0.0, %v2762
    %v2764 = vpop.f32.mrb[0].mxu0
    %v2765 = vpop.f32.mrb[0].mxu0
    %2766 = vdwg.mxu0
    %2767 = vmatprep.subr.bf16.mxu0 %v901
    %2768 = vmatpush1.bf16.msra.mxu0 %v900
    %2769 = vmatprep.subr.bf16.mxu0 %v909
    %2770 = vmatpush1.bf16.msra.mxu0 %v908
    %2771 = vmatprep.subr.bf16.mxu0 %v917
    %2772 = vmatpush1.bf16.msra.mxu0 %v916
    %2773 = vmatprep.subr.bf16.mxu0 %v925
    %2774 = vmatpush1.bf16.msra.mxu0 %v924
    %2775 = vmatprep.subr.bf16.mxu0 %v933
    %2776 = vmatpush1.bf16.msra.mxu0 %v932
    %2777 = vmatprep.subr.bf16.mxu0 %v941
    %2778 = vmatpush1.bf16.msra.mxu0 %v940
    %2779 = vmatprep.subr.bf16.mxu0 %v949
    %2780 = vmatpush1.bf16.msra.mxu0 %v948
    %2781 = vmatprep.subr.bf16.mxu0 %v957
    %2782 = vmatpush1.bf16.msra.mxu0 %v956
    %2783 = vmatprep.subr.bf16.mxu0 %v965
    %2784 = vmatpush1.bf16.msra.mxu0 %v964
    %2785 = vmatprep.subr.bf16.mxu0 %v973
    %2786 = vmatpush1.bf16.msra.mxu0 %v972
    %2787 = vmatprep.subr.bf16.mxu0 %v981
    %2788 = vmatpush1.bf16.msra.mxu0 %v980
    %2789 = vmatprep.subr.bf16.mxu0 %v989
    %2790 = vmatpush1.bf16.msra.mxu0 %v988
    %2791 = vmatprep.subr.bf16.mxu0 %v997
    %2792 = vmatpush1.bf16.msra.mxu0 %v996
    %2793 = vmatprep.subr.bf16.mxu0 %v1005
    %2794 = vmatpush1.bf16.msra.mxu0 %v1004
    %2795 = vmatprep.subr.bf16.mxu0 %v1013
    %2796 = vmatpush1.bf16.msra.mxu0 %v1012
    %2797 = vmatprep.subr.bf16.mxu0 %v1021
    %2798 = vmatpush1.bf16.msra.mxu0 %v1020
    %2799 = vmatprep.mubr.bf16.mxu0 %v2684
    %2800 = vmatmul.mubr.bf16.gmra.mrb[0].mxu0 %v2683
    %v2801 = vpop.f32.mrb[0].mxu0
    %v2802 = vadd.f32 0.0, %v2801
    %v2803 = vpop.f32.mrb[0].mxu0
    %v2804 = vadd.f32 0.0, %v2803
    %v2805 = vpop.f32.mrb[0].mxu0
    %v2806 = vpop.f32.mrb[0].mxu0
    %2807 = vdwg.mxu0
    %2808 = vmatprep.subr.bf16.mxu0 %v903
    %2809 = vmatpush1.bf16.msra.mxu0 %v902
    %2810 = vmatprep.subr.bf16.mxu0 %v911
    %2811 = vmatpush1.bf16.msra.mxu0 %v910
    %2812 = vmatprep.subr.bf16.mxu0 %v919
    %2813 = vmatpush1.bf16.msra.mxu0 %v918
    %2814 = vmatprep.subr.bf16.mxu0 %v927
    %2815 = vmatpush1.bf16.msra.mxu0 %v926
    %2816 = vmatprep.subr.bf16.mxu0 %v935
    %2817 = vmatpush1.bf16.msra.mxu0 %v934
    %2818 = vmatprep.subr.bf16.mxu0 %v943
    %2819 = vmatpush1.bf16.msra.mxu0 %v942
    %2820 = vmatprep.subr.bf16.mxu0 %v951
    %2821 = vmatpush1.bf16.msra.mxu0 %v950
    %2822 = vmatprep.subr.bf16.mxu0 %v959
    %2823 = vmatpush1.bf16.msra.mxu0 %v958
    %2824 = vmatprep.subr.bf16.mxu0 %v967
    %2825 = vmatpush1.bf16.msra.mxu0 %v966
    %2826 = vmatprep.subr.bf16.mxu0 %v975
    %2827 = vmatpush1.bf16.msra.mxu0 %v974
    %2828 = vmatprep.subr.bf16.mxu0 %v983
    %2829 = vmatpush1.bf16.msra.mxu0 %v982
    %2830 = vmatprep.subr.bf16.mxu0 %v991
    %2831 = vmatpush1.bf16.msra.mxu0 %v990
    %2832 = vmatprep.subr.bf16.mxu0 %v999
    %2833 = vmatpush1.bf16.msra.mxu0 %v998
    %2834 = vmatprep.subr.bf16.mxu0 %v1007
    %2835 = vmatpush1.bf16.msra.mxu0 %v1006
    %2836 = vmatprep.subr.bf16.mxu0 %v1015
    %2837 = vmatpush1.bf16.msra.mxu0 %v1014
    %2838 = vmatprep.subr.bf16.mxu0 %v1023
    %2839 = vmatpush1.bf16.msra.mxu0 %v1022
    %2840 = vmatprep.mubr.bf16.mxu0 %v2684
    %2841 = vmatmul.mubr.bf16.gmra.mrb[0].mxu0 %v2683
    %v2842 = vpop.f32.mrb[0].mxu0
    %v2843 = vadd.f32 0.0, %v2842
    %v2844 = vpop.f32.mrb[0].mxu0
    %v2845 = vadd.f32 0.0, %v2844
    %v2846 = vpop.f32.mrb[0].mxu0
    %v2847 = vpop.f32.mrb[0].mxu0
    %2848 = vdwg.mxu0
    %v2849 = vadd.f32 %v2675, %v2720
    %v2850 = vadd.f32 %v2676, %v2722
    %v2851 = vadd.f32 %v2677, %v2761
    %v2852 = vadd.f32 %v2678, %v2763
    %v2853 = vadd.f32 %v2679, %v2802
    %v2854 = vadd.f32 %v2680, %v2804
    %v2855 = vadd.f32 %v2681, %v2843
    %v2856 = vadd.f32 %v2682, %v2845
    %v2857 = vmul.f32 %v2849, 0.5
    %v2858 = vmul.f32 %v2850, 0.5
    %v2859 = vtanh.pop %v2857
    %v2860 = vtanh.pop %v2858
    %v2861 = vadd.f32 %v2859, 1.0
    %v2862 = vadd.f32 %v2860, 1.0
    %v2863 = vmul.f32 %v2861, 0.5
    %v2864 = vmul.f32 %v2862, 0.5
    %v2865 = vmul.f32 %v2851, 0.5
    %v2866 = vmul.f32 %v2852, 0.5
    %v2867 = vtanh.pop %v2865
    %v2868 = vtanh.pop %v2866
    %v2869 = vadd.f32 %v2867, 1.0
    %v2870 = vadd.f32 %v2868, 1.0
    %v2871 = vmul.f32 %v2869, 0.5
    %v2872 = vmul.f32 %v2870, 0.5
    %v2873 = vtanh.pop %v2853
    %v2874 = vtanh.pop %v2854
    %v2875 = vmul.f32 %v2855, 0.5
    %v2876 = vmul.f32 %v2856, 0.5
    %v2877 = vtanh.pop %v2875
    %v2878 = vtanh.pop %v2876
    %v2879 = vadd.f32 %v2877, 1.0
    %v2880 = vadd.f32 %v2878, 1.0
    %v2881 = vmul.f32 %v2879, 0.5
    %v2882 = vmul.f32 %v2880, 0.5
    %v2883 = vmul.f32 %v2871, %v2668
    %v2884 = vmul.f32 %v2872, %v2669
    %v2885 = vmul.f32 %v2863, %v2873
    %v2886 = vmul.f32 %v2864, %v2874
    %v2887 = vadd.f32 %v2883, %v2885
    %v2888 = vadd.f32 %v2884, %v2886
    %v2889 = vtanh.pop %v2887
    %v2890 = vtanh.pop %v2888
    %v2891 = vmul.f32 %v2881, %v2889
    %v2892 = vmul.f32 %v2882, %v2890
    %v2893 = vld [vmem:[#allocation5] sm:$0xff]
    %v2894 = vld [vmem:[#allocation5 + $0x8] sm:$0xff]
    %v2895 = vld [vmem:[#allocation5 + $0x10] sm:$0xff]
    %v2896 = vld [vmem:[#allocation5 + $0x18] sm:$0xff]
    %v2897 = vld [vmem:[#allocation5 + $0x20] sm:$0xff]
    %v2898 = vld [vmem:[#allocation5 + $0x28] sm:$0xff]
    %v2899 = vld [vmem:[#allocation5 + $0x30] sm:$0xff]
    %v2900 = vld [vmem:[#allocation5 + $0x38] sm:$0xff]
    %v2901 = vld [vmem:[#allocation5 + $0x40] sm:$0xff]
    %v2902 = vld [vmem:[#allocation5 + $0x48] sm:$0xff]
    %v2903 = vld [vmem:[#allocation5 + $0x50] sm:$0xff]
    %v2904 = vld [vmem:[#allocation5 + $0x58] sm:$0xff]
    %v2905 = vld [vmem:[#allocation5 + $0x60] sm:$0xff]
    %v2906 = vld [vmem:[#allocation5 + $0x68] sm:$0xff]
    %v2907 = vld [vmem:[#allocation5 + $0x70] sm:$0xff]
    %v2908 = vld [vmem:[#allocation5 + $0x78] sm:$0xff]
    %v2909 = vld [vmem:[#allocation5 + $0x80] sm:$0xff]
    %v2910 = vld [vmem:[#allocation5 + $0x88] sm:$0xff]
    %v2911 = vld [vmem:[#allocation5 + $0x90] sm:$0xff]
    %v2912 = vld [vmem:[#allocation5 + $0x98] sm:$0xff]
    %v2913 = vld [vmem:[#allocation5 + $0xa0] sm:$0xff]
    %v2914 = vld [vmem:[#allocation5 + $0xa8] sm:$0xff]
    %v2915 = vld [vmem:[#allocation5 + $0xb0] sm:$0xff]
    %v2916 = vld [vmem:[#allocation5 + $0xb8] sm:$0xff]
    %v2917 = vld [vmem:[#allocation5 + $0xc0] sm:$0xff]
    %v2918 = vld [vmem:[#allocation5 + $0xc8] sm:$0xff]
    %v2919 = vld [vmem:[#allocation5 + $0xd0] sm:$0xff]
    %v2920 = vld [vmem:[#allocation5 + $0xd8] sm:$0xff]
    %v2921 = vld [vmem:[#allocation5 + $0xe0] sm:$0xff]
    %v2922 = vld [vmem:[#allocation5 + $0xe8] sm:$0xff]
    %v2923 = vld [vmem:[#allocation5 + $0xf0] sm:$0xff]
    %v2924 = vld [vmem:[#allocation5 + $0xf8] sm:$0xff]
    %v2925 = vld [vmem:[%s5] sm:$0x1]
    %v2927 = vlaneseq
    %v2928 = vshrl.u32 %v2927, 7
    %v2929 = vsub.s32 0, %v2928
    %v2930 = vrot.slane %v2925, %v2929
    %2932 = vmatprep.subr.mxu0 0.0
    %2933 = vmatpush1.msra.mxu0 %v2893
    %2934 = vmatprep.subr.mxu0 0.0
    %2935 = vmatpush1.msra.mxu0 %v2894
    %2936 = vmatprep.subr.mxu0 0.0
    %2937 = vmatpush1.msra.mxu0 %v2895
    %2938 = vmatprep.subr.mxu0 0.0
    %2939 = vmatpush1.msra.mxu0 %v2896
    %2940 = vmatprep.subr.mxu0 0.0
    %2941 = vmatpush1.msra.mxu0 %v2897
    %2942 = vmatprep.subr.mxu0 0.0
    %2943 = vmatpush1.msra.mxu0 %v2898
    %2944 = vmatprep.subr.mxu0 0.0
    %2945 = vmatpush1.msra.mxu0 %v2899
    %2946 = vmatprep.subr.mxu0 0.0
    %2947 = vmatpush1.msra.mxu0 %v2900
    %2948 = vmatprep.subr.mxu0 0.0
    %2949 = vmatpush1.msra.mxu0 %v2901
    %2950 = vmatprep.subr.mxu0 0.0
    %2951 = vmatpush1.msra.mxu0 %v2902
    %2952 = vmatprep.subr.mxu0 0.0
    %2953 = vmatpush1.msra.mxu0 %v2903
    %2954 = vmatprep.subr.mxu0 0.0
    %2955 = vmatpush1.msra.mxu0 %v2904
    %2956 = vmatprep.subr.mxu0 0.0
    %2957 = vmatpush1.msra.mxu0 %v2905
    %2958 = vmatprep.subr.mxu0 0.0
    %2959 = vmatpush1.msra.mxu0 %v2906
    %2960 = vmatprep.subr.mxu0 0.0
    %2961 = vmatpush1.msra.mxu0 %v2907
    %2962 = vmatprep.subr.mxu0 0.0
    %2963 = vmatpush1.msra.mxu0 %v2908
    %2964 = vmatprep.subr.mxu0 0.0
    %2965 = vmatpush1.msra.mxu0 %v2909
    %2966 = vmatprep.subr.mxu0 0.0
    %2967 = vmatpush1.msra.mxu0 %v2910
    %2968 = vmatprep.subr.mxu0 0.0
    %2969 = vmatpush1.msra.mxu0 %v2911
    %2970 = vmatprep.subr.mxu0 0.0
    %2971 = vmatpush1.msra.mxu0 %v2912
    %2972 = vmatprep.subr.mxu0 0.0
    %2973 = vmatpush1.msra.mxu0 %v2913
    %2974 = vmatprep.subr.mxu0 0.0
    %2975 = vmatpush1.msra.mxu0 %v2914
    %2976 = vmatprep.subr.mxu0 0.0
    %2977 = vmatpush1.msra.mxu0 %v2915
    %2978 = vmatprep.subr.mxu0 0.0
    %2979 = vmatpush1.msra.mxu0 %v2916
    %2980 = vmatprep.subr.mxu0 0.0
    %2981 = vmatpush1.msra.mxu0 %v2917
    %2982 = vmatprep.subr.mxu0 0.0
    %2983 = vmatpush1.msra.mxu0 %v2918
    %2984 = vmatprep.subr.mxu0 0.0
    %2985 = vmatpush1.msra.mxu0 %v2919
    %2986 = vmatprep.subr.mxu0 0.0
    %2987 = vmatpush1.msra.mxu0 %v2920
    %2988 = vmatprep.subr.mxu0 0.0
    %2989 = vmatpush1.msra.mxu0 %v2921
    %2990 = vmatprep.subr.mxu0 0.0
    %2991 = vmatpush1.msra.mxu0 %v2922
    %2992 = vmatprep.subr.mxu0 0.0
    %2993 = vmatpush1.msra.mxu0 %v2923
    %2994 = vmatprep.subr.mxu0 0.0
    %2995 = vmatpush1.msra.mxu0 %v2924
    %2996 = vmatprep.mubr.f32.mxu0 %v2892
    %2997 = vmatmul.mubr.f32.gmra.mrb[0].mxu0 %v2891
    %v2998 = vpop.f32.mrb[0].mxu0
    %v2999 = vadd.f32 %v2930, %v2998
    %v3000 = vpop.f32.mrb[0].mxu0
    %3001 = vdwg.mxu0
    %3002 = vst [vmem:[%s6] sm:$0xff] %v2999
    // Predicated region
    $region34: #{char_model_forward.1} parent=1 // pred_check
      _
    $region35: #{char_model_forward.1} parent=1 // pred_check_branch
      %3004 = sbr.rel (0) target = $region37
    $region36: #{char_model_forward.1} parent=1 // pred_region
      _
    $region37: #{char_model_forward.1} parent=1 // pred_fallthru
      _
    // Predicated region
    $region38: #{char_model_forward.1} parent=1 // pred_check
      _
    $region39: #{char_model_forward.1} parent=1 // pred_check_branch
      %3006 = sbr.rel (0) target = $region41
    $region40: #{char_model_forward.1} parent=1 // pred_region
      _
    $region41: #{char_model_forward.1} parent=1 // pred_fallthru
      _
    %3007 = vsyncpa [#allocation4], 1
    %3008 = vsyncpa [#allocation6], 1

</llo_original>
